<compile_context>
chip_gen: v7x
topology: tpu7x:2x2x1
jax: 0.10.0
libtpu: 0.0.40
codegen_flags: <defaults>
</compile_context>

<pallas_src>
import functools
import math

import numpy as np
import jax
import jax.numpy as jnp
from jax import lax
from jax.experimental import pallas as pl
from jax.experimental.pallas import tpu as pltpu


# ----------------------------- Pallas kernels -----------------------------

def posenc_kernel(x_ref, p_ref, o_ref, *, scale):
    # out = embedding * sqrt(D) + positional_encoding   (dropout p=0 -> identity)
    o_ref[0] = x_ref[0] * scale + p_ref[...]


def dense_kernel(x_ref, w_ref, b_ref, o_ref):
    # out = x @ w + b
    o_ref[...] = (
        jnp.dot(x_ref[...], w_ref[...], preferred_element_type=jnp.float32)
        + b_ref[...]
    )


def _layernorm(s, g, b):
    # PyTorch LayerNorm: biased variance, eps=1e-5
    mean = jnp.mean(s, axis=-1, keepdims=True)
    var = jnp.mean((s - mean) ** 2, axis=-1, keepdims=True)
    return (s - mean) * lax.rsqrt(var + 1e-5) * g + b


def decoder_block_kernel(
        vl_ref,                                   # SMEM (B,) int32 enc_valid_lens
        x_ref, enc_ref,
        wqkv1_ref, wo1_ref, ln1g_ref, ln1b_ref,
        wq2_ref, wkv2_ref, wo2_ref, ln2g_ref, ln2b_ref,
        fw1_ref, fb1_ref, fw2_ref, fb2_ref, ln3g_ref, ln3b_ref,
        out_ref, attn1_ref, attn2_ref,
        *, num_heads):
    b = pl.program_id(0)
    x = x_ref[0]                       # (T, D)
    enc = enc_ref[0]                   # (Tk, D)
    T, D = x.shape
    H = num_heads
    dh = D // H
    inv_sqrt_dh = 1.0 / math.sqrt(dh)

    def mha(q_full, k_full, v_full, valid, attn_w_ref):
        # q_full: (Tq, D); k_full/v_full: (Tkv, D)
        # valid: int32 scalar or (Tq, 1) -> mask keys with key_id >= valid
        Tq = q_full.shape[0]
        Tkv = k_full.shape[0]
        head_outs = []
        for h in range(H):             # static unroll (H small)
            sl = slice(h * dh, (h + 1) * dh)
            qh = q_full[:, sl]
            kh = k_full[:, sl]
            vh = v_full[:, sl]
            # contract last dims directly -> no explicit K transpose
            s = lax.dot_general(qh, kh, (((1,), (1,)), ((), ())),
                                preferred_element_type=jnp.float32) * inv_sqrt_dh
            key_ids = lax.broadcasted_iota(jnp.int32, (Tq, Tkv), 1)
            s = jnp.where(key_ids < valid, s, jnp.float32(-1e6))
            m = jnp.max(s, axis=-1, keepdims=True)
            p = jnp.exp(s - m)
            attn = p * pl.reciprocal(jnp.sum(p, axis=-1, keepdims=True), approx=True)
            attn_w_ref[0, h] = attn
            head_outs.append(jnp.dot(attn, vh, preferred_element_type=jnp.float32))
        return jnp.concatenate(head_outs, axis=-1)     # (Tq, D)

    # ---- masked multi-head self-attention (fused QKV projection) ----
    qkv = jnp.dot(x, wqkv1_ref[...], preferred_element_type=jnp.float32)   # (T, 3D)
    q1 = qkv[:, :D]
    k1 = qkv[:, D:2 * D]
    v1 = qkv[:, 2 * D:]
    causal_valid = lax.broadcasted_iota(jnp.int32, (T, 1), 0) + 1          # row i -> i+1
    o1 = mha(q1, k1, v1, causal_valid, attn1_ref)
    x2 = jnp.dot(o1, wo1_ref[...], preferred_element_type=jnp.float32)
    y = _layernorm(x + x2, ln1g_ref[...], ln1b_ref[...])

    # ---- encoder-decoder cross attention (fused KV projection) ----
    q2 = jnp.dot(y, wq2_ref[...], preferred_element_type=jnp.float32)      # (T, D)
    kv2 = jnp.dot(enc, wkv2_ref[...], preferred_element_type=jnp.float32)  # (Tk, 2D)
    k2 = kv2[:, :D]
    v2 = kv2[:, D:]
    o2 = mha(q2, k2, v2, vl_ref[b], attn2_ref)
    y2 = jnp.dot(o2, wo2_ref[...], preferred_element_type=jnp.float32)
    z = _layernorm(y + y2, ln2g_ref[...], ln2b_ref[...])

    # ---- position-wise FFN + addnorm3 ----
    h1 = jnp.maximum(
        jnp.dot(z, fw1_ref[...], preferred_element_type=jnp.float32) + fb1_ref[...],
        0.0)
    f = jnp.dot(h1, fw2_ref[...], preferred_element_type=jnp.float32) + fb2_ref[...]
    out_ref[0] = _layernorm(z + f, ln3g_ref[...], ln3b_ref[...])


# ----------------------------- Pallas wrappers -----------------------------

def pallas_posenc(emb, pos_table, scale):
    B, T, D = emb.shape
    return pl.pallas_call(
        functools.partial(posenc_kernel, scale=scale),
        out_shape=jax.ShapeDtypeStruct((B, T, D), jnp.float32),
        grid=(B,),
        in_specs=[pl.BlockSpec((1, T, D), lambda b: (b, 0, 0)),
                  pl.BlockSpec((T, D), lambda b: (0, 0))],
        out_specs=pl.BlockSpec((1, T, D), lambda b: (b, 0, 0)),
        compiler_params=pltpu.CompilerParams(dimension_semantics=("parallel",)),
    )(emb, pos_table)


def pallas_dense(x, w, b):
    M, K = x.shape
    N = w.shape[1]
    return pl.pallas_call(
        dense_kernel,
        out_shape=jax.ShapeDtypeStruct((M, N), jnp.float32),
        grid=(1,),
        in_specs=[pl.BlockSpec((M, K), lambda i: (0, 0)),
                  pl.BlockSpec((K, N), lambda i: (0, 0)),
                  pl.BlockSpec((1, N), lambda i: (0, 0))],
        out_specs=pl.BlockSpec((M, N), lambda i: (0, 0)),
        compiler_params=pltpu.CompilerParams(dimension_semantics=("arbitrary",)),
    )(x, w, b)


def pallas_decoder_block(blk, x, enc_outputs, enc_valid_lens, num_heads):
    B, T, D = x.shape
    Tk = enc_outputs.shape[1]
    H = num_heads

    def full_spec(arr):
        n = len(arr.shape)
        return pl.BlockSpec(arr.shape, lambda b, vl, n=n: (0,) * n)

    weights = (blk["attn1_wqkv"], blk["attn1_wo"], blk["ln1_g"], blk["ln1_b"],
               blk["attn2_wq"], blk["attn2_wkv"], blk["attn2_wo"],
               blk["ln2_g"], blk["ln2_b"],
               blk["ffn_w1"], blk["ffn_b1"], blk["ffn_w2"], blk["ffn_b2"],
               blk["ln3_g"], blk["ln3_b"])

    grid_spec = pltpu.PrefetchScalarGridSpec(
        num_scalar_prefetch=1,
        grid=(B,),
        in_specs=[pl.BlockSpec((1, T, D), lambda b, vl: (b, 0, 0)),
                  pl.BlockSpec((1, Tk, D), lambda b, vl: (b, 0, 0))]
                 + [full_spec(w) for w in weights],
        out_specs=(pl.BlockSpec((1, T, D), lambda b, vl: (b, 0, 0)),
                   pl.BlockSpec((1, H, T, T), lambda b, vl: (b, 0, 0, 0)),
                   pl.BlockSpec((1, H, T, Tk), lambda b, vl: (b, 0, 0, 0))),
    )
    out, attn1, attn2 = pl.pallas_call(
        functools.partial(decoder_block_kernel, num_heads=H),
        out_shape=(jax.ShapeDtypeStruct((B, T, D), jnp.float32),
                   jax.ShapeDtypeStruct((B, H, T, T), jnp.float32),
                   jax.ShapeDtypeStruct((B, H, T, Tk), jnp.float32)),
        grid_spec=grid_spec,
        compiler_params=pltpu.CompilerParams(dimension_semantics=("parallel",)),
    )(enc_valid_lens.astype(jnp.int32), x, enc_outputs, *weights)
    # d2l attention weights layout: batch-major (b*H + h)
    return out, attn1.reshape(B * H, T, T), attn2.reshape(B * H, T, Tk)


# ----------------------------- Model forward -----------------------------

def transformer_decoder_forward(params, X_tokens, enc_outputs, enc_valid_lens,
                                num_heads, num_hiddens):
    B, T = X_tokens.shape
    D = num_hiddens
    n_blocks = len(params["blocks"])

    # Embedding lookup (gather) — plain JAX glue.
    # TODO(synk): nn.Embedding gather has no clean Pallas tiling at this size; kept in XLA.
    emb = jnp.take(params["embedding"], X_tokens, axis=0)          # (B, T, D)
    x = pallas_posenc(emb, params["pos_table"], math.sqrt(D))      # (B, T, D)
    # dropout p = 0.0 -> identity (training-mode semantics otherwise kept).

    state = [enc_outputs, enc_valid_lens, [None] * n_blocks]
    attention_weights = [[None] * n_blocks for _ in range(2)]

    for i, blk in enumerate(params["blocks"]):
        # first (training) pass: state cache is None -> key_values = x
        state[2][i] = x
        x, w1, w2 = pallas_decoder_block(blk, x, enc_outputs, enc_valid_lens, num_heads)
        attention_weights[0][i] = w1   # (B*H, T, T)
        attention_weights[1][i] = w2   # (B*H, T, Tk_enc)

    logits = pallas_dense(x.reshape(B * T, D), params["dense_w"],
                          params["dense_b"]).reshape(B, T, -1)
    return logits, state, attention_weights


# ----------------------------- Parameter init -----------------------------

def make_pos_table(max_len, D):
    pos = np.arange(max_len, dtype=np.float32).reshape(-1, 1)
    div = np.power(10000.0, np.arange(0, D, 2, dtype=np.float32) / D)
    X = pos / div
    P = np.zeros((max_len, D), np.float32)
    P[:, 0::2] = np.sin(X)
    P[:, 1::2] = np.cos(X)
    return jnp.asarray(P)


def init_params(vocab_size, num_hiddens, ffn_num_hiddens, num_layers):
    keys = iter(jax.random.split(jax.random.PRNGKey(0), 256))

    def nrm(shape, scale=0.1):
        return scale * jax.random.normal(next(keys), shape, dtype=jnp.float32)

    D, Hf = num_hiddens, ffn_num_hiddens
    params = {
        "embedding": nrm((vocab_size, D), 1.0),
        "pos_table": make_pos_table(1000, D),
        "dense_w": nrm((D, vocab_size)),
        "dense_b": jnp.zeros((1, vocab_size), jnp.float32),
        "blocks": [],
    }
    for _ in range(num_layers):
        blk = {
            # self-attention: fused Wq|Wk|Wv (d2l MultiHeadAttention uses bias=False)
            "attn1_wqkv": jnp.concatenate([nrm((D, D)), nrm((D, D)), nrm((D, D))], axis=1),
            "attn1_wo": nrm((D, D)),
            "ln1_g": jnp.ones((1, D), jnp.float32), "ln1_b": jnp.zeros((1, D), jnp.float32),
            # cross-attention: separate Wq (decoder side), fused Wk|Wv (encoder side)
            "attn2_wq": nrm((D, D)),
            "attn2_wkv": jnp.concatenate([nrm((D, D)), nrm((D, D))], axis=1),
            "attn2_wo": nrm((D, D)),
            "ln2_g": jnp.ones((1, D), jnp.float32), "ln2_b": jnp.zeros((1, D), jnp.float32),
            "ffn_w1": nrm((D, Hf)), "ffn_b1": jnp.zeros((1, Hf), jnp.float32),
            "ffn_w2": nrm((Hf, D)), "ffn_b2": jnp.zeros((1, D), jnp.float32),
            "ln3_g": jnp.ones((1, D), jnp.float32), "ln3_b": jnp.zeros((1, D), jnp.float32),
        }
        params["blocks"].append(blk)
    return params


# ----------------------------- Main -----------------------------

if __name__ == "__main__":
    vocab_size = 40
    num_hiddens = 32
    num_heads = 4
    num_layers = 2
    ffn_num_hiddens = 64
    B, T = 2, 8

    params = init_params(vocab_size, num_hiddens, ffn_num_hiddens, num_layers)

    key = jax.random.PRNGKey(0)
    X_tokens = jax.random.randint(jax.random.fold_in(key, 0), (B, T), 0, vocab_size,
                                  dtype=jnp.int32)
    enc_outputs = jax.random.normal(jax.random.fold_in(key, 1), (B, T, num_hiddens),
                                    dtype=jnp.float32)
    enc_valid_lens = jnp.array([8, 5], dtype=jnp.int32)

    fwd = jax.jit(transformer_decoder_forward, static_argnums=(4, 5))
    logits, state, attn_w = fwd(params, X_tokens, enc_outputs, enc_valid_lens,
                                num_heads, num_hiddens)

    jax.block_until_ready(logits)
    assert logits.shape == (B, T, vocab_size)
    assert attn_w[0][0].shape == (B * num_heads, T, T)
    assert attn_w[1][0].shape == (B * num_heads, T, T)
    print("KERNEL_OK")
</pallas_src>

<mosaic_0001>
module attributes {stable_mosaic.version = 11 : i64} {
  func.func @posenc_kernel(%arg0: i32, %arg1: memref<1x8x32xf32, #tpu.memory_space<vmem>>, %arg2: memref<8x32xf32, #tpu.memory_space<vmem>>, %arg3: memref<1x8x32xf32, #tpu.memory_space<vmem>>) attributes {dimension_semantics = [#tpu.dimension_semantics<parallel>], iteration_bounds = array<i64: 2>, scalar_prefetch = 0 : i64, scratch_operands = 0 : i64, tpu.core_type = #tpu.core_type<tc>, window_params = [{transform_indices = @transform_0, window_bounds = array<i64: 1, 8, 32>}, {transform_indices = @transform_1, window_bounds = array<i64: 8, 32>}, {transform_indices = @transform_2, window_bounds = array<i64: 1, 8, 32>}]} {
    %c0 = arith.constant 0 : index
    %c0_0 = arith.constant 0 : index
    %c0_1 = arith.constant 0 : index
    %0 = vector.load %arg1[%c0, %c0_0, %c0_1] : memref<1x8x32xf32, #tpu.memory_space<vmem>>, vector<1x8x32xf32>
    %1 = vector.shape_cast %0 : vector<1x8x32xf32> to vector<8x32xf32>
    %cst = arith.constant 5.65685415 : f32
    %2 = vector.broadcast %cst : f32 to vector<8x32xf32>
    %3 = arith.mulf %1, %2 : vector<8x32xf32>
    %c0_2 = arith.constant 0 : index
    %c0_3 = arith.constant 0 : index
    %4 = vector.load %arg2[%c0_2, %c0_3] : memref<8x32xf32, #tpu.memory_space<vmem>>, vector<8x32xf32>
    %5 = arith.addf %3, %4 : vector<8x32xf32>
    %c0_4 = arith.constant 0 : index
    %c0_5 = arith.constant 0 : index
    %c0_6 = arith.constant 0 : index
    %6 = vector.load %arg3[%c0_4, %c0_5, %c0_6] : memref<1x8x32xf32, #tpu.memory_space<vmem>>, vector<1x8x32xf32>
    %7 = vector.shape_cast %6 : vector<1x8x32xf32> to vector<8x32xf32>
    %8 = vector.shape_cast %5 : vector<8x32xf32> to vector<1x8x32xf32>
    tpu.vector_store %arg3[%c0_4, %c0_5, %c0_6], %8 {strides = array<i32>} : memref<1x8x32xf32, #tpu.memory_space<vmem>>, vector<1x8x32xf32>,
    return
  }
  func.func @transform_0(%arg0: i32) -> (i32, i32, i32) {
    %c0_i32 = arith.constant 0 : i32
    %c0_i32_0 = arith.constant 0 : i32
    %c0_i32_1 = arith.constant 0 : i32
    return %arg0, %c0_i32, %c0_i32_0 : i32, i32, i32
  }
  func.func @transform_1(%arg0: i32) -> (i32, i32) {
    %c0_i32 = arith.constant 0 : i32
    %c0_i32_0 = arith.constant 0 : i32
    %c0_i32_1 = arith.constant 0 : i32
    return %c0_i32, %c0_i32_0 : i32, i32
  }
  func.func @transform_2(%arg0: i32) -> (i32, i32, i32) {
    %c0_i32 = arith.constant 0 : i32
    %c0_i32_0 = arith.constant 0 : i32
    %c0_i32_1 = arith.constant 0 : i32
    return %arg0, %c0_i32, %c0_i32_0 : i32, i32, i32
  }
}

module attributes {stable_mosaic.version = 11 : i64} {
  func.func @dense_kernel(%arg0: i32, %arg1: memref<16x32xf32, #tpu.memory_space<vmem>>, %arg2: memref<32x40xf32, #tpu.memory_space<vmem>>, %arg3: memref<1x40xf32, #tpu.memory_space<vmem>>, %arg4: memref<16x40xf32, #tpu.memory_space<vmem>>) attributes {dimension_semantics = [#tpu.dimension_semantics<arbitrary>], iteration_bounds = array<i64: 1>, scalar_prefetch = 0 : i64, scratch_operands = 0 : i64, tpu.core_type = #tpu.core_type<tc>, window_params = [{pipeline_mode = #tpu.pipeline_mode<synchronous>, transform_indices = @transform_0, window_bounds = array<i64: 16, 32>}, {pipeline_mode = #tpu.pipeline_mode<synchronous>, transform_indices = @transform_1, window_bounds = array<i64: 32, 40>}, {pipeline_mode = #tpu.pipeline_mode<synchronous>, transform_indices = @transform_2, window_bounds = array<i64: 1, 40>}, {pipeline_mode = #tpu.pipeline_mode<synchronous>, transform_indices = @transform_3, window_bounds = array<i64: 16, 40>}]} {
    %c0 = arith.constant 0 : index
    %c0_0 = arith.constant 0 : index
    %0 = vector.load %arg1[%c0, %c0_0] : memref<16x32xf32, #tpu.memory_space<vmem>>, vector<16x32xf32>
    %c0_1 = arith.constant 0 : index
    %c0_2 = arith.constant 0 : index
    %1 = vector.load %arg2[%c0_1, %c0_2] : memref<32x40xf32, #tpu.memory_space<vmem>>, vector<32x40xf32>
    %cst = arith.constant dense<0.000000e+00> : vector<16x40xf32>
    %2 = tpu.matmul %0, %1, %cst {dimension_numbers = #tpu.dot_dimension_numbers<[1], [0], [0], [1], [0, 0, 1, 1], [], []>} : vector<16x32xf32>, vector<32x40xf32>, vector<16x40xf32> -> vector<16x40xf32>
    %c0_3 = arith.constant 0 : index
    %c0_4 = arith.constant 0 : index
    %3 = vector.load %arg3[%c0_3, %c0_4] : memref<1x40xf32, #tpu.memory_space<vmem>>, vector<1x40xf32>
    %4 = vector.broadcast %3 : vector<1x40xf32> to vector<16x40xf32>
    %5 = arith.addf %2, %4 : vector<16x40xf32>
    %c0_5 = arith.constant 0 : index
    %c0_6 = arith.constant 0 : index
    %6 = vector.load %arg4[%c0_5, %c0_6] : memref<16x40xf32, #tpu.memory_space<vmem>>, vector<16x40xf32>
    tpu.vector_store %arg4[%c0_5, %c0_6], %5 {strides = array<i32>} : memref<16x40xf32, #tpu.memory_space<vmem>>, vector<16x40xf32>,
    return
  }
  func.func @transform_0(%arg0: i32) -> (i32, i32) {
    %c0_i32 = arith.constant 0 : i32
    %c0_i32_0 = arith.constant 0 : i32
    %c0_i32_1 = arith.constant 0 : i32
    return %c0_i32, %c0_i32_0 : i32, i32
  }
  func.func @transform_1(%arg0: i32) -> (i32, i32) {
    %c0_i32 = arith.constant 0 : i32
    %c0_i32_0 = arith.constant 0 : i32
    %c0_i32_1 = arith.constant 0 : i32
    return %c0_i32, %c0_i32_0 : i32, i32
  }
  func.func @transform_2(%arg0: i32) -> (i32, i32) {
    %c0_i32 = arith.constant 0 : i32
    %c0_i32_0 = arith.constant 0 : i32
    %c0_i32_1 = arith.constant 0 : i32
    return %c0_i32, %c0_i32_0 : i32, i32
  }
  func.func @transform_3(%arg0: i32) -> (i32, i32) {
    %c0_i32 = arith.constant 0 : i32
    %c0_i32_0 = arith.constant 0 : i32
    %c0_i32_1 = arith.constant 0 : i32
    return %c0_i32, %c0_i32_0 : i32, i32
  }
}

module attributes {stable_mosaic.version = 11 : i64} {
  func.func @decoder_block_kernel(%arg0: i32, %arg1: memref<2xi32, #tpu.memory_space<smem>>, %arg2: memref<1x8x32xf32, #tpu.memory_space<vmem>>, %arg3: memref<1x8x32xf32, #tpu.memory_space<vmem>>, %arg4: memref<32x96xf32, #tpu.memory_space<vmem>>, %arg5: memref<32x32xf32, #tpu.memory_space<vmem>>, %arg6: memref<1x32xf32, #tpu.memory_space<vmem>>, %arg7: memref<1x32xf32, #tpu.memory_space<vmem>>, %arg8: memref<32x32xf32, #tpu.memory_space<vmem>>, %arg9: memref<32x64xf32, #tpu.memory_space<vmem>>, %arg10: memref<32x32xf32, #tpu.memory_space<vmem>>, %arg11: memref<1x32xf32, #tpu.memory_space<vmem>>, %arg12: memref<1x32xf32, #tpu.memory_space<vmem>>, %arg13: memref<32x64xf32, #tpu.memory_space<vmem>>, %arg14: memref<1x64xf32, #tpu.memory_space<vmem>>, %arg15: memref<64x32xf32, #tpu.memory_space<vmem>>, %arg16: memref<1x32xf32, #tpu.memory_space<vmem>>, %arg17: memref<1x32xf32, #tpu.memory_space<vmem>>, %arg18: memref<1x32xf32, #tpu.memory_space<vmem>>, %arg19: memref<1x8x32xf32, #tpu.memory_space<vmem>>, %arg20: memref<1x4x8x8xf32, #tpu.memory_space<vmem>>, %arg21: memref<1x4x8x8xf32, #tpu.memory_space<vmem>>) attributes {dimension_semantics = [#tpu.dimension_semantics<parallel>], iteration_bounds = array<i64: 2>, scalar_prefetch = 1 : i64, scratch_operands = 0 : i64, tpu.core_type = #tpu.core_type<tc>, window_params = [{transform_indices = @transform_0, window_bounds = array<i64: 1, 8, 32>}, {transform_indices = @transform_1, window_bounds = array<i64: 1, 8, 32>}, {pipeline_mode = #tpu.pipeline_mode<synchronous>, transform_indices = @transform_2, window_bounds = array<i64: 32, 96>}, {pipeline_mode = #tpu.pipeline_mode<synchronous>, transform_indices = @transform_3, window_bounds = array<i64: 32, 32>}, {pipeline_mode = #tpu.pipeline_mode<synchronous>, transform_indices = @transform_4, window_bounds = array<i64: 1, 32>}, {pipeline_mode = #tpu.pipeline_mode<synchronous>, transform_indices = @transform_5, window_bounds = array<i64: 1, 32>}, {pipeline_mode = #tpu.pipeline_mode<synchronous>, transform_indices = @transform_6, window_bounds = array<i64: 32, 32>}, {pipeline_mode = #tpu.pipeline_mode<synchronous>, transform_indices = @transform_7, window_bounds = array<i64: 32, 64>}, {pipeline_mode = #tpu.pipeline_mode<synchronous>, transform_indices = @transform_8, window_bounds = array<i64: 32, 32>}, {pipeline_mode = #tpu.pipeline_mode<synchronous>, transform_indices = @transform_9, window_bounds = array<i64: 1, 32>}, {pipeline_mode = #tpu.pipeline_mode<synchronous>, transform_indices = @transform_10, window_bounds = array<i64: 1, 32>}, {pipeline_mode = #tpu.pipeline_mode<synchronous>, transform_indices = @transform_11, window_bounds = array<i64: 32, 64>}, {pipeline_mode = #tpu.pipeline_mode<synchronous>, transform_indices = @transform_12, window_bounds = array<i64: 1, 64>}, {pipeline_mode = #tpu.pipeline_mode<synchronous>, transform_indices = @transform_13, window_bounds = array<i64: 64, 32>}, {pipeline_mode = #tpu.pipeline_mode<synchronous>, transform_indices = @transform_14, window_bounds = array<i64: 1, 32>}, {pipeline_mode = #tpu.pipeline_mode<synchronous>, transform_indices = @transform_15, window_bounds = array<i64: 1, 32>}, {pipeline_mode = #tpu.pipeline_mode<synchronous>, transform_indices = @transform_16, window_bounds = array<i64: 1, 32>}, {transform_indices = @transform_17, window_bounds = array<i64: 1, 8, 32>}, {transform_indices = @transform_18, window_bounds = array<i64: 1, 4, 8, 8>}, {transform_indices = @transform_19, window_bounds = array<i64: 1, 4, 8, 8>}]} {
    %c0 = arith.constant 0 : index
    %c0_0 = arith.constant 0 : index
    %c0_1 = arith.constant 0 : index
    %0 = vector.load %arg2[%c0, %c0_0, %c0_1] : memref<1x8x32xf32, #tpu.memory_space<vmem>>, vector<1x8x32xf32>
    %1 = vector.shape_cast %0 : vector<1x8x32xf32> to vector<8x32xf32>
    %c0_2 = arith.constant 0 : index
    %c0_3 = arith.constant 0 : index
    %c0_4 = arith.constant 0 : index
    %2 = vector.load %arg3[%c0_2, %c0_3, %c0_4] : memref<1x8x32xf32, #tpu.memory_space<vmem>>, vector<1x8x32xf32>
    %3 = vector.shape_cast %2 : vector<1x8x32xf32> to vector<8x32xf32>
    %c0_5 = arith.constant 0 : index
    %c0_6 = arith.constant 0 : index
    %4 = vector.load %arg4[%c0_5, %c0_6] : memref<32x96xf32, #tpu.memory_space<vmem>>, vector<32x96xf32>
    %cst = arith.constant dense<0.000000e+00> : vector<8x96xf32>
    %5 = tpu.matmul %1, %4, %cst {dimension_numbers = #tpu.dot_dimension_numbers<[1], [0], [0], [1], [0, 0, 1, 1], [], []>} : vector<8x32xf32>, vector<32x96xf32>, vector<8x96xf32> -> vector<8x96xf32>
    %6 = vector.extract_strided_slice %5 {offsets = [0, 0], sizes = [8, 32], strides = [1, 1]} : vector<8x96xf32> to vector<8x32xf32>
    %7 = vector.extract_strided_slice %5 {offsets = [0, 32], sizes = [8, 32], strides = [1, 1]} : vector<8x96xf32> to vector<8x32xf32>
    %8 = vector.extract_strided_slice %5 {offsets = [0, 64], sizes = [8, 32], strides = [1, 1]} : vector<8x96xf32> to vector<8x32xf32>
    %9 = tpu.iota {dimensions = array<i32: 0>} : vector<8x1xi32>
    %c1_i32 = arith.constant 1 : i32
    %10 = vector.broadcast %c1_i32 : i32 to vector<8x1xi32>
    %11 = arith.addi %9, %10 : vector<8x1xi32>
    %12 = vector.extract_strided_slice %6 {offsets = [0, 0], sizes = [8, 8], strides = [1, 1]} : vector<8x32xf32> to vector<8x8xf32>
    %13 = vector.extract_strided_slice %7 {offsets = [0, 0], sizes = [8, 8], strides = [1, 1]} : vector<8x32xf32> to vector<8x8xf32>
    %14 = vector.extract_strided_slice %8 {offsets = [0, 0], sizes = [8, 8], strides = [1, 1]} : vector<8x32xf32> to vector<8x8xf32>
    %cst_7 = arith.constant dense<0.000000e+00> : vector<8x8xf32>
    %15 = tpu.matmul %12, %13, %cst_7 {dimension_numbers = #tpu.dot_dimension_numbers<[1], [1], [0], [0], [0, 0, 1, 0], [], []>} : vector<8x8xf32>, vector<8x8xf32>, vector<8x8xf32> -> vector<8x8xf32>
    %cst_8 = arith.constant 0.353553385 : f32
    %16 = vector.broadcast %cst_8 : f32 to vector<8x8xf32>
    %17 = arith.mulf %15, %16 : vector<8x8xf32>
    %18 = tpu.iota {dimensions = array<i32: 1>} : vector<8x8xi32>
    %19 = vector.broadcast %11 : vector<8x1xi32> to vector<8x8xi32>
    %20 = arith.cmpi slt, %18, %19 : vector<8x8xi32>
    %cst_9 = arith.constant -1.000000e+06 : f32
    %21 = vector.broadcast %cst_9 : f32 to vector<8x8xf32>
    %22 = arith.select %20, %17, %21 : vector<8x8xi1>, vector<8x8xf32>
    %cst_10 = arith.constant dense<0xFF800000> : vector<8xf32>
    %23 = vector.multi_reduction <maximumf>, %22, %cst_10 [1] : vector<8x8xf32> to vector<8xf32>
    %24 = vector.shape_cast %23 : vector<8xf32> to vector<8x1xf32>
    %25 = vector.broadcast %24 : vector<8x1xf32> to vector<8x8xf32>
    %26 = arith.subf %22, %25 : vector<8x8xf32>
    %27 = math.exp %26 : vector<8x8xf32>
    %cst_11 = arith.constant dense<0.000000e+00> : vector<8xf32>
    %28 = vector.multi_reduction <add>, %27, %cst_11 [1] : vector<8x8xf32> to vector<8xf32>
    %29 = vector.shape_cast %28 : vector<8xf32> to vector<8x1xf32>
    %30 = tpu.reciprocal %29 {approx = true} : vector<8x1xf32> -> vector<8x1xf32>
    %31 = vector.broadcast %30 : vector<8x1xf32> to vector<8x8xf32>
    %32 = arith.mulf %27, %31 : vector<8x8xf32>
    %c0_12 = arith.constant 0 : index
    %c0_13 = arith.constant 0 : index
    %c0_14 = arith.constant 0 : index
    %c0_15 = arith.constant 0 : index
    %33 = vector.load %arg20[%c0_12, %c0_13, %c0_14, %c0_15] : memref<1x4x8x8xf32, #tpu.memory_space<vmem>>, vector<1x1x8x8xf32>
    %34 = vector.shape_cast %33 : vector<1x1x8x8xf32> to vector<8x8xf32>
    %35 = vector.shape_cast %32 : vector<8x8xf32> to vector<1x1x8x8xf32>
    tpu.vector_store %arg20[%c0_12, %c0_13, %c0_14, %c0_15], %35 {strides = array<i32>} : memref<1x4x8x8xf32, #tpu.memory_space<vmem>>, vector<1x1x8x8xf32>,
    %cst_16 = arith.constant dense<0.000000e+00> : vector<8x8xf32>
    %36 = tpu.matmul %32, %14, %cst_16 {dimension_numbers = #tpu.dot_dimension_numbers<[1], [0], [0], [1], [0, 0, 1, 1], [], []>} : vector<8x8xf32>, vector<8x8xf32>, vector<8x8xf32> -> vector<8x8xf32>
    %37 = vector.extract_strided_slice %6 {offsets = [0, 8], sizes = [8, 8], strides = [1, 1]} : vector<8x32xf32> to vector<8x8xf32>
    %38 = vector.extract_strided_slice %7 {offsets = [0, 8], sizes = [8, 8], strides = [1, 1]} : vector<8x32xf32> to vector<8x8xf32>
    %39 = vector.extract_strided_slice %8 {offsets = [0, 8], sizes = [8, 8], strides = [1, 1]} : vector<8x32xf32> to vector<8x8xf32>
    %cst_17 = arith.constant dense<0.000000e+00> : vector<8x8xf32>
    %40 = tpu.matmul %37, %38, %cst_17 {dimension_numbers = #tpu.dot_dimension_numbers<[1], [1], [0], [0], [0, 0, 1, 0], [], []>} : vector<8x8xf32>, vector<8x8xf32>, vector<8x8xf32> -> vector<8x8xf32>
    %cst_18 = arith.constant 0.353553385 : f32
    %41 = vector.broadcast %cst_18 : f32 to vector<8x8xf32>
    %42 = arith.mulf %40, %41 : vector<8x8xf32>
    %43 = tpu.iota {dimensions = array<i32: 1>} : vector<8x8xi32>
    %44 = vector.broadcast %11 : vector<8x1xi32> to vector<8x8xi32>
    %45 = arith.cmpi slt, %43, %44 : vector<8x8xi32>
    %cst_19 = arith.constant -1.000000e+06 : f32
    %46 = vector.broadcast %cst_19 : f32 to vector<8x8xf32>
    %47 = arith.select %45, %42, %46 : vector<8x8xi1>, vector<8x8xf32>
    %cst_20 = arith.constant dense<0xFF800000> : vector<8xf32>
    %48 = vector.multi_reduction <maximumf>, %47, %cst_20 [1] : vector<8x8xf32> to vector<8xf32>
    %49 = vector.shape_cast %48 : vector<8xf32> to vector<8x1xf32>
    %50 = vector.broadcast %49 : vector<8x1xf32> to vector<8x8xf32>
    %51 = arith.subf %47, %50 : vector<8x8xf32>
    %52 = math.exp %51 : vector<8x8xf32>
    %cst_21 = arith.constant dense<0.000000e+00> : vector<8xf32>
    %53 = vector.multi_reduction <add>, %52, %cst_21 [1] : vector<8x8xf32> to vector<8xf32>
    %54 = vector.shape_cast %53 : vector<8xf32> to vector<8x1xf32>
    %55 = tpu.reciprocal %54 {approx = true} : vector<8x1xf32> -> vector<8x1xf32>
    %56 = vector.broadcast %55 : vector<8x1xf32> to vector<8x8xf32>
    %57 = arith.mulf %52, %56 : vector<8x8xf32>
    %c0_22 = arith.constant 0 : index
    %c1 = arith.constant 1 : index
    %c0_23 = arith.constant 0 : index
    %c0_24 = arith.constant 0 : index
    %58 = vector.load %arg20[%c0_22, %c1, %c0_23, %c0_24] : memref<1x4x8x8xf32, #tpu.memory_space<vmem>>, vector<1x1x8x8xf32>
    %59 = vector.shape_cast %58 : vector<1x1x8x8xf32> to vector<8x8xf32>
    %60 = vector.shape_cast %57 : vector<8x8xf32> to vector<1x1x8x8xf32>
    tpu.vector_store %arg20[%c0_22, %c1, %c0_23, %c0_24], %60 {strides = array<i32>} : memref<1x4x8x8xf32, #tpu.memory_space<vmem>>, vector<1x1x8x8xf32>,
    %cst_25 = arith.constant dense<0.000000e+00> : vector<8x8xf32>
    %61 = tpu.matmul %57, %39, %cst_25 {dimension_numbers = #tpu.dot_dimension_numbers<[1], [0], [0], [1], [0, 0, 1, 1], [], []>} : vector<8x8xf32>, vector<8x8xf32>, vector<8x8xf32> -> vector<8x8xf32>
    %62 = vector.extract_strided_slice %6 {offsets = [0, 16], sizes = [8, 8], strides = [1, 1]} : vector<8x32xf32> to vector<8x8xf32>
    %63 = vector.extract_strided_slice %7 {offsets = [0, 16], sizes = [8, 8], strides = [1, 1]} : vector<8x32xf32> to vector<8x8xf32>
    %64 = vector.extract_strided_slice %8 {offsets = [0, 16], sizes = [8, 8], strides = [1, 1]} : vector<8x32xf32> to vector<8x8xf32>
    %cst_26 = arith.constant dense<0.000000e+00> : vector<8x8xf32>
    %65 = tpu.matmul %62, %63, %cst_26 {dimension_numbers = #tpu.dot_dimension_numbers<[1], [1], [0], [0], [0, 0, 1, 0], [], []>} : vector<8x8xf32>, vector<8x8xf32>, vector<8x8xf32> -> vector<8x8xf32>
    %cst_27 = arith.constant 0.353553385 : f32
    %66 = vector.broadcast %cst_27 : f32 to vector<8x8xf32>
    %67 = arith.mulf %65, %66 : vector<8x8xf32>
    %68 = tpu.iota {dimensions = array<i32: 1>} : vector<8x8xi32>
    %69 = vector.broadcast %11 : vector<8x1xi32> to vector<8x8xi32>
    %70 = arith.cmpi slt, %68, %69 : vector<8x8xi32>
    %cst_28 = arith.constant -1.000000e+06 : f32
    %71 = vector.broadcast %cst_28 : f32 to vector<8x8xf32>
    %72 = arith.select %70, %67, %71 : vector<8x8xi1>, vector<8x8xf32>
    %cst_29 = arith.constant dense<0xFF800000> : vector<8xf32>
    %73 = vector.multi_reduction <maximumf>, %72, %cst_29 [1] : vector<8x8xf32> to vector<8xf32>
    %74 = vector.shape_cast %73 : vector<8xf32> to vector<8x1xf32>
    %75 = vector.broadcast %74 : vector<8x1xf32> to vector<8x8xf32>
    %76 = arith.subf %72, %75 : vector<8x8xf32>
    %77 = math.exp %76 : vector<8x8xf32>
    %cst_30 = arith.constant dense<0.000000e+00> : vector<8xf32>
    %78 = vector.multi_reduction <add>, %77, %cst_30 [1] : vector<8x8xf32> to vector<8xf32>
    %79 = vector.shape_cast %78 : vector<8xf32> to vector<8x1xf32>
    %80 = tpu.reciprocal %79 {approx = true} : vector<8x1xf32> -> vector<8x1xf32>
    %81 = vector.broadcast %80 : vector<8x1xf32> to vector<8x8xf32>
    %82 = arith.mulf %77, %81 : vector<8x8xf32>
    %c0_31 = arith.constant 0 : index
    %c2 = arith.constant 2 : index
    %c0_32 = arith.constant 0 : index
    %c0_33 = arith.constant 0 : index
    %83 = vector.load %arg20[%c0_31, %c2, %c0_32, %c0_33] : memref<1x4x8x8xf32, #tpu.memory_space<vmem>>, vector<1x1x8x8xf32>
    %84 = vector.shape_cast %83 : vector<1x1x8x8xf32> to vector<8x8xf32>
    %85 = vector.shape_cast %82 : vector<8x8xf32> to vector<1x1x8x8xf32>
    tpu.vector_store %arg20[%c0_31, %c2, %c0_32, %c0_33], %85 {strides = array<i32>} : memref<1x4x8x8xf32, #tpu.memory_space<vmem>>, vector<1x1x8x8xf32>,
    %cst_34 = arith.constant dense<0.000000e+00> : vector<8x8xf32>
    %86 = tpu.matmul %82, %64, %cst_34 {dimension_numbers = #tpu.dot_dimension_numbers<[1], [0], [0], [1], [0, 0, 1, 1], [], []>} : vector<8x8xf32>, vector<8x8xf32>, vector<8x8xf32> -> vector<8x8xf32>
    %87 = vector.extract_strided_slice %6 {offsets = [0, 24], sizes = [8, 8], strides = [1, 1]} : vector<8x32xf32> to vector<8x8xf32>
    %88 = vector.extract_strided_slice %7 {offsets = [0, 24], sizes = [8, 8], strides = [1, 1]} : vector<8x32xf32> to vector<8x8xf32>
    %89 = vector.extract_strided_slice %8 {offsets = [0, 24], sizes = [8, 8], strides = [1, 1]} : vector<8x32xf32> to vector<8x8xf32>
    %cst_35 = arith.constant dense<0.000000e+00> : vector<8x8xf32>
    %90 = tpu.matmul %87, %88, %cst_35 {dimension_numbers = #tpu.dot_dimension_numbers<[1], [1], [0], [0], [0, 0, 1, 0], [], []>} : vector<8x8xf32>, vector<8x8xf32>, vector<8x8xf32> -> vector<8x8xf32>
    %cst_36 = arith.constant 0.353553385 : f32
    %91 = vector.broadcast %cst_36 : f32 to vector<8x8xf32>
    %92 = arith.mulf %90, %91 : vector<8x8xf32>
    %93 = tpu.iota {dimensions = array<i32: 1>} : vector<8x8xi32>
    %94 = vector.broadcast %11 : vector<8x1xi32> to vector<8x8xi32>
    %95 = arith.cmpi slt, %93, %94 : vector<8x8xi32>
    %cst_37 = arith.constant -1.000000e+06 : f32
    %96 = vector.broadcast %cst_37 : f32 to vector<8x8xf32>
    %97 = arith.select %95, %92, %96 : vector<8x8xi1>, vector<8x8xf32>
    %cst_38 = arith.constant dense<0xFF800000> : vector<8xf32>
    %98 = vector.multi_reduction <maximumf>, %97, %cst_38 [1] : vector<8x8xf32> to vector<8xf32>
    %99 = vector.shape_cast %98 : vector<8xf32> to vector<8x1xf32>
    %100 = vector.broadcast %99 : vector<8x1xf32> to vector<8x8xf32>
    %101 = arith.subf %97, %100 : vector<8x8xf32>
    %102 = math.exp %101 : vector<8x8xf32>
    %cst_39 = arith.constant dense<0.000000e+00> : vector<8xf32>
    %103 = vector.multi_reduction <add>, %102, %cst_39 [1] : vector<8x8xf32> to vector<8xf32>
    %104 = vector.shape_cast %103 : vector<8xf32> to vector<8x1xf32>
    %105 = tpu.reciprocal %104 {approx = true} : vector<8x1xf32> -> vector<8x1xf32>
    %106 = vector.broadcast %105 : vector<8x1xf32> to vector<8x8xf32>
    %107 = arith.mulf %102, %106 : vector<8x8xf32>
    %c0_40 = arith.constant 0 : index
    %c3 = arith.constant 3 : index
    %c0_41 = arith.constant 0 : index
    %c0_42 = arith.constant 0 : index
    %108 = vector.load %arg20[%c0_40, %c3, %c0_41, %c0_42] : memref<1x4x8x8xf32, #tpu.memory_space<vmem>>, vector<1x1x8x8xf32>
    %109 = vector.shape_cast %108 : vector<1x1x8x8xf32> to vector<8x8xf32>
    %110 = vector.shape_cast %107 : vector<8x8xf32> to vector<1x1x8x8xf32>
    tpu.vector_store %arg20[%c0_40, %c3, %c0_41, %c0_42], %110 {strides = array<i32>} : memref<1x4x8x8xf32, #tpu.memory_space<vmem>>, vector<1x1x8x8xf32>,
    %cst_43 = arith.constant dense<0.000000e+00> : vector<8x8xf32>
    %111 = tpu.matmul %107, %89, %cst_43 {dimension_numbers = #tpu.dot_dimension_numbers<[1], [0], [0], [1], [0, 0, 1, 1], [], []>} : vector<8x8xf32>, vector<8x8xf32>, vector<8x8xf32> -> vector<8x8xf32>
    %112 = tpu.concatenate %36, %61, %86, %111 in 1 : vector<8x8xf32>, vector<8x8xf32>, vector<8x8xf32>, vector<8x8xf32> -> vector<8x32xf32>
    %c0_44 = arith.constant 0 : index
    %c0_45 = arith.constant 0 : index
    %113 = vector.load %arg5[%c0_44, %c0_45] : memref<32x32xf32, #tpu.memory_space<vmem>>, vector<32x32xf32>
    %cst_46 = arith.constant dense<0.000000e+00> : vector<8x32xf32>
    %114 = tpu.matmul %112, %113, %cst_46 {dimension_numbers = #tpu.dot_dimension_numbers<[1], [0], [0], [1], [0, 0, 1, 1], [], []>} : vector<8x32xf32>, vector<32x32xf32>, vector<8x32xf32> -> vector<8x32xf32>
    %115 = arith.addf %1, %114 : vector<8x32xf32>
    %c0_47 = arith.constant 0 : index
    %c0_48 = arith.constant 0 : index
    %116 = vector.load %arg6[%c0_47, %c0_48] : memref<1x32xf32, #tpu.memory_space<vmem>>, vector<1x32xf32>
    %c0_49 = arith.constant 0 : index
    %c0_50 = arith.constant 0 : index
    %117 = vector.load %arg7[%c0_49, %c0_50] : memref<1x32xf32, #tpu.memory_space<vmem>>, vector<1x32xf32>
    %cst_51 = arith.constant dense<0.000000e+00> : vector<8xf32>
    %118 = vector.multi_reduction <add>, %115, %cst_51 [1] : vector<8x32xf32> to vector<8xf32>
    %119 = vector.shape_cast %118 : vector<8xf32> to vector<8x1xf32>
    %cst_52 = arith.constant 3.200000e+01 : f32
    %120 = vector.broadcast %cst_52 : f32 to vector<8x1xf32>
    %121 = arith.divf %119, %120 : vector<8x1xf32>
    %122 = vector.broadcast %121 : vector<8x1xf32> to vector<8x32xf32>
    %123 = arith.subf %115, %122 : vector<8x32xf32>
    %124 = arith.mulf %123, %123 : vector<8x32xf32>
    %cst_53 = arith.constant dense<0.000000e+00> : vector<8xf32>
    %125 = vector.multi_reduction <add>, %124, %cst_53 [1] : vector<8x32xf32> to vector<8xf32>
    %126 = vector.shape_cast %125 : vector<8xf32> to vector<8x1xf32>
    %cst_54 = arith.constant 3.200000e+01 : f32
    %127 = vector.broadcast %cst_54 : f32 to vector<8x1xf32>
    %128 = arith.divf %126, %127 : vector<8x1xf32>
    %129 = vector.broadcast %121 : vector<8x1xf32> to vector<8x32xf32>
    %130 = arith.subf %115, %129 : vector<8x32xf32>
    %cst_55 = arith.constant 9.99999974E-6 : f32
    %131 = vector.broadcast %cst_55 : f32 to vector<8x1xf32>
    %132 = arith.addf %128, %131 : vector<8x1xf32>
    %133 = math.rsqrt %132 : vector<8x1xf32>
    %134 = vector.broadcast %133 : vector<8x1xf32> to vector<8x32xf32>
    %135 = arith.mulf %130, %134 : vector<8x32xf32>
    %136 = vector.broadcast %116 : vector<1x32xf32> to vector<8x32xf32>
    %137 = arith.mulf %135, %136 : vector<8x32xf32>
    %138 = vector.broadcast %117 : vector<1x32xf32> to vector<8x32xf32>
    %139 = arith.addf %137, %138 : vector<8x32xf32>
    %c0_56 = arith.constant 0 : index
    %c0_57 = arith.constant 0 : index
    %140 = vector.load %arg8[%c0_56, %c0_57] : memref<32x32xf32, #tpu.memory_space<vmem>>, vector<32x32xf32>
    %cst_58 = arith.constant dense<0.000000e+00> : vector<8x32xf32>
    %141 = tpu.matmul %139, %140, %cst_58 {dimension_numbers = #tpu.dot_dimension_numbers<[1], [0], [0], [1], [0, 0, 1, 1], [], []>} : vector<8x32xf32>, vector<32x32xf32>, vector<8x32xf32> -> vector<8x32xf32>
    %c0_59 = arith.constant 0 : index
    %c0_60 = arith.constant 0 : index
    %142 = vector.load %arg9[%c0_59, %c0_60] : memref<32x64xf32, #tpu.memory_space<vmem>>, vector<32x64xf32>
    %cst_61 = arith.constant dense<0.000000e+00> : vector<8x64xf32>
    %143 = tpu.matmul %3, %142, %cst_61 {dimension_numbers = #tpu.dot_dimension_numbers<[1], [0], [0], [1], [0, 0, 1, 1], [], []>} : vector<8x32xf32>, vector<32x64xf32>, vector<8x64xf32> -> vector<8x64xf32>
    %144 = vector.extract_strided_slice %143 {offsets = [0, 0], sizes = [8, 32], strides = [1, 1]} : vector<8x64xf32> to vector<8x32xf32>
    %145 = vector.extract_strided_slice %143 {offsets = [0, 32], sizes = [8, 32], strides = [1, 1]} : vector<8x64xf32> to vector<8x32xf32>
    %146 = arith.index_cast %arg0 : i32 to index
    %147 = memref.load %arg1[%146] : memref<2xi32, #tpu.memory_space<smem>>
    %148 = vector.extract_strided_slice %141 {offsets = [0, 0], sizes = [8, 8], strides = [1, 1]} : vector<8x32xf32> to vector<8x8xf32>
    %149 = vector.extract_strided_slice %144 {offsets = [0, 0], sizes = [8, 8], strides = [1, 1]} : vector<8x32xf32> to vector<8x8xf32>
    %150 = vector.extract_strided_slice %145 {offsets = [0, 0], sizes = [8, 8], strides = [1, 1]} : vector<8x32xf32> to vector<8x8xf32>
    %cst_62 = arith.constant dense<0.000000e+00> : vector<8x8xf32>
    %151 = tpu.matmul %148, %149, %cst_62 {dimension_numbers = #tpu.dot_dimension_numbers<[1], [1], [0], [0], [0, 0, 1, 0], [], []>} : vector<8x8xf32>, vector<8x8xf32>, vector<8x8xf32> -> vector<8x8xf32>
    %cst_63 = arith.constant 0.353553385 : f32
    %152 = vector.broadcast %cst_63 : f32 to vector<8x8xf32>
    %153 = arith.mulf %151, %152 : vector<8x8xf32>
    %154 = tpu.iota {dimensions = array<i32: 1>} : vector<8x8xi32>
    %155 = vector.broadcast %147 : i32 to vector<8x8xi32>
    %156 = arith.cmpi slt, %154, %155 : vector<8x8xi32>
    %cst_64 = arith.constant -1.000000e+06 : f32
    %157 = vector.broadcast %cst_64 : f32 to vector<8x8xf32>
    %158 = arith.select %156, %153, %157 : vector<8x8xi1>, vector<8x8xf32>
    %cst_65 = arith.constant dense<0xFF800000> : vector<8xf32>
    %159 = vector.multi_reduction <maximumf>, %158, %cst_65 [1] : vector<8x8xf32> to vector<8xf32>
    %160 = vector.shape_cast %159 : vector<8xf32> to vector<8x1xf32>
    %161 = vector.broadcast %160 : vector<8x1xf32> to vector<8x8xf32>
    %162 = arith.subf %158, %161 : vector<8x8xf32>
    %163 = math.exp %162 : vector<8x8xf32>
    %cst_66 = arith.constant dense<0.000000e+00> : vector<8xf32>
    %164 = vector.multi_reduction <add>, %163, %cst_66 [1] : vector<8x8xf32> to vector<8xf32>
    %165 = vector.shape_cast %164 : vector<8xf32> to vector<8x1xf32>
    %166 = tpu.reciprocal %165 {approx = true} : vector<8x1xf32> -> vector<8x1xf32>
    %167 = vector.broadcast %166 : vector<8x1xf32> to vector<8x8xf32>
    %168 = arith.mulf %163, %167 : vector<8x8xf32>
    %c0_67 = arith.constant 0 : index
    %c0_68 = arith.constant 0 : index
    %c0_69 = arith.constant 0 : index
    %c0_70 = arith.constant 0 : index
    %169 = vector.load %arg21[%c0_67, %c0_68, %c0_69, %c0_70] : memref<1x4x8x8xf32, #tpu.memory_space<vmem>>, vector<1x1x8x8xf32>
    %170 = vector.shape_cast %169 : vector<1x1x8x8xf32> to vector<8x8xf32>
    %171 = vector.shape_cast %168 : vector<8x8xf32> to vector<1x1x8x8xf32>
    tpu.vector_store %arg21[%c0_67, %c0_68, %c0_69, %c0_70], %171 {strides = array<i32>} : memref<1x4x8x8xf32, #tpu.memory_space<vmem>>, vector<1x1x8x8xf32>,
    %cst_71 = arith.constant dense<0.000000e+00> : vector<8x8xf32>
    %172 = tpu.matmul %168, %150, %cst_71 {dimension_numbers = #tpu.dot_dimension_numbers<[1], [0], [0], [1], [0, 0, 1, 1], [], []>} : vector<8x8xf32>, vector<8x8xf32>, vector<8x8xf32> -> vector<8x8xf32>
    %173 = vector.extract_strided_slice %141 {offsets = [0, 8], sizes = [8, 8], strides = [1, 1]} : vector<8x32xf32> to vector<8x8xf32>
    %174 = vector.extract_strided_slice %144 {offsets = [0, 8], sizes = [8, 8], strides = [1, 1]} : vector<8x32xf32> to vector<8x8xf32>
    %175 = vector.extract_strided_slice %145 {offsets = [0, 8], sizes = [8, 8], strides = [1, 1]} : vector<8x32xf32> to vector<8x8xf32>
    %cst_72 = arith.constant dense<0.000000e+00> : vector<8x8xf32>
    %176 = tpu.matmul %173, %174, %cst_72 {dimension_numbers = #tpu.dot_dimension_numbers<[1], [1], [0], [0], [0, 0, 1, 0], [], []>} : vector<8x8xf32>, vector<8x8xf32>, vector<8x8xf32> -> vector<8x8xf32>
    %cst_73 = arith.constant 0.353553385 : f32
    %177 = vector.broadcast %cst_73 : f32 to vector<8x8xf32>
    %178 = arith.mulf %176, %177 : vector<8x8xf32>
    %179 = tpu.iota {dimensions = array<i32: 1>} : vector<8x8xi32>
    %180 = vector.broadcast %147 : i32 to vector<8x8xi32>
    %181 = arith.cmpi slt, %179, %180 : vector<8x8xi32>
    %cst_74 = arith.constant -1.000000e+06 : f32
    %182 = vector.broadcast %cst_74 : f32 to vector<8x8xf32>
    %183 = arith.select %181, %178, %182 : vector<8x8xi1>, vector<8x8xf32>
    %cst_75 = arith.constant dense<0xFF800000> : vector<8xf32>
    %184 = vector.multi_reduction <maximumf>, %183, %cst_75 [1] : vector<8x8xf32> to vector<8xf32>
    %185 = vector.shape_cast %184 : vector<8xf32> to vector<8x1xf32>
    %186 = vector.broadcast %185 : vector<8x1xf32> to vector<8x8xf32>
    %187 = arith.subf %183, %186 : vector<8x8xf32>
    %188 = math.exp %187 : vector<8x8xf32>
    %cst_76 = arith.constant dense<0.000000e+00> : vector<8xf32>
    %189 = vector.multi_reduction <add>, %188, %cst_76 [1] : vector<8x8xf32> to vector<8xf32>
    %190 = vector.shape_cast %189 : vector<8xf32> to vector<8x1xf32>
    %191 = tpu.reciprocal %190 {approx = true} : vector<8x1xf32> -> vector<8x1xf32>
    %192 = vector.broadcast %191 : vector<8x1xf32> to vector<8x8xf32>
    %193 = arith.mulf %188, %192 : vector<8x8xf32>
    %c0_77 = arith.constant 0 : index
    %c1_78 = arith.constant 1 : index
    %c0_79 = arith.constant 0 : index
    %c0_80 = arith.constant 0 : index
    %194 = vector.load %arg21[%c0_77, %c1_78, %c0_79, %c0_80] : memref<1x4x8x8xf32, #tpu.memory_space<vmem>>, vector<1x1x8x8xf32>
    %195 = vector.shape_cast %194 : vector<1x1x8x8xf32> to vector<8x8xf32>
    %196 = vector.shape_cast %193 : vector<8x8xf32> to vector<1x1x8x8xf32>
    tpu.vector_store %arg21[%c0_77, %c1_78, %c0_79, %c0_80], %196 {strides = array<i32>} : memref<1x4x8x8xf32, #tpu.memory_space<vmem>>, vector<1x1x8x8xf32>,
    %cst_81 = arith.constant dense<0.000000e+00> : vector<8x8xf32>
    %197 = tpu.matmul %193, %175, %cst_81 {dimension_numbers = #tpu.dot_dimension_numbers<[1], [0], [0], [1], [0, 0, 1, 1], [], []>} : vector<8x8xf32>, vector<8x8xf32>, vector<8x8xf32> -> vector<8x8xf32>
    %198 = vector.extract_strided_slice %141 {offsets = [0, 16], sizes = [8, 8], strides = [1, 1]} : vector<8x32xf32> to vector<8x8xf32>
    %199 = vector.extract_strided_slice %144 {offsets = [0, 16], sizes = [8, 8], strides = [1, 1]} : vector<8x32xf32> to vector<8x8xf32>
    %200 = vector.extract_strided_slice %145 {offsets = [0, 16], sizes = [8, 8], strides = [1, 1]} : vector<8x32xf32> to vector<8x8xf32>
    %cst_82 = arith.constant dense<0.000000e+00> : vector<8x8xf32>
    %201 = tpu.matmul %198, %199, %cst_82 {dimension_numbers = #tpu.dot_dimension_numbers<[1], [1], [0], [0], [0, 0, 1, 0], [], []>} : vector<8x8xf32>, vector<8x8xf32>, vector<8x8xf32> -> vector<8x8xf32>
    %cst_83 = arith.constant 0.353553385 : f32
    %202 = vector.broadcast %cst_83 : f32 to vector<8x8xf32>
    %203 = arith.mulf %201, %202 : vector<8x8xf32>
    %204 = tpu.iota {dimensions = array<i32: 1>} : vector<8x8xi32>
    %205 = vector.broadcast %147 : i32 to vector<8x8xi32>
    %206 = arith.cmpi slt, %204, %205 : vector<8x8xi32>
    %cst_84 = arith.constant -1.000000e+06 : f32
    %207 = vector.broadcast %cst_84 : f32 to vector<8x8xf32>
    %208 = arith.select %206, %203, %207 : vector<8x8xi1>, vector<8x8xf32>
    %cst_85 = arith.constant dense<0xFF800000> : vector<8xf32>
    %209 = vector.multi_reduction <maximumf>, %208, %cst_85 [1] : vector<8x8xf32> to vector<8xf32>
    %210 = vector.shape_cast %209 : vector<8xf32> to vector<8x1xf32>
    %211 = vector.broadcast %210 : vector<8x1xf32> to vector<8x8xf32>
    %212 = arith.subf %208, %211 : vector<8x8xf32>
    %213 = math.exp %212 : vector<8x8xf32>
    %cst_86 = arith.constant dense<0.000000e+00> : vector<8xf32>
    %214 = vector.multi_reduction <add>, %213, %cst_86 [1] : vector<8x8xf32> to vector<8xf32>
    %215 = vector.shape_cast %214 : vector<8xf32> to vector<8x1xf32>
    %216 = tpu.reciprocal %215 {approx = true} : vector<8x1xf32> -> vector<8x1xf32>
    %217 = vector.broadcast %216 : vector<8x1xf32> to vector<8x8xf32>
    %218 = arith.mulf %213, %217 : vector<8x8xf32>
    %c0_87 = arith.constant 0 : index
    %c2_88 = arith.constant 2 : index
    %c0_89 = arith.constant 0 : index
    %c0_90 = arith.constant 0 : index
    %219 = vector.load %arg21[%c0_87, %c2_88, %c0_89, %c0_90] : memref<1x4x8x8xf32, #tpu.memory_space<vmem>>, vector<1x1x8x8xf32>
    %220 = vector.shape_cast %219 : vector<1x1x8x8xf32> to vector<8x8xf32>
    %221 = vector.shape_cast %218 : vector<8x8xf32> to vector<1x1x8x8xf32>
    tpu.vector_store %arg21[%c0_87, %c2_88, %c0_89, %c0_90], %221 {strides = array<i32>} : memref<1x4x8x8xf32, #tpu.memory_space<vmem>>, vector<1x1x8x8xf32>,
    %cst_91 = arith.constant dense<0.000000e+00> : vector<8x8xf32>
    %222 = tpu.matmul %218, %200, %cst_91 {dimension_numbers = #tpu.dot_dimension_numbers<[1], [0], [0], [1], [0, 0, 1, 1], [], []>} : vector<8x8xf32>, vector<8x8xf32>, vector<8x8xf32> -> vector<8x8xf32>
    %223 = vector.extract_strided_slice %141 {offsets = [0, 24], sizes = [8, 8], strides = [1, 1]} : vector<8x32xf32> to vector<8x8xf32>
    %224 = vector.extract_strided_slice %144 {offsets = [0, 24], sizes = [8, 8], strides = [1, 1]} : vector<8x32xf32> to vector<8x8xf32>
    %225 = vector.extract_strided_slice %145 {offsets = [0, 24], sizes = [8, 8], strides = [1, 1]} : vector<8x32xf32> to vector<8x8xf32>
    %cst_92 = arith.constant dense<0.000000e+00> : vector<8x8xf32>
    %226 = tpu.matmul %223, %224, %cst_92 {dimension_numbers = #tpu.dot_dimension_numbers<[1], [1], [0], [0], [0, 0, 1, 0], [], []>} : vector<8x8xf32>, vector<8x8xf32>, vector<8x8xf32> -> vector<8x8xf32>
    %cst_93 = arith.constant 0.353553385 : f32
    %227 = vector.broadcast %cst_93 : f32 to vector<8x8xf32>
    %228 = arith.mulf %226, %227 : vector<8x8xf32>
    %229 = tpu.iota {dimensions = array<i32: 1>} : vector<8x8xi32>
    %230 = vector.broadcast %147 : i32 to vector<8x8xi32>
    %231 = arith.cmpi slt, %229, %230 : vector<8x8xi32>
    %cst_94 = arith.constant -1.000000e+06 : f32
    %232 = vector.broadcast %cst_94 : f32 to vector<8x8xf32>
    %233 = arith.select %231, %228, %232 : vector<8x8xi1>, vector<8x8xf32>
    %cst_95 = arith.constant dense<0xFF800000> : vector<8xf32>
    %234 = vector.multi_reduction <maximumf>, %233, %cst_95 [1] : vector<8x8xf32> to vector<8xf32>
    %235 = vector.shape_cast %234 : vector<8xf32> to vector<8x1xf32>
    %236 = vector.broadcast %235 : vector<8x1xf32> to vector<8x8xf32>
    %237 = arith.subf %233, %236 : vector<8x8xf32>
    %238 = math.exp %237 : vector<8x8xf32>
    %cst_96 = arith.constant dense<0.000000e+00> : vector<8xf32>
    %239 = vector.multi_reduction <add>, %238, %cst_96 [1] : vector<8x8xf32> to vector<8xf32>
    %240 = vector.shape_cast %239 : vector<8xf32> to vector<8x1xf32>
    %241 = tpu.reciprocal %240 {approx = true} : vector<8x1xf32> -> vector<8x1xf32>
    %242 = vector.broadcast %241 : vector<8x1xf32> to vector<8x8xf32>
    %243 = arith.mulf %238, %242 : vector<8x8xf32>
    %c0_97 = arith.constant 0 : index
    %c3_98 = arith.constant 3 : index
    %c0_99 = arith.constant 0 : index
    %c0_100 = arith.constant 0 : index
    %244 = vector.load %arg21[%c0_97, %c3_98, %c0_99, %c0_100] : memref<1x4x8x8xf32, #tpu.memory_space<vmem>>, vector<1x1x8x8xf32>
    %245 = vector.shape_cast %244 : vector<1x1x8x8xf32> to vector<8x8xf32>
    %246 = vector.shape_cast %243 : vector<8x8xf32> to vector<1x1x8x8xf32>
    tpu.vector_store %arg21[%c0_97, %c3_98, %c0_99, %c0_100], %246 {strides = array<i32>} : memref<1x4x8x8xf32, #tpu.memory_space<vmem>>, vector<1x1x8x8xf32>,
    %cst_101 = arith.constant dense<0.000000e+00> : vector<8x8xf32>
    %247 = tpu.matmul %243, %225, %cst_101 {dimension_numbers = #tpu.dot_dimension_numbers<[1], [0], [0], [1], [0, 0, 1, 1], [], []>} : vector<8x8xf32>, vector<8x8xf32>, vector<8x8xf32> -> vector<8x8xf32>
    %248 = tpu.concatenate %172, %197, %222, %247 in 1 : vector<8x8xf32>, vector<8x8xf32>, vector<8x8xf32>, vector<8x8xf32> -> vector<8x32xf32>
    %c0_102 = arith.constant 0 : index
    %c0_103 = arith.constant 0 : index
    %249 = vector.load %arg10[%c0_102, %c0_103] : memref<32x32xf32, #tpu.memory_space<vmem>>, vector<32x32xf32>
    %cst_104 = arith.constant dense<0.000000e+00> : vector<8x32xf32>
    %250 = tpu.matmul %248, %249, %cst_104 {dimension_numbers = #tpu.dot_dimension_numbers<[1], [0], [0], [1], [0, 0, 1, 1], [], []>} : vector<8x32xf32>, vector<32x32xf32>, vector<8x32xf32> -> vector<8x32xf32>
    %251 = arith.addf %139, %250 : vector<8x32xf32>
    %c0_105 = arith.constant 0 : index
    %c0_106 = arith.constant 0 : index
    %252 = vector.load %arg11[%c0_105, %c0_106] : memref<1x32xf32, #tpu.memory_space<vmem>>, vector<1x32xf32>
    %c0_107 = arith.constant 0 : index
    %c0_108 = arith.constant 0 : index
    %253 = vector.load %arg12[%c0_107, %c0_108] : memref<1x32xf32, #tpu.memory_space<vmem>>, vector<1x32xf32>
    %cst_109 = arith.constant dense<0.000000e+00> : vector<8xf32>
    %254 = vector.multi_reduction <add>, %251, %cst_109 [1] : vector<8x32xf32> to vector<8xf32>
    %255 = vector.shape_cast %254 : vector<8xf32> to vector<8x1xf32>
    %cst_110 = arith.constant 3.200000e+01 : f32
    %256 = vector.broadcast %cst_110 : f32 to vector<8x1xf32>
    %257 = arith.divf %255, %256 : vector<8x1xf32>
    %258 = vector.broadcast %257 : vector<8x1xf32> to vector<8x32xf32>
    %259 = arith.subf %251, %258 : vector<8x32xf32>
    %260 = arith.mulf %259, %259 : vector<8x32xf32>
    %cst_111 = arith.constant dense<0.000000e+00> : vector<8xf32>
    %261 = vector.multi_reduction <add>, %260, %cst_111 [1] : vector<8x32xf32> to vector<8xf32>
    %262 = vector.shape_cast %261 : vector<8xf32> to vector<8x1xf32>
    %cst_112 = arith.constant 3.200000e+01 : f32
    %263 = vector.broadcast %cst_112 : f32 to vector<8x1xf32>
    %264 = arith.divf %262, %263 : vector<8x1xf32>
    %265 = vector.broadcast %257 : vector<8x1xf32> to vector<8x32xf32>
    %266 = arith.subf %251, %265 : vector<8x32xf32>
    %cst_113 = arith.constant 9.99999974E-6 : f32
    %267 = vector.broadcast %cst_113 : f32 to vector<8x1xf32>
    %268 = arith.addf %264, %267 : vector<8x1xf32>
    %269 = math.rsqrt %268 : vector<8x1xf32>
    %270 = vector.broadcast %269 : vector<8x1xf32> to vector<8x32xf32>
    %271 = arith.mulf %266, %270 : vector<8x32xf32>
    %272 = vector.broadcast %252 : vector<1x32xf32> to vector<8x32xf32>
    %273 = arith.mulf %271, %272 : vector<8x32xf32>
    %274 = vector.broadcast %253 : vector<1x32xf32> to vector<8x32xf32>
    %275 = arith.addf %273, %274 : vector<8x32xf32>
    %c0_114 = arith.constant 0 : index
    %c0_115 = arith.constant 0 : index
    %276 = vector.load %arg13[%c0_114, %c0_115] : memref<32x64xf32, #tpu.memory_space<vmem>>, vector<32x64xf32>
    %cst_116 = arith.constant dense<0.000000e+00> : vector<8x64xf32>
    %277 = tpu.matmul %275, %276, %cst_116 {dimension_numbers = #tpu.dot_dimension_numbers<[1], [0], [0], [1], [0, 0, 1, 1], [], []>} : vector<8x32xf32>, vector<32x64xf32>, vector<8x64xf32> -> vector<8x64xf32>
    %c0_117 = arith.constant 0 : index
    %c0_118 = arith.constant 0 : index
    %278 = vector.load %arg14[%c0_117, %c0_118] : memref<1x64xf32, #tpu.memory_space<vmem>>, vector<1x64xf32>
    %279 = vector.broadcast %278 : vector<1x64xf32> to vector<8x64xf32>
    %280 = arith.addf %277, %279 : vector<8x64xf32>
    %cst_119 = arith.constant 0.000000e+00 : f32
    %281 = vector.broadcast %cst_119 : f32 to vector<8x64xf32>
    %282 = arith.maximumf %280, %281 : vector<8x64xf32>
    %c0_120 = arith.constant 0 : index
    %c0_121 = arith.constant 0 : index
    %283 = vector.load %arg15[%c0_120, %c0_121] : memref<64x32xf32, #tpu.memory_space<vmem>>, vector<64x32xf32>
    %cst_122 = arith.constant dense<0.000000e+00> : vector<8x32xf32>
    %284 = tpu.matmul %282, %283, %cst_122 {dimension_numbers = #tpu.dot_dimension_numbers<[1], [0], [0], [1], [0, 0, 1, 1], [], []>} : vector<8x64xf32>, vector<64x32xf32>, vector<8x32xf32> -> vector<8x32xf32>
    %c0_123 = arith.constant 0 : index
    %c0_124 = arith.constant 0 : index
    %285 = vector.load %arg16[%c0_123, %c0_124] : memref<1x32xf32, #tpu.memory_space<vmem>>, vector<1x32xf32>
    %286 = vector.broadcast %285 : vector<1x32xf32> to vector<8x32xf32>
    %287 = arith.addf %284, %286 : vector<8x32xf32>
    %288 = arith.addf %275, %287 : vector<8x32xf32>
    %c0_125 = arith.constant 0 : index
    %c0_126 = arith.constant 0 : index
    %289 = vector.load %arg17[%c0_125, %c0_126] : memref<1x32xf32, #tpu.memory_space<vmem>>, vector<1x32xf32>
    %c0_127 = arith.constant 0 : index
    %c0_128 = arith.constant 0 : index
    %290 = vector.load %arg18[%c0_127, %c0_128] : memref<1x32xf32, #tpu.memory_space<vmem>>, vector<1x32xf32>
    %cst_129 = arith.constant dense<0.000000e+00> : vector<8xf32>
    %291 = vector.multi_reduction <add>, %288, %cst_129 [1] : vector<8x32xf32> to vector<8xf32>
    %292 = vector.shape_cast %291 : vector<8xf32> to vector<8x1xf32>
    %cst_130 = arith.constant 3.200000e+01 : f32
    %293 = vector.broadcast %cst_130 : f32 to vector<8x1xf32>
    %294 = arith.divf %292, %293 : vector<8x1xf32>
    %295 = vector.broadcast %294 : vector<8x1xf32> to vector<8x32xf32>
    %296 = arith.subf %288, %295 : vector<8x32xf32>
    %297 = arith.mulf %296, %296 : vector<8x32xf32>
    %cst_131 = arith.constant dense<0.000000e+00> : vector<8xf32>
    %298 = vector.multi_reduction <add>, %297, %cst_131 [1] : vector<8x32xf32> to vector<8xf32>
    %299 = vector.shape_cast %298 : vector<8xf32> to vector<8x1xf32>
    %cst_132 = arith.constant 3.200000e+01 : f32
    %300 = vector.broadcast %cst_132 : f32 to vector<8x1xf32>
    %301 = arith.divf %299, %300 : vector<8x1xf32>
    %302 = vector.broadcast %294 : vector<8x1xf32> to vector<8x32xf32>
    %303 = arith.subf %288, %302 : vector<8x32xf32>
    %cst_133 = arith.constant 9.99999974E-6 : f32
    %304 = vector.broadcast %cst_133 : f32 to vector<8x1xf32>
    %305 = arith.addf %301, %304 : vector<8x1xf32>
    %306 = math.rsqrt %305 : vector<8x1xf32>
    %307 = vector.broadcast %306 : vector<8x1xf32> to vector<8x32xf32>
    %308 = arith.mulf %303, %307 : vector<8x32xf32>
    %309 = vector.broadcast %289 : vector<1x32xf32> to vector<8x32xf32>
    %310 = arith.mulf %308, %309 : vector<8x32xf32>
    %311 = vector.broadcast %290 : vector<1x32xf32> to vector<8x32xf32>
    %312 = arith.addf %310, %311 : vector<8x32xf32>
    %c0_134 = arith.constant 0 : index
    %c0_135 = arith.constant 0 : index
    %c0_136 = arith.constant 0 : index
    %313 = vector.load %arg19[%c0_134, %c0_135, %c0_136] : memref<1x8x32xf32, #tpu.memory_space<vmem>>, vector<1x8x32xf32>
    %314 = vector.shape_cast %313 : vector<1x8x32xf32> to vector<8x32xf32>
    %315 = vector.shape_cast %312 : vector<8x32xf32> to vector<1x8x32xf32>
    tpu.vector_store %arg19[%c0_134, %c0_135, %c0_136], %315 {strides = array<i32>} : memref<1x8x32xf32, #tpu.memory_space<vmem>>, vector<1x8x32xf32>,
    return
  }
  func.func @transform_0(%arg0: i32, %arg1: memref<2xi32, #tpu.memory_space<smem>>) -> (i32, i32, i32) {
    %c0_i32 = arith.constant 0 : i32
    %c0_i32_0 = arith.constant 0 : i32
    %c0_i32_1 = arith.constant 0 : i32
    return %arg0, %c0_i32, %c0_i32_0 : i32, i32, i32
  }
  func.func @transform_1(%arg0: i32, %arg1: memref<2xi32, #tpu.memory_space<smem>>) -> (i32, i32, i32) {
    %c0_i32 = arith.constant 0 : i32
    %c0_i32_0 = arith.constant 0 : i32
    %c0_i32_1 = arith.constant 0 : i32
    return %arg0, %c0_i32, %c0_i32_0 : i32, i32, i32
  }
  func.func @transform_2(%arg0: i32, %arg1: memref<2xi32, #tpu.memory_space<smem>>) -> (i32, i32) {
    %c0_i32 = arith.constant 0 : i32
    %c0_i32_0 = arith.constant 0 : i32
    %c0_i32_1 = arith.constant 0 : i32
    return %c0_i32, %c0_i32_0 : i32, i32
  }
  func.func @transform_3(%arg0: i32, %arg1: memref<2xi32, #tpu.memory_space<smem>>) -> (i32, i32) {
    %c0_i32 = arith.constant 0 : i32
    %c0_i32_0 = arith.constant 0 : i32
    %c0_i32_1 = arith.constant 0 : i32
    return %c0_i32, %c0_i32_0 : i32, i32
  }
  func.func @transform_4(%arg0: i32, %arg1: memref<2xi32, #tpu.memory_space<smem>>) -> (i32, i32) {
    %c0_i32 = arith.constant 0 : i32
    %c0_i32_0 = arith.constant 0 : i32
    %c0_i32_1 = arith.constant 0 : i32
    return %c0_i32, %c0_i32_0 : i32, i32
  }
  func.func @transform_5(%arg0: i32, %arg1: memref<2xi32, #tpu.memory_space<smem>>) -> (i32, i32) {
    %c0_i32 = arith.constant 0 : i32
    %c0_i32_0 = arith.constant 0 : i32
    %c0_i32_1 = arith.constant 0 : i32
    return %c0_i32, %c0_i32_0 : i32, i32
  }
  func.func @transform_6(%arg0: i32, %arg1: memref<2xi32, #tpu.memory_space<smem>>) -> (i32, i32) {
    %c0_i32 = arith.constant 0 : i32
    %c0_i32_0 = arith.constant 0 : i32
    %c0_i32_1 = arith.constant 0 : i32
    return %c0_i32, %c0_i32_0 : i32, i32
  }
  func.func @transform_7(%arg0: i32, %arg1: memref<2xi32, #tpu.memory_space<smem>>) -> (i32, i32) {
    %c0_i32 = arith.constant 0 : i32
    %c0_i32_0 = arith.constant 0 : i32
    %c0_i32_1 = arith.constant 0 : i32
    return %c0_i32, %c0_i32_0 : i32, i32
  }
  func.func @transform_8(%arg0: i32, %arg1: memref<2xi32, #tpu.memory_space<smem>>) -> (i32, i32) {
    %c0_i32 = arith.constant 0 : i32
    %c0_i32_0 = arith.constant 0 : i32
    %c0_i32_1 = arith.constant 0 : i32
    return %c0_i32, %c0_i32_0 : i32, i32
  }
  func.func @transform_9(%arg0: i32, %arg1: memref<2xi32, #tpu.memory_space<smem>>) -> (i32, i32) {
    %c0_i32 = arith.constant 0 : i32
    %c0_i32_0 = arith.constant 0 : i32
    %c0_i32_1 = arith.constant 0 : i32
    return %c0_i32, %c0_i32_0 : i32, i32
  }
  func.func @transform_10(%arg0: i32, %arg1: memref<2xi32, #tpu.memory_space<smem>>) -> (i32, i32) {
    %c0_i32 = arith.constant 0 : i32
    %c0_i32_0 = arith.constant 0 : i32
    %c0_i32_1 = arith.constant 0 : i32
    return %c0_i32, %c0_i32_0 : i32, i32
  }
  func.func @transform_11(%arg0: i32, %arg1: memref<2xi32, #tpu.memory_space<smem>>) -> (i32, i32) {
    %c0_i32 = arith.constant 0 : i32
    %c0_i32_0 = arith.constant 0 : i32
    %c0_i32_1 = arith.constant 0 : i32
    return %c0_i32, %c0_i32_0 : i32, i32
  }
  func.func @transform_12(%arg0: i32, %arg1: memref<2xi32, #tpu.memory_space<smem>>) -> (i32, i32) {
    %c0_i32 = arith.constant 0 : i32
    %c0_i32_0 = arith.constant 0 : i32
    %c0_i32_1 = arith.constant 0 : i32
    return %c0_i32, %c0_i32_0 : i32, i32
  }
  func.func @transform_13(%arg0: i32, %arg1: memref<2xi32, #tpu.memory_space<smem>>) -> (i32, i32) {
    %c0_i32 = arith.constant 0 : i32
    %c0_i32_0 = arith.constant 0 : i32
    %c0_i32_1 = arith.constant 0 : i32
    return %c0_i32, %c0_i32_0 : i32, i32
  }
  func.func @transform_14(%arg0: i32, %arg1: memref<2xi32, #tpu.memory_space<smem>>) -> (i32, i32) {
    %c0_i32 = arith.constant 0 : i32
    %c0_i32_0 = arith.constant 0 : i32
    %c0_i32_1 = arith.constant 0 : i32
    return %c0_i32, %c0_i32_0 : i32, i32
  }
  func.func @transform_15(%arg0: i32, %arg1: memref<2xi32, #tpu.memory_space<smem>>) -> (i32, i32) {
    %c0_i32 = arith.constant 0 : i32
    %c0_i32_0 = arith.constant 0 : i32
    %c0_i32_1 = arith.constant 0 : i32
    return %c0_i32, %c0_i32_0 : i32, i32
  }
  func.func @transform_16(%arg0: i32, %arg1: memref<2xi32, #tpu.memory_space<smem>>) -> (i32, i32) {
    %c0_i32 = arith.constant 0 : i32
    %c0_i32_0 = arith.constant 0 : i32
    %c0_i32_1 = arith.constant 0 : i32
    return %c0_i32, %c0_i32_0 : i32, i32
  }
  func.func @transform_17(%arg0: i32, %arg1: memref<2xi32, #tpu.memory_space<smem>>) -> (i32, i32, i32) {
    %c0_i32 = arith.constant 0 : i32
    %c0_i32_0 = arith.constant 0 : i32
    %c0_i32_1 = arith.constant 0 : i32
    return %arg0, %c0_i32, %c0_i32_0 : i32, i32, i32
  }
  func.func @transform_18(%arg0: i32, %arg1: memref<2xi32, #tpu.memory_space<smem>>) -> (i32, i32, i32, i32) {
    %c0_i32 = arith.constant 0 : i32
    %c0_i32_0 = arith.constant 0 : i32
    %c0_i32_1 = arith.constant 0 : i32
    %c0_i32_2 = arith.constant 0 : i32
    return %arg0, %c0_i32, %c0_i32_0, %c0_i32_1 : i32, i32, i32, i32
  }
  func.func @transform_19(%arg0: i32, %arg1: memref<2xi32, #tpu.memory_space<smem>>) -> (i32, i32, i32, i32) {
    %c0_i32 = arith.constant 0 : i32
    %c0_i32_0 = arith.constant 0 : i32
    %c0_i32_1 = arith.constant 0 : i32
    %c0_i32_2 = arith.constant 0 : i32
    return %arg0, %c0_i32, %c0_i32_0, %c0_i32_1 : i32, i32, i32, i32
  }
}

</mosaic_0001>

<llo_original>
// kernel: transformer_decoder_forward.4
$region0: #{transformer_decoder_forward.4}
  #allocation0 [shape = 'u32[]', space=smem, size = 0x4, offset = 0x4, fixed_abs, tag = 'smem constant byte address 0x4 - core index']
  #allocation1 [shape = 'u32[144,128]{1,0:T(1,128)}', space=vmem, size = 0x12000, scoped, tag = 'internal scratch']
  %s0 = inlined_call_operand.vmem [shape: f32[2,8,32], index: 0, kind: input, shape index: {}]
  %s1 = inlined_call_operand.vmem [shape: f32[1000,32], index: 1, kind: input, shape index: {}]
  %s2 = inlined_call_operand.vmem [shape: f32[2,8,32], index: 2, kind: output, shape index: {}]
  %s3 = sld [smem:[#allocation0]]
  $region41: #{transformer_decoder_forward.4} parent=0
    _
  %s5 = ssub.s32 1, %s3
  %s6 = scalar_select 0, %s5, %s3
  loop: start=0, step=1, limit=4
  $region2: #{transformer_decoder_forward.4} parent=0 // loop_pre_header
    _
  $region3: #{transformer_decoder_forward.4} parent=0 // loop_header
    %s8 = sphi 0, %s12
    %p9 = scmp.ge.s32.totalorder %s8, 4
    %s18 = sphi 0, %s20
    %s21 = sphi 0, %s18
    %s22 = sphi 0, %s21
    %s38 = sphi 0, %s22
    %s42 = sphi 0, %s42
    %s44 = sphi 0, %s42
    %s45 = sphi 0, %s44
    %s59 = sphi 0, %s45
    %s65 = sphi 0, %s67
    %s68 = sphi 0, %s65
    %s69 = sphi 0, %s68
    %s85 = sphi 0, %s69
  $region4: #{transformer_decoder_forward.4} parent=0 // loop_header_branch
    %11 = sbr.rel (%p9) target = $region8
  $region5: #{transformer_decoder_forward.4} parent=0 // loop_body
    %s13 = ssub.s32 %s8, 1
    %s14 = ssub.s32 %s8, 2
    %s15 = sadd.s32 %s8, 1
    %s16 = ssub.s32 %s8, %s15
    %p17 = scmp.eq.s32.totalorder %s16, 0
    %s19 = sadd.s32 %s18, 1
    %s20 = scalar_select %p17, %s18, %s19
    %p23 = pneg %p17
    %p24 = scmp.eq.s32.totalorder %s8, 1
    %p25 = por %p23, %p24
    %p26 = scmp.ne.s32.totalorder %s18, %s21
    %p27 = scmp.eq.s32.totalorder %s8, 0
    %p28 = por %p26, %p27
    %p29 = scmp.ne.s32.totalorder %s18, %s21
    %p30 = scmp.eq.s32.totalorder %s13, 1
    %p31 = por %p29, %p30
    %p32 = scmp.ne.s32.totalorder %s21, %s22
    %p33 = scmp.eq.s32.totalorder %s13, 0
    %p34 = por %p32, %p33
    %p35 = scmp.ne.s32.totalorder %s21, %s22
    %p36 = scmp.eq.s32.totalorder %s14, 1
    %p37 = por %p35, %p36
    %p39 = scmp.ne.s32.totalorder %s22, %s38
    %p40 = scmp.eq.s32.totalorder %s14, 0
    %p41 = por %p39, %p40
    %s43 = sadd.s32 %s42, 1
    %p46 = scmp.eq.s32.totalorder %s8, 1
    %p47 = scmp.ne.s32.totalorder %s42, %s44
    %p48 = scmp.eq.s32.totalorder %s8, 0
    %p49 = por %p47, %p48
    %p50 = scmp.ne.s32.totalorder %s42, %s44
    %p51 = scmp.eq.s32.totalorder %s13, 1
    %p52 = por %p50, %p51
    %p53 = scmp.ne.s32.totalorder %s44, %s45
    %p54 = scmp.eq.s32.totalorder %s13, 0
    %p55 = por %p53, %p54
    %p56 = scmp.ne.s32.totalorder %s44, %s45
    %p57 = scmp.eq.s32.totalorder %s14, 1
    %p58 = por %p56, %p57
    %p60 = scmp.ne.s32.totalorder %s45, %s59
    %p61 = scmp.eq.s32.totalorder %s14, 0
    %p62 = por %p60, %p61
    %s63 = ssub.s32 %s8, %s15
    %p64 = scmp.eq.s32.totalorder %s63, 0
    %s66 = sadd.s32 %s65, 1
    %s67 = scalar_select %p64, %s65, %s66
    %p70 = pneg %p64
    %p71 = scmp.eq.s32.totalorder %s8, 1
    %p72 = por %p70, %p71
    %p73 = scmp.ne.s32.totalorder %s65, %s68
    %p74 = scmp.eq.s32.totalorder %s8, 0
    %p75 = por %p73, %p74
    %p76 = scmp.ne.s32.totalorder %s65, %s68
    %p77 = scmp.eq.s32.totalorder %s13, 1
    %p78 = por %p76, %p77
    %p79 = scmp.ne.s32.totalorder %s68, %s69
    %p80 = scmp.eq.s32.totalorder %s13, 0
    %p81 = por %p79, %p80
    %p82 = scmp.ne.s32.totalorder %s68, %s69
    %p83 = scmp.eq.s32.totalorder %s14, 1
    %p84 = por %p82, %p83
    %p86 = scmp.ne.s32.totalorder %s69, %s85
    %p87 = scmp.eq.s32.totalorder %s14, 0
    %p88 = por %p86, %p87
    %p89 = scmp.le.s32.totalorder 1, %s8
    %p90 = scmp.lt.s32.totalorder %s8, 3
    %p91 = pnand %p89, %p90
    %p92 = pneg %p91
    // Predicated region
    $region9: #{transformer_decoder_forward.4} parent=5 // pred_check
      _
    $region10: #{transformer_decoder_forward.4} parent=5 // pred_check_branch
      %94 = sbr.rel (%p91) target = $region12
    $region11: #{transformer_decoder_forward.4} parent=5 // pred_region
      %s95 = ssub.s32 %s8, 1
      // Predicated region
      $region13: #{transformer_decoder_forward.4} parent=11 // pred_check
        %p96 = pneg %p55
      $region14: #{transformer_decoder_forward.4} parent=11 // pred_check_branch
        %98 = sbr.rel (%p96) target = $region16
      $region15: #{transformer_decoder_forward.4} parent=11 // pred_region
        _
      $region16: #{transformer_decoder_forward.4} parent=11 // pred_fallthru
        _
    $region12: #{transformer_decoder_forward.4} parent=5 // pred_fallthru
      _
    %p99 = scmp.lt.s32.totalorder %s8, 2
    // Predicated region
    $region17: #{transformer_decoder_forward.4} parent=5 // pred_check
      %p100 = pneg %p99
    $region18: #{transformer_decoder_forward.4} parent=5 // pred_check_branch
      %102 = sbr.rel (%p100) target = $region20
    $region19: #{transformer_decoder_forward.4} parent=5 // pred_region
      // Predicated region
      $region21: #{transformer_decoder_forward.4} parent=19 // pred_check
        %p103 = pneg %p28
      $region22: #{transformer_decoder_forward.4} parent=19 // pred_check_branch
        %105 = sbr.rel (%p103) target = $region24
      $region23: #{transformer_decoder_forward.4} parent=19 // pred_region
        %p106 = scmp.lt.s32.totalorder %s8, 1
        %s107 = scalar_select %p106, %s8, 1
        %s108 = smul.addr %s107, 8
        %s109 = scalar_lea.vmem %s0, %s108
      $region24: #{transformer_decoder_forward.4} parent=19 // pred_fallthru
        _
    $region20: #{transformer_decoder_forward.4} parent=5 // pred_fallthru
      _
    %p110 = scmp.le.s32.totalorder 1, %s8
    %p111 = scmp.lt.s32.totalorder %s8, 3
    %p112 = pnand %p110, %p111
    %p113 = pneg %p112
    // Predicated region
    $region25: #{transformer_decoder_forward.4} parent=5 // pred_check
      _
    $region26: #{transformer_decoder_forward.4} parent=5 // pred_check_branch
      %115 = sbr.rel (%p112) target = $region28
    $region27: #{transformer_decoder_forward.4} parent=5 // pred_region
      %s116 = ssub.s32 %s8, 1
      %p117 = scmp.lt.s32.totalorder %s13, 1
      %s118 = scalar_select %p117, %s13, 1
      %s119 = smul.addr %s118, 8
      %s120 = scalar_lea.vmem %s0, %s119
      %p121 = pneg %p34
      %p122 = pneg %p31
      %p123 = pneg %p55
      %p124 = pneg %p52
      %p125 = pneg %p81
      %p126 = pneg %p78
      %p127 = scmp.lt.s32.totalorder %s13, 1
      %s128 = scalar_select %p127, %s13, 1
      %s129 = smul.addr %s128, 8
      %s130 = scalar_lea.vmem %s2, %s129
      %p131 = scmp.lt.s32.totalorder %s13, 1
      %s132 = scalar_select %p131, %s13, 1
      %s133 = smul.addr %s132, 8
      %s134 = scalar_lea.vmem %s0, %s133
      %p135 = scmp.lt.s32.totalorder %s13, 1
      %s136 = scalar_select %p135, %s13, 1
      %s137 = smul.addr %s136, 8
      %s138 = scalar_lea.vmem %s2, %s137
      %v139 = vld [vmem:[%s134] sm:$0xff]
      %v140 = vmul.f32 %v139, 5.656854
      %v141 = vld [vmem:[%s1] sm:$0xff]
      %v142 = vadd.f32 %v140, %v141
      %vm143 = vcmask 261120
      %144 = vst.msk [vmem:[%s138] sm:$0xff] %vm143, %v142
      %p145 = scmp.lt.s32.totalorder %s13, 1
      %s146 = scalar_select %p145, %s13, 1
      %s147 = smul.addr %s146, 8
      %s148 = scalar_lea.vmem %s2, %s147
      // Predicated region
      $region29: #{transformer_decoder_forward.4} parent=27 // pred_check
        %p149 = pneg %p78
      $region30: #{transformer_decoder_forward.4} parent=27 // pred_check_branch
        %151 = sbr.rel (%p149) target = $region32
      $region31: #{transformer_decoder_forward.4} parent=27 // pred_region
        _
      $region32: #{transformer_decoder_forward.4} parent=27 // pred_fallthru
        _
    $region28: #{transformer_decoder_forward.4} parent=5 // pred_fallthru
      _
    %p152 = scmp.le.s32.totalorder 2, %s8
    // Predicated region
    $region33: #{transformer_decoder_forward.4} parent=5 // pred_check
      %p153 = pneg %p152
    $region34: #{transformer_decoder_forward.4} parent=5 // pred_check_branch
      %155 = sbr.rel (%p153) target = $region36
    $region35: #{transformer_decoder_forward.4} parent=5 // pred_region
      %s156 = ssub.s32 %s8, 2
      // Predicated region
      $region37: #{transformer_decoder_forward.4} parent=35 // pred_check
        %p157 = pneg %p84
      $region38: #{transformer_decoder_forward.4} parent=35 // pred_check_branch
        %159 = sbr.rel (%p157) target = $region40
      $region39: #{transformer_decoder_forward.4} parent=35 // pred_region
        %p160 = scmp.lt.s32.totalorder %s14, 1
        %s161 = scalar_select %p160, %s14, 1
        %s162 = smul.addr %s161, 8
        %s163 = scalar_lea.vmem %s2, %s162
      $region40: #{transformer_decoder_forward.4} parent=35 // pred_fallthru
        _
    $region36: #{transformer_decoder_forward.4} parent=5 // pred_fallthru
      _
  $region6: #{transformer_decoder_forward.4} parent=0 // loop_footer
    %s12 = sadd.s32 1, %s8
  $region7: #{transformer_decoder_forward.4} parent=0 // loop_footer_branch
    %7 = sbr.rel target = $region3
  $region8: #{transformer_decoder_forward.4} parent=0 // loop_exit
    _

// kernel: transformer_decoder_forward.7
$region0: #{transformer_decoder_forward.7}
  #allocation0 [shape = 'u32[]', space=smem, size = 0x4, offset = 0x4, fixed_abs, tag = 'smem constant byte address 0x4 - core index']
  #allocation1 [shape = 'u32[144,128]{1,0:T(1,128)}', space=vmem, size = 0x12000, scoped, tag = 'internal scratch']
  %s0 = inlined_call_operand.vmem [shape: f32[16,32], index: 0, kind: input, shape index: {}]
  %s1 = inlined_call_operand.vmem [shape: f32[32,40], index: 1, kind: input, shape index: {}]
  %s2 = inlined_call_operand.vmem [shape: f32[1,40], index: 2, kind: input, shape index: {}]
  %s3 = inlined_call_operand.hbm [shape: f32[16,40], index: 3, kind: output, shape index: {}]
  %s4 = sld [smem:[#allocation0]]
  $region22: #{transformer_decoder_forward.7} parent=0
    _
  %s6 = ssub.s32 1, %s4
  %s7 = scalar_select 0, %s6, %s4
  $region1: #{transformer_decoder_forward.7} parent=0
    #allocation2 [shape = 'u8[8192]{0}', space=vmem, size = 0x2000, scoped, tag = 'output window, operand 0, single buffered']
    #allocation3 [shape = 's32[1]{0}', space=sflag, size = 0x4, scoped, tag = 'scoped memory for transformer_decoder_forward.7']
    %8 = vsyncpa [#allocation3], 0
    // Predicated region
    $region2: #{transformer_decoder_forward.7} parent=1 // pred_check
      _
    $region3: #{transformer_decoder_forward.7} parent=1 // pred_check_branch
      %10 = sbr.rel (0) target = $region5
    $region4: #{transformer_decoder_forward.7} parent=1 // pred_region
      _
    $region5: #{transformer_decoder_forward.7} parent=1 // pred_fallthru
      _
    // Predicated region
    $region6: #{transformer_decoder_forward.7} parent=1 // pred_check
      _
    $region7: #{transformer_decoder_forward.7} parent=1 // pred_check_branch
      %12 = sbr.rel (0) target = $region9
    $region8: #{transformer_decoder_forward.7} parent=1 // pred_region
      _
    $region9: #{transformer_decoder_forward.7} parent=1 // pred_fallthru
      _
    // Predicated region
    $region10: #{transformer_decoder_forward.7} parent=1 // pred_check
      _
    $region11: #{transformer_decoder_forward.7} parent=1 // pred_check_branch
      %14 = sbr.rel (0) target = $region13
    $region12: #{transformer_decoder_forward.7} parent=1 // pred_region
      _
    $region13: #{transformer_decoder_forward.7} parent=1 // pred_fallthru
      _
    %v15 = vld [vmem:[%s0] sm:$0xff]
    %v16 = vld [vmem:[%s0 + $0x8] sm:$0xff]
    %v17 = vld [vmem:[%s1] sm:$0xff]
    %v18 = vld [vmem:[%s1 + $0x8] sm:$0xff]
    %v19 = vld [vmem:[%s1 + $0x10] sm:$0xff]
    %v20 = vld [vmem:[%s1 + $0x18] sm:$0xff]
    %v21 = vld [vmem:[%s2] sm:$0x1]
    %v23 = vlaneseq
    %v24 = vshrl.u32 %v23, 7
    %v25 = vsub.s32 0, %v24
    %v26 = vrot.slane %v21, %v25
    %vm28 = vcmask 261120
    %v30 = vsel %vm28, %v15, 0
    %v33 = vsel %vm28, %v16, 0
    %35 = vmatprep.subr.mxu0 0.0
    %36 = vmatpush1.msra.mxu0 %v17
    %37 = vmatprep.subr.mxu0 0.0
    %38 = vmatpush1.msra.mxu0 %v18
    %39 = vmatprep.subr.mxu0 0.0
    %40 = vmatpush1.msra.mxu0 %v19
    %41 = vmatprep.subr.mxu0 0.0
    %42 = vmatpush1.msra.mxu0 %v20
    %43 = vmatprep.subr.mxu0 0.0
    %44 = vmatpush1.msra.mxu0 0.0
    %45 = vmatprep.subr.mxu0 0.0
    %46 = vmatpush1.msra.mxu0 0.0
    %47 = vmatprep.subr.mxu0 0.0
    %48 = vmatpush1.msra.mxu0 0.0
    %49 = vmatprep.subr.mxu0 0.0
    %50 = vmatpush1.msra.mxu0 0.0
    %51 = vmatprep.subr.mxu0 0.0
    %52 = vmatpush1.msra.mxu0 0.0
    %53 = vmatprep.subr.mxu0 0.0
    %54 = vmatpush1.msra.mxu0 0.0
    %55 = vmatprep.subr.mxu0 0.0
    %56 = vmatpush1.msra.mxu0 0.0
    %57 = vmatprep.subr.mxu0 0.0
    %58 = vmatpush1.msra.mxu0 0.0
    %59 = vmatprep.subr.mxu0 0.0
    %60 = vmatpush1.msra.mxu0 0.0
    %61 = vmatprep.subr.mxu0 0.0
    %62 = vmatpush1.msra.mxu0 0.0
    %63 = vmatprep.subr.mxu0 0.0
    %64 = vmatpush1.msra.mxu0 0.0
    %65 = vmatprep.subr.mxu0 0.0
    %66 = vmatpush1.msra.mxu0 0.0
    %67 = vmatprep.subr.mxu0 0.0
    %68 = vmatpush1.msra.mxu0 0.0
    %69 = vmatprep.subr.mxu0 0.0
    %70 = vmatpush1.msra.mxu0 0.0
    %71 = vmatprep.subr.mxu0 0.0
    %72 = vmatpush1.msra.mxu0 0.0
    %73 = vmatprep.subr.mxu0 0.0
    %74 = vmatpush1.msra.mxu0 0.0
    %75 = vmatprep.subr.mxu0 0.0
    %76 = vmatpush1.msra.mxu0 0.0
    %77 = vmatprep.subr.mxu0 0.0
    %78 = vmatpush1.msra.mxu0 0.0
    %79 = vmatprep.subr.mxu0 0.0
    %80 = vmatpush1.msra.mxu0 0.0
    %81 = vmatprep.subr.mxu0 0.0
    %82 = vmatpush1.msra.mxu0 0.0
    %83 = vmatprep.subr.mxu0 0.0
    %84 = vmatpush1.msra.mxu0 0.0
    %85 = vmatprep.subr.mxu0 0.0
    %86 = vmatpush1.msra.mxu0 0.0
    %87 = vmatprep.subr.mxu0 0.0
    %88 = vmatpush1.msra.mxu0 0.0
    %89 = vmatprep.subr.mxu0 0.0
    %90 = vmatpush1.msra.mxu0 0.0
    %91 = vmatprep.subr.mxu0 0.0
    %92 = vmatpush1.msra.mxu0 0.0
    %93 = vmatprep.subr.mxu0 0.0
    %94 = vmatpush1.msra.mxu0 0.0
    %95 = vmatprep.subr.mxu0 0.0
    %96 = vmatpush1.msra.mxu0 0.0
    %97 = vmatprep.subr.mxu0 0.0
    %98 = vmatpush1.msra.mxu0 0.0
    %99 = vmatprep.mubr.f32.mxu0 0.0
    %100 = vmatmul.mubr.f32.gmra.mrb[0].mxu0 %v30
    %v101 = vpop.f32.mrb[0].mxu0
    %v102 = vadd.f32 %v26, %v101
    %v103 = vpop.f32.mrb[0].mxu0
    %104 = vmatprep.mubr.f32.mxu0 0.0
    %105 = vmatmul.mubr.f32.gmra.mrb[0].mxu0 %v33
    %v106 = vpop.f32.mrb[0].mxu0
    %v107 = vadd.f32 %v26, %v106
    %v108 = vpop.f32.mrb[0].mxu0
    %109 = vdwg.mxu0
    %vm110 = vcmask 326656
    %111 = vst.msk [vmem:[#allocation2] sm:$0xff] %vm110, %v102
    %112 = vst.msk [vmem:[#allocation2 + $0x8] sm:$0xff] %vm110, %v107
    // Predicated region
    $region14: #{transformer_decoder_forward.7} parent=1 // pred_check
      _
    $region15: #{transformer_decoder_forward.7} parent=1 // pred_check_branch
      %114 = sbr.rel (0) target = $region17
    $region16: #{transformer_decoder_forward.7} parent=1 // pred_region
      %s116 = ssub.s32 256, 256
      %117 = vsyncadd [#allocation3], %s116
      %s118 = sshll.u32 [#allocation2], 4
      %s119 = int_to_ptr.vmem [resolvable:$true] %s118
      %124 = dma.vmem_to_hbm [thread:$0]  %s119, 256, %s3, [#allocation3], 128, 128, 8
    $region17: #{transformer_decoder_forward.7} parent=1 // pred_fallthru
      _
    // Predicated region
    $region18: #{transformer_decoder_forward.7} parent=1 // pred_check
      _
    $region19: #{transformer_decoder_forward.7} parent=1 // pred_check_branch
      %126 = sbr.rel (0) target = $region21
    $region20: #{transformer_decoder_forward.7} parent=1 // pred_region
      %127 = dma.done [#allocation3], 256
    $region21: #{transformer_decoder_forward.7} parent=1 // pred_fallthru
      _
    %128 = vsyncpa [#allocation3], 1

// kernel: transformer_decoder_forward.5
$region0: #{transformer_decoder_forward.5}
  #allocation0 [shape = 'u32[]', space=smem, size = 0x4, offset = 0x4, fixed_abs, tag = 'smem constant byte address 0x4 - core index']
  #allocation1 [shape = 'u32[144,128]{1,0:T(1,128)}', space=vmem, size = 0x12000, scoped, tag = 'internal scratch']
  #allocation2 [shape = 's32[1]{0}', space=sflag, size = 0x4, scoped, tag = 'scoped memory for transformer_decoder_forward.5']
  #allocation3 [shape = 'u8[512]{0}', space=smem, size = 0x200, scoped, tag = 'prefetched SMEM operand 0']
  %s0 = inlined_call_operand.vmem [shape: s32[2], index: 0, kind: input, shape index: {}]
  %s1 = inlined_call_operand.vmem [shape: f32[2,8,32], index: 1, kind: input, shape index: {}]
  %s2 = inlined_call_operand.vmem [shape: f32[2,8,32], index: 2, kind: input, shape index: {}]
  %s3 = inlined_call_operand.vmem [shape: f32[32,96], index: 3, kind: input, shape index: {}]
  %s4 = inlined_call_operand.vmem [shape: f32[32,32], index: 4, kind: input, shape index: {}]
  %s5 = inlined_call_operand.vmem [shape: f32[1,32], index: 5, kind: input, shape index: {}]
  %s6 = inlined_call_operand.vmem [shape: f32[1,32], index: 6, kind: input, shape index: {}]
  %s7 = inlined_call_operand.vmem [shape: f32[32,32], index: 7, kind: input, shape index: {}]
  %s8 = inlined_call_operand.vmem [shape: f32[32,64], index: 8, kind: input, shape index: {}]
  %s9 = inlined_call_operand.vmem [shape: f32[32,32], index: 9, kind: input, shape index: {}]
  %s10 = inlined_call_operand.vmem [shape: f32[1,32], index: 10, kind: input, shape index: {}]
  %s11 = inlined_call_operand.vmem [shape: f32[1,32], index: 11, kind: input, shape index: {}]
  %s12 = inlined_call_operand.vmem [shape: f32[32,64], index: 12, kind: input, shape index: {}]
  %s13 = inlined_call_operand.vmem [shape: f32[1,64], index: 13, kind: input, shape index: {}]
  %s14 = inlined_call_operand.vmem [shape: f32[64,32], index: 14, kind: input, shape index: {}]
  %s15 = inlined_call_operand.vmem [shape: f32[1,32], index: 15, kind: input, shape index: {}]
  %s16 = inlined_call_operand.vmem [shape: f32[1,32], index: 16, kind: input, shape index: {}]
  %s17 = inlined_call_operand.vmem [shape: f32[1,32], index: 17, kind: input, shape index: {}]
  %s18 = inlined_call_operand.vmem [shape: f32[2,8,32], index: 18, kind: output, shape index: {0}]
  %s19 = inlined_call_operand.hbm [shape: f32[2,4,8,8], index: 19, kind: output, shape index: {1}]
  %s20 = inlined_call_operand.hbm [shape: f32[2,4,8,8], index: 20, kind: output, shape index: {2}]
  %21 = xla_tuple %s18, %s19, %s20
  %s22 = sld [smem:[#allocation0]]
  $region117: #{transformer_decoder_forward.5} parent=0
    _
  %s24 = ssub.s32 1, %s22
  %s25 = scalar_select 0, %s24, %s22
  %s26 = sshll.u32 %s0, 4
  %s27 = int_to_ptr.vmem [resolvable:$true] %s26
  %29 = dma.vmem_to_smem %s27, 16, [#allocation3], [#allocation2]
  %30 = dma.done [#allocation2], 16
  %31 = sfence
  $region1: #{transformer_decoder_forward.5} parent=0
    #allocation4 [shape = 'u8[32768]{0}', space=vmem, size = 0x8000, scoped, tag = 'output window, operand 1']
    #allocation5 [shape = 's32[2]{0}', space=sflag, size = 0x8, scoped, tag = 'scoped memory for transformer_decoder_forward.5']
    #allocation6 [shape = 'u8[32768]{0}', space=vmem, size = 0x8000, scoped, tag = 'output window, operand 2']
    #allocation7 [shape = 's32[2]{0}', space=sflag, size = 0x8, scoped, tag = 'scoped memory for transformer_decoder_forward.5']
    %32 = vsyncpa [#allocation5], 0
    %s33 = scalar_lea.sflag [#allocation5], 1
    %34 = vsyncpa %s33, 0
    %35 = vsyncpa [#allocation7], 0
    %s36 = scalar_lea.sflag [#allocation7], 1
    %37 = vsyncpa %s36, 0
    loop: start=0, step=1, limit=4
    $region2: #{transformer_decoder_forward.5} parent=1 // loop_pre_header
      _
    $region3: #{transformer_decoder_forward.5} parent=1 // loop_header
      %s39 = sphi 0, %s43
      %p40 = scmp.ge.s32.totalorder %s39, 4
      %s49 = sphi 0, %s51
      %s52 = sphi 0, %s49
      %s53 = sphi 0, %s52
      %s69 = sphi 0, %s53
      %s75 = sphi 0, %s77
      %s78 = sphi 0, %s75
      %s79 = sphi 0, %s78
      %s95 = sphi 0, %s79
      %s99 = sphi 0, %s99
      %s101 = sphi 0, %s99
      %s102 = sphi 0, %s101
      %s116 = sphi 0, %s102
      %s120 = sphi 0, %s120
      %s122 = sphi 0, %s120
      %s123 = sphi 0, %s122
      %s137 = sphi 0, %s123
      %s141 = sphi 0, %s141
      %s143 = sphi 0, %s141
      %s144 = sphi 0, %s143
      %s158 = sphi 0, %s144
      %s162 = sphi 0, %s162
      %s164 = sphi 0, %s162
      %s165 = sphi 0, %s164
      %s179 = sphi 0, %s165
      %s183 = sphi 0, %s183
      %s185 = sphi 0, %s183
      %s186 = sphi 0, %s185
      %s200 = sphi 0, %s186
      %s204 = sphi 0, %s204
      %s206 = sphi 0, %s204
      %s207 = sphi 0, %s206
      %s221 = sphi 0, %s207
      %s225 = sphi 0, %s225
      %s227 = sphi 0, %s225
      %s228 = sphi 0, %s227
      %s242 = sphi 0, %s228
      %s246 = sphi 0, %s246
      %s248 = sphi 0, %s246
      %s249 = sphi 0, %s248
      %s263 = sphi 0, %s249
      %s267 = sphi 0, %s267
      %s269 = sphi 0, %s267
      %s270 = sphi 0, %s269
      %s284 = sphi 0, %s270
      %s288 = sphi 0, %s288
      %s290 = sphi 0, %s288
      %s291 = sphi 0, %s290
      %s305 = sphi 0, %s291
      %s309 = sphi 0, %s309
      %s311 = sphi 0, %s309
      %s312 = sphi 0, %s311
      %s326 = sphi 0, %s312
      %s330 = sphi 0, %s330
      %s332 = sphi 0, %s330
      %s333 = sphi 0, %s332
      %s347 = sphi 0, %s333
      %s351 = sphi 0, %s351
      %s353 = sphi 0, %s351
      %s354 = sphi 0, %s353
      %s368 = sphi 0, %s354
      %s372 = sphi 0, %s372
      %s374 = sphi 0, %s372
      %s375 = sphi 0, %s374
      %s389 = sphi 0, %s375
      %s393 = sphi 0, %s393
      %s395 = sphi 0, %s393
      %s396 = sphi 0, %s395
      %s410 = sphi 0, %s396
      %s416 = sphi 0, %s418
      %s419 = sphi 0, %s416
      %s420 = sphi 0, %s419
      %s436 = sphi 0, %s420
      %s442 = sphi 0, %s444
      %s445 = sphi 0, %s442
      %s446 = sphi 0, %s445
      %s462 = sphi 0, %s446
      %s468 = sphi 0, %s470
      %s471 = sphi 0, %s468
      %s472 = sphi 0, %s471
      %s488 = sphi 0, %s472
    $region4: #{transformer_decoder_forward.5} parent=1 // loop_header_branch
      %42 = sbr.rel (%p40) target = $region8
    $region5: #{transformer_decoder_forward.5} parent=1 // loop_body
      %s44 = ssub.s32 %s39, 1
      %s45 = ssub.s32 %s39, 2
      %s46 = sadd.s32 %s39, 1
      %s47 = ssub.s32 %s39, %s46
      %p48 = scmp.eq.s32.totalorder %s47, 0
      %s50 = sadd.s32 %s49, 1
      %s51 = scalar_select %p48, %s49, %s50
      %p54 = pneg %p48
      %p55 = scmp.eq.s32.totalorder %s39, 1
      %p56 = por %p54, %p55
      %p57 = scmp.ne.s32.totalorder %s49, %s52
      %p58 = scmp.eq.s32.totalorder %s39, 0
      %p59 = por %p57, %p58
      %p60 = scmp.ne.s32.totalorder %s49, %s52
      %p61 = scmp.eq.s32.totalorder %s44, 1
      %p62 = por %p60, %p61
      %p63 = scmp.ne.s32.totalorder %s52, %s53
      %p64 = scmp.eq.s32.totalorder %s44, 0
      %p65 = por %p63, %p64
      %p66 = scmp.ne.s32.totalorder %s52, %s53
      %p67 = scmp.eq.s32.totalorder %s45, 1
      %p68 = por %p66, %p67
      %p70 = scmp.ne.s32.totalorder %s53, %s69
      %p71 = scmp.eq.s32.totalorder %s45, 0
      %p72 = por %p70, %p71
      %s73 = ssub.s32 %s39, %s46
      %p74 = scmp.eq.s32.totalorder %s73, 0
      %s76 = sadd.s32 %s75, 1
      %s77 = scalar_select %p74, %s75, %s76
      %p80 = pneg %p74
      %p81 = scmp.eq.s32.totalorder %s39, 1
      %p82 = por %p80, %p81
      %p83 = scmp.ne.s32.totalorder %s75, %s78
      %p84 = scmp.eq.s32.totalorder %s39, 0
      %p85 = por %p83, %p84
      %p86 = scmp.ne.s32.totalorder %s75, %s78
      %p87 = scmp.eq.s32.totalorder %s44, 1
      %p88 = por %p86, %p87
      %p89 = scmp.ne.s32.totalorder %s78, %s79
      %p90 = scmp.eq.s32.totalorder %s44, 0
      %p91 = por %p89, %p90
      %p92 = scmp.ne.s32.totalorder %s78, %s79
      %p93 = scmp.eq.s32.totalorder %s45, 1
      %p94 = por %p92, %p93
      %p96 = scmp.ne.s32.totalorder %s79, %s95
      %p97 = scmp.eq.s32.totalorder %s45, 0
      %p98 = por %p96, %p97
      %s100 = sadd.s32 %s99, 1
      %p103 = scmp.eq.s32.totalorder %s39, 1
      %p104 = scmp.ne.s32.totalorder %s99, %s101
      %p105 = scmp.eq.s32.totalorder %s39, 0
      %p106 = por %p104, %p105
      %p107 = scmp.ne.s32.totalorder %s99, %s101
      %p108 = scmp.eq.s32.totalorder %s44, 1
      %p109 = por %p107, %p108
      %p110 = scmp.ne.s32.totalorder %s101, %s102
      %p111 = scmp.eq.s32.totalorder %s44, 0
      %p112 = por %p110, %p111
      %p113 = scmp.ne.s32.totalorder %s101, %s102
      %p114 = scmp.eq.s32.totalorder %s45, 1
      %p115 = por %p113, %p114
      %p117 = scmp.ne.s32.totalorder %s102, %s116
      %p118 = scmp.eq.s32.totalorder %s45, 0
      %p119 = por %p117, %p118
      %s121 = sadd.s32 %s120, 1
      %p124 = scmp.eq.s32.totalorder %s39, 1
      %p125 = scmp.ne.s32.totalorder %s120, %s122
      %p126 = scmp.eq.s32.totalorder %s39, 0
      %p127 = por %p125, %p126
      %p128 = scmp.ne.s32.totalorder %s120, %s122
      %p129 = scmp.eq.s32.totalorder %s44, 1
      %p130 = por %p128, %p129
      %p131 = scmp.ne.s32.totalorder %s122, %s123
      %p132 = scmp.eq.s32.totalorder %s44, 0
      %p133 = por %p131, %p132
      %p134 = scmp.ne.s32.totalorder %s122, %s123
      %p135 = scmp.eq.s32.totalorder %s45, 1
      %p136 = por %p134, %p135
      %p138 = scmp.ne.s32.totalorder %s123, %s137
      %p139 = scmp.eq.s32.totalorder %s45, 0
      %p140 = por %p138, %p139
      %s142 = sadd.s32 %s141, 1
      %p145 = scmp.eq.s32.totalorder %s39, 1
      %p146 = scmp.ne.s32.totalorder %s141, %s143
      %p147 = scmp.eq.s32.totalorder %s39, 0
      %p148 = por %p146, %p147
      %p149 = scmp.ne.s32.totalorder %s141, %s143
      %p150 = scmp.eq.s32.totalorder %s44, 1
      %p151 = por %p149, %p150
      %p152 = scmp.ne.s32.totalorder %s143, %s144
      %p153 = scmp.eq.s32.totalorder %s44, 0
      %p154 = por %p152, %p153
      %p155 = scmp.ne.s32.totalorder %s143, %s144
      %p156 = scmp.eq.s32.totalorder %s45, 1
      %p157 = por %p155, %p156
      %p159 = scmp.ne.s32.totalorder %s144, %s158
      %p160 = scmp.eq.s32.totalorder %s45, 0
      %p161 = por %p159, %p160
      %s163 = sadd.s32 %s162, 1
      %p166 = scmp.eq.s32.totalorder %s39, 1
      %p167 = scmp.ne.s32.totalorder %s162, %s164
      %p168 = scmp.eq.s32.totalorder %s39, 0
      %p169 = por %p167, %p168
      %p170 = scmp.ne.s32.totalorder %s162, %s164
      %p171 = scmp.eq.s32.totalorder %s44, 1
      %p172 = por %p170, %p171
      %p173 = scmp.ne.s32.totalorder %s164, %s165
      %p174 = scmp.eq.s32.totalorder %s44, 0
      %p175 = por %p173, %p174
      %p176 = scmp.ne.s32.totalorder %s164, %s165
      %p177 = scmp.eq.s32.totalorder %s45, 1
      %p178 = por %p176, %p177
      %p180 = scmp.ne.s32.totalorder %s165, %s179
      %p181 = scmp.eq.s32.totalorder %s45, 0
      %p182 = por %p180, %p181
      %s184 = sadd.s32 %s183, 1
      %p187 = scmp.eq.s32.totalorder %s39, 1
      %p188 = scmp.ne.s32.totalorder %s183, %s185
      %p189 = scmp.eq.s32.totalorder %s39, 0
      %p190 = por %p188, %p189
      %p191 = scmp.ne.s32.totalorder %s183, %s185
      %p192 = scmp.eq.s32.totalorder %s44, 1
      %p193 = por %p191, %p192
      %p194 = scmp.ne.s32.totalorder %s185, %s186
      %p195 = scmp.eq.s32.totalorder %s44, 0
      %p196 = por %p194, %p195
      %p197 = scmp.ne.s32.totalorder %s185, %s186
      %p198 = scmp.eq.s32.totalorder %s45, 1
      %p199 = por %p197, %p198
      %p201 = scmp.ne.s32.totalorder %s186, %s200
      %p202 = scmp.eq.s32.totalorder %s45, 0
      %p203 = por %p201, %p202
      %s205 = sadd.s32 %s204, 1
      %p208 = scmp.eq.s32.totalorder %s39, 1
      %p209 = scmp.ne.s32.totalorder %s204, %s206
      %p210 = scmp.eq.s32.totalorder %s39, 0
      %p211 = por %p209, %p210
      %p212 = scmp.ne.s32.totalorder %s204, %s206
      %p213 = scmp.eq.s32.totalorder %s44, 1
      %p214 = por %p212, %p213
      %p215 = scmp.ne.s32.totalorder %s206, %s207
      %p216 = scmp.eq.s32.totalorder %s44, 0
      %p217 = por %p215, %p216
      %p218 = scmp.ne.s32.totalorder %s206, %s207
      %p219 = scmp.eq.s32.totalorder %s45, 1
      %p220 = por %p218, %p219
      %p222 = scmp.ne.s32.totalorder %s207, %s221
      %p223 = scmp.eq.s32.totalorder %s45, 0
      %p224 = por %p222, %p223
      %s226 = sadd.s32 %s225, 1
      %p229 = scmp.eq.s32.totalorder %s39, 1
      %p230 = scmp.ne.s32.totalorder %s225, %s227
      %p231 = scmp.eq.s32.totalorder %s39, 0
      %p232 = por %p230, %p231
      %p233 = scmp.ne.s32.totalorder %s225, %s227
      %p234 = scmp.eq.s32.totalorder %s44, 1
      %p235 = por %p233, %p234
      %p236 = scmp.ne.s32.totalorder %s227, %s228
      %p237 = scmp.eq.s32.totalorder %s44, 0
      %p238 = por %p236, %p237
      %p239 = scmp.ne.s32.totalorder %s227, %s228
      %p240 = scmp.eq.s32.totalorder %s45, 1
      %p241 = por %p239, %p240
      %p243 = scmp.ne.s32.totalorder %s228, %s242
      %p244 = scmp.eq.s32.totalorder %s45, 0
      %p245 = por %p243, %p244
      %s247 = sadd.s32 %s246, 1
      %p250 = scmp.eq.s32.totalorder %s39, 1
      %p251 = scmp.ne.s32.totalorder %s246, %s248
      %p252 = scmp.eq.s32.totalorder %s39, 0
      %p253 = por %p251, %p252
      %p254 = scmp.ne.s32.totalorder %s246, %s248
      %p255 = scmp.eq.s32.totalorder %s44, 1
      %p256 = por %p254, %p255
      %p257 = scmp.ne.s32.totalorder %s248, %s249
      %p258 = scmp.eq.s32.totalorder %s44, 0
      %p259 = por %p257, %p258
      %p260 = scmp.ne.s32.totalorder %s248, %s249
      %p261 = scmp.eq.s32.totalorder %s45, 1
      %p262 = por %p260, %p261
      %p264 = scmp.ne.s32.totalorder %s249, %s263
      %p265 = scmp.eq.s32.totalorder %s45, 0
      %p266 = por %p264, %p265
      %s268 = sadd.s32 %s267, 1
      %p271 = scmp.eq.s32.totalorder %s39, 1
      %p272 = scmp.ne.s32.totalorder %s267, %s269
      %p273 = scmp.eq.s32.totalorder %s39, 0
      %p274 = por %p272, %p273
      %p275 = scmp.ne.s32.totalorder %s267, %s269
      %p276 = scmp.eq.s32.totalorder %s44, 1
      %p277 = por %p275, %p276
      %p278 = scmp.ne.s32.totalorder %s269, %s270
      %p279 = scmp.eq.s32.totalorder %s44, 0
      %p280 = por %p278, %p279
      %p281 = scmp.ne.s32.totalorder %s269, %s270
      %p282 = scmp.eq.s32.totalorder %s45, 1
      %p283 = por %p281, %p282
      %p285 = scmp.ne.s32.totalorder %s270, %s284
      %p286 = scmp.eq.s32.totalorder %s45, 0
      %p287 = por %p285, %p286
      %s289 = sadd.s32 %s288, 1
      %p292 = scmp.eq.s32.totalorder %s39, 1
      %p293 = scmp.ne.s32.totalorder %s288, %s290
      %p294 = scmp.eq.s32.totalorder %s39, 0
      %p295 = por %p293, %p294
      %p296 = scmp.ne.s32.totalorder %s288, %s290
      %p297 = scmp.eq.s32.totalorder %s44, 1
      %p298 = por %p296, %p297
      %p299 = scmp.ne.s32.totalorder %s290, %s291
      %p300 = scmp.eq.s32.totalorder %s44, 0
      %p301 = por %p299, %p300
      %p302 = scmp.ne.s32.totalorder %s290, %s291
      %p303 = scmp.eq.s32.totalorder %s45, 1
      %p304 = por %p302, %p303
      %p306 = scmp.ne.s32.totalorder %s291, %s305
      %p307 = scmp.eq.s32.totalorder %s45, 0
      %p308 = por %p306, %p307
      %s310 = sadd.s32 %s309, 1
      %p313 = scmp.eq.s32.totalorder %s39, 1
      %p314 = scmp.ne.s32.totalorder %s309, %s311
      %p315 = scmp.eq.s32.totalorder %s39, 0
      %p316 = por %p314, %p315
      %p317 = scmp.ne.s32.totalorder %s309, %s311
      %p318 = scmp.eq.s32.totalorder %s44, 1
      %p319 = por %p317, %p318
      %p320 = scmp.ne.s32.totalorder %s311, %s312
      %p321 = scmp.eq.s32.totalorder %s44, 0
      %p322 = por %p320, %p321
      %p323 = scmp.ne.s32.totalorder %s311, %s312
      %p324 = scmp.eq.s32.totalorder %s45, 1
      %p325 = por %p323, %p324
      %p327 = scmp.ne.s32.totalorder %s312, %s326
      %p328 = scmp.eq.s32.totalorder %s45, 0
      %p329 = por %p327, %p328
      %s331 = sadd.s32 %s330, 1
      %p334 = scmp.eq.s32.totalorder %s39, 1
      %p335 = scmp.ne.s32.totalorder %s330, %s332
      %p336 = scmp.eq.s32.totalorder %s39, 0
      %p337 = por %p335, %p336
      %p338 = scmp.ne.s32.totalorder %s330, %s332
      %p339 = scmp.eq.s32.totalorder %s44, 1
      %p340 = por %p338, %p339
      %p341 = scmp.ne.s32.totalorder %s332, %s333
      %p342 = scmp.eq.s32.totalorder %s44, 0
      %p343 = por %p341, %p342
      %p344 = scmp.ne.s32.totalorder %s332, %s333
      %p345 = scmp.eq.s32.totalorder %s45, 1
      %p346 = por %p344, %p345
      %p348 = scmp.ne.s32.totalorder %s333, %s347
      %p349 = scmp.eq.s32.totalorder %s45, 0
      %p350 = por %p348, %p349
      %s352 = sadd.s32 %s351, 1
      %p355 = scmp.eq.s32.totalorder %s39, 1
      %p356 = scmp.ne.s32.totalorder %s351, %s353
      %p357 = scmp.eq.s32.totalorder %s39, 0
      %p358 = por %p356, %p357
      %p359 = scmp.ne.s32.totalorder %s351, %s353
      %p360 = scmp.eq.s32.totalorder %s44, 1
      %p361 = por %p359, %p360
      %p362 = scmp.ne.s32.totalorder %s353, %s354
      %p363 = scmp.eq.s32.totalorder %s44, 0
      %p364 = por %p362, %p363
      %p365 = scmp.ne.s32.totalorder %s353, %s354
      %p366 = scmp.eq.s32.totalorder %s45, 1
      %p367 = por %p365, %p366
      %p369 = scmp.ne.s32.totalorder %s354, %s368
      %p370 = scmp.eq.s32.totalorder %s45, 0
      %p371 = por %p369, %p370
      %s373 = sadd.s32 %s372, 1
      %p376 = scmp.eq.s32.totalorder %s39, 1
      %p377 = scmp.ne.s32.totalorder %s372, %s374
      %p378 = scmp.eq.s32.totalorder %s39, 0
      %p379 = por %p377, %p378
      %p380 = scmp.ne.s32.totalorder %s372, %s374
      %p381 = scmp.eq.s32.totalorder %s44, 1
      %p382 = por %p380, %p381
      %p383 = scmp.ne.s32.totalorder %s374, %s375
      %p384 = scmp.eq.s32.totalorder %s44, 0
      %p385 = por %p383, %p384
      %p386 = scmp.ne.s32.totalorder %s374, %s375
      %p387 = scmp.eq.s32.totalorder %s45, 1
      %p388 = por %p386, %p387
      %p390 = scmp.ne.s32.totalorder %s375, %s389
      %p391 = scmp.eq.s32.totalorder %s45, 0
      %p392 = por %p390, %p391
      %s394 = sadd.s32 %s393, 1
      %p397 = scmp.eq.s32.totalorder %s39, 1
      %p398 = scmp.ne.s32.totalorder %s393, %s395
      %p399 = scmp.eq.s32.totalorder %s39, 0
      %p400 = por %p398, %p399
      %p401 = scmp.ne.s32.totalorder %s393, %s395
      %p402 = scmp.eq.s32.totalorder %s44, 1
      %p403 = por %p401, %p402
      %p404 = scmp.ne.s32.totalorder %s395, %s396
      %p405 = scmp.eq.s32.totalorder %s44, 0
      %p406 = por %p404, %p405
      %p407 = scmp.ne.s32.totalorder %s395, %s396
      %p408 = scmp.eq.s32.totalorder %s45, 1
      %p409 = por %p407, %p408
      %p411 = scmp.ne.s32.totalorder %s396, %s410
      %p412 = scmp.eq.s32.totalorder %s45, 0
      %p413 = por %p411, %p412
      %s414 = ssub.s32 %s39, %s46
      %p415 = scmp.eq.s32.totalorder %s414, 0
      %s417 = sadd.s32 %s416, 1
      %s418 = scalar_select %p415, %s416, %s417
      %p421 = pneg %p415
      %p422 = scmp.eq.s32.totalorder %s39, 1
      %p423 = por %p421, %p422
      %p424 = scmp.ne.s32.totalorder %s416, %s419
      %p425 = scmp.eq.s32.totalorder %s39, 0
      %p426 = por %p424, %p425
      %p427 = scmp.ne.s32.totalorder %s416, %s419
      %p428 = scmp.eq.s32.totalorder %s44, 1
      %p429 = por %p427, %p428
      %p430 = scmp.ne.s32.totalorder %s419, %s420
      %p431 = scmp.eq.s32.totalorder %s44, 0
      %p432 = por %p430, %p431
      %p433 = scmp.ne.s32.totalorder %s419, %s420
      %p434 = scmp.eq.s32.totalorder %s45, 1
      %p435 = por %p433, %p434
      %p437 = scmp.ne.s32.totalorder %s420, %s436
      %p438 = scmp.eq.s32.totalorder %s45, 0
      %p439 = por %p437, %p438
      %s440 = ssub.s32 %s39, %s46
      %p441 = scmp.eq.s32.totalorder %s440, 0
      %s443 = sadd.s32 %s442, 1
      %s444 = scalar_select %p441, %s442, %s443
      %p447 = pneg %p441
      %p448 = scmp.eq.s32.totalorder %s39, 1
      %p449 = por %p447, %p448
      %p450 = scmp.ne.s32.totalorder %s442, %s445
      %p451 = scmp.eq.s32.totalorder %s39, 0
      %p452 = por %p450, %p451
      %p453 = scmp.ne.s32.totalorder %s442, %s445
      %p454 = scmp.eq.s32.totalorder %s44, 1
      %p455 = por %p453, %p454
      %p456 = scmp.ne.s32.totalorder %s445, %s446
      %p457 = scmp.eq.s32.totalorder %s44, 0
      %p458 = por %p456, %p457
      %p459 = scmp.ne.s32.totalorder %s445, %s446
      %p460 = scmp.eq.s32.totalorder %s45, 1
      %p461 = por %p459, %p460
      %p463 = scmp.ne.s32.totalorder %s446, %s462
      %p464 = scmp.eq.s32.totalorder %s45, 0
      %p465 = por %p463, %p464
      %s466 = ssub.s32 %s39, %s46
      %p467 = scmp.eq.s32.totalorder %s466, 0
      %s469 = sadd.s32 %s468, 1
      %s470 = scalar_select %p467, %s468, %s469
      %p473 = pneg %p467
      %p474 = scmp.eq.s32.totalorder %s39, 1
      %p475 = por %p473, %p474
      %p476 = scmp.ne.s32.totalorder %s468, %s471
      %p477 = scmp.eq.s32.totalorder %s39, 0
      %p478 = por %p476, %p477
      %p479 = scmp.ne.s32.totalorder %s468, %s471
      %p480 = scmp.eq.s32.totalorder %s44, 1
      %p481 = por %p479, %p480
      %p482 = scmp.ne.s32.totalorder %s471, %s472
      %p483 = scmp.eq.s32.totalorder %s44, 0
      %p484 = por %p482, %p483
      %p485 = scmp.ne.s32.totalorder %s471, %s472
      %p486 = scmp.eq.s32.totalorder %s45, 1
      %p487 = por %p485, %p486
      %p489 = scmp.ne.s32.totalorder %s472, %s488
      %p490 = scmp.eq.s32.totalorder %s45, 0
      %p491 = por %p489, %p490
      %p492 = scmp.le.s32.totalorder 1, %s39
      %p493 = scmp.lt.s32.totalorder %s39, 3
      %p494 = pnand %p492, %p493
      %p495 = pneg %p494
      // Predicated region
      $region9: #{transformer_decoder_forward.5} parent=5 // pred_check
        _
      $region10: #{transformer_decoder_forward.5} parent=5 // pred_check_branch
        %497 = sbr.rel (%p494) target = $region12
      $region11: #{transformer_decoder_forward.5} parent=5 // pred_region
        %s498 = ssub.s32 %s39, 1
        // Predicated region
        $region13: #{transformer_decoder_forward.5} parent=11 // pred_check
          %p499 = pneg %p112
        $region14: #{transformer_decoder_forward.5} parent=11 // pred_check_branch
          %501 = sbr.rel (%p499) target = $region16
        $region15: #{transformer_decoder_forward.5} parent=11 // pred_region
          _
        $region16: #{transformer_decoder_forward.5} parent=11 // pred_fallthru
          _
        // Predicated region
        $region17: #{transformer_decoder_forward.5} parent=11 // pred_check
          %p502 = pneg %p133
        $region18: #{transformer_decoder_forward.5} parent=11 // pred_check_branch
          %504 = sbr.rel (%p502) target = $region20
        $region19: #{transformer_decoder_forward.5} parent=11 // pred_region
          _
        $region20: #{transformer_decoder_forward.5} parent=11 // pred_fallthru
          _
        // Predicated region
        $region21: #{transformer_decoder_forward.5} parent=11 // pred_check
          %p505 = pneg %p154
        $region22: #{transformer_decoder_forward.5} parent=11 // pred_check_branch
          %507 = sbr.rel (%p505) target = $region24
        $region23: #{transformer_decoder_forward.5} parent=11 // pred_region
          _
        $region24: #{transformer_decoder_forward.5} parent=11 // pred_fallthru
          _
        // Predicated region
        $region25: #{transformer_decoder_forward.5} parent=11 // pred_check
          %p508 = pneg %p175
        $region26: #{transformer_decoder_forward.5} parent=11 // pred_check_branch
          %510 = sbr.rel (%p508) target = $region28
        $region27: #{transformer_decoder_forward.5} parent=11 // pred_region
          _
        $region28: #{transformer_decoder_forward.5} parent=11 // pred_fallthru
          _
        // Predicated region
        $region29: #{transformer_decoder_forward.5} parent=11 // pred_check
          %p511 = pneg %p196
        $region30: #{transformer_decoder_forward.5} parent=11 // pred_check_branch
          %513 = sbr.rel (%p511) target = $region32
        $region31: #{transformer_decoder_forward.5} parent=11 // pred_region
          _
        $region32: #{transformer_decoder_forward.5} parent=11 // pred_fallthru
          _
        // Predicated region
        $region33: #{transformer_decoder_forward.5} parent=11 // pred_check
          %p514 = pneg %p217
        $region34: #{transformer_decoder_forward.5} parent=11 // pred_check_branch
          %516 = sbr.rel (%p514) target = $region36
        $region35: #{transformer_decoder_forward.5} parent=11 // pred_region
          _
        $region36: #{transformer_decoder_forward.5} parent=11 // pred_fallthru
          _
        // Predicated region
        $region37: #{transformer_decoder_forward.5} parent=11 // pred_check
          %p517 = pneg %p238
        $region38: #{transformer_decoder_forward.5} parent=11 // pred_check_branch
          %519 = sbr.rel (%p517) target = $region40
        $region39: #{transformer_decoder_forward.5} parent=11 // pred_region
          _
        $region40: #{transformer_decoder_forward.5} parent=11 // pred_fallthru
          _
        // Predicated region
        $region41: #{transformer_decoder_forward.5} parent=11 // pred_check
          %p520 = pneg %p259
        $region42: #{transformer_decoder_forward.5} parent=11 // pred_check_branch
          %522 = sbr.rel (%p520) target = $region44
        $region43: #{transformer_decoder_forward.5} parent=11 // pred_region
          _
        $region44: #{transformer_decoder_forward.5} parent=11 // pred_fallthru
          _
        // Predicated region
        $region45: #{transformer_decoder_forward.5} parent=11 // pred_check
          %p523 = pneg %p280
        $region46: #{transformer_decoder_forward.5} parent=11 // pred_check_branch
          %525 = sbr.rel (%p523) target = $region48
        $region47: #{transformer_decoder_forward.5} parent=11 // pred_region
          _
        $region48: #{transformer_decoder_forward.5} parent=11 // pred_fallthru
          _
        // Predicated region
        $region49: #{transformer_decoder_forward.5} parent=11 // pred_check
          %p526 = pneg %p301
        $region50: #{transformer_decoder_forward.5} parent=11 // pred_check_branch
          %528 = sbr.rel (%p526) target = $region52
        $region51: #{transformer_decoder_forward.5} parent=11 // pred_region
          _
        $region52: #{transformer_decoder_forward.5} parent=11 // pred_fallthru
          _
        // Predicated region
        $region53: #{transformer_decoder_forward.5} parent=11 // pred_check
          %p529 = pneg %p322
        $region54: #{transformer_decoder_forward.5} parent=11 // pred_check_branch
          %531 = sbr.rel (%p529) target = $region56
        $region55: #{transformer_decoder_forward.5} parent=11 // pred_region
          _
        $region56: #{transformer_decoder_forward.5} parent=11 // pred_fallthru
          _
        // Predicated region
        $region57: #{transformer_decoder_forward.5} parent=11 // pred_check
          %p532 = pneg %p343
        $region58: #{transformer_decoder_forward.5} parent=11 // pred_check_branch
          %534 = sbr.rel (%p532) target = $region60
        $region59: #{transformer_decoder_forward.5} parent=11 // pred_region
          _
        $region60: #{transformer_decoder_forward.5} parent=11 // pred_fallthru
          _
        // Predicated region
        $region61: #{transformer_decoder_forward.5} parent=11 // pred_check
          %p535 = pneg %p364
        $region62: #{transformer_decoder_forward.5} parent=11 // pred_check_branch
          %537 = sbr.rel (%p535) target = $region64
        $region63: #{transformer_decoder_forward.5} parent=11 // pred_region
          _
        $region64: #{transformer_decoder_forward.5} parent=11 // pred_fallthru
          _
        // Predicated region
        $region65: #{transformer_decoder_forward.5} parent=11 // pred_check
          %p538 = pneg %p385
        $region66: #{transformer_decoder_forward.5} parent=11 // pred_check_branch
          %540 = sbr.rel (%p538) target = $region68
        $region67: #{transformer_decoder_forward.5} parent=11 // pred_region
          _
        $region68: #{transformer_decoder_forward.5} parent=11 // pred_fallthru
          _
        // Predicated region
        $region69: #{transformer_decoder_forward.5} parent=11 // pred_check
          %p541 = pneg %p406
        $region70: #{transformer_decoder_forward.5} parent=11 // pred_check_branch
          %543 = sbr.rel (%p541) target = $region72
        $region71: #{transformer_decoder_forward.5} parent=11 // pred_region
          _
        $region72: #{transformer_decoder_forward.5} parent=11 // pred_fallthru
          _
      $region12: #{transformer_decoder_forward.5} parent=5 // pred_fallthru
        _
      %p544 = scmp.lt.s32.totalorder %s39, 2
      // Predicated region
      $region73: #{transformer_decoder_forward.5} parent=5 // pred_check
        %p545 = pneg %p544
      $region74: #{transformer_decoder_forward.5} parent=5 // pred_check_branch
        %547 = sbr.rel (%p545) target = $region76
      $region75: #{transformer_decoder_forward.5} parent=5 // pred_region
        // Predicated region
        $region77: #{transformer_decoder_forward.5} parent=75 // pred_check
          %p548 = pneg %p59
        $region78: #{transformer_decoder_forward.5} parent=75 // pred_check_branch
          %550 = sbr.rel (%p548) target = $region80
        $region79: #{transformer_decoder_forward.5} parent=75 // pred_region
          %p551 = scmp.lt.s32.totalorder %s39, 1
          %s552 = scalar_select %p551, %s39, 1
          %s553 = smul.addr %s552, 8
          %s554 = scalar_lea.vmem %s1, %s553
        $region80: #{transformer_decoder_forward.5} parent=75 // pred_fallthru
          _
        // Predicated region
        $region81: #{transformer_decoder_forward.5} parent=75 // pred_check
          %p555 = pneg %p85
        $region82: #{transformer_decoder_forward.5} parent=75 // pred_check_branch
          %557 = sbr.rel (%p555) target = $region84
        $region83: #{transformer_decoder_forward.5} parent=75 // pred_region
          %p558 = scmp.lt.s32.totalorder %s39, 1
          %s559 = scalar_select %p558, %s39, 1
          %s560 = smul.addr %s559, 8
          %s561 = scalar_lea.vmem %s2, %s560
        $region84: #{transformer_decoder_forward.5} parent=75 // pred_fallthru
          _
      $region76: #{transformer_decoder_forward.5} parent=5 // pred_fallthru
        _
      %p562 = scmp.le.s32.totalorder 1, %s39
      %p563 = scmp.lt.s32.totalorder %s39, 3
      %p564 = pnand %p562, %p563
      %p565 = pneg %p564
      // Predicated region
      $region85: #{transformer_decoder_forward.5} parent=5 // pred_check
        _
      $region86: #{transformer_decoder_forward.5} parent=5 // pred_check_branch
        %567 = sbr.rel (%p564) target = $region88
      $region87: #{transformer_decoder_forward.5} parent=5 // pred_region
        %s568 = ssub.s32 %s39, 1
        %p569 = scmp.lt.s32.totalorder %s44, 1
        %s570 = scalar_select %p569, %s44, 1
        %s571 = smul.addr %s570, 8
        %s572 = scalar_lea.vmem %s1, %s571
        %p573 = pneg %p65
        %p574 = pneg %p62
        %p575 = scmp.lt.s32.totalorder %s44, 1
        %s576 = scalar_select %p575, %s44, 1
        %s577 = smul.addr %s576, 8
        %s578 = scalar_lea.vmem %s2, %s577
        %p579 = pneg %p91
        %p580 = pneg %p88
        %p581 = pneg %p112
        %p582 = pneg %p109
        %p583 = pneg %p133
        %p584 = pneg %p130
        %p585 = pneg %p154
        %p586 = pneg %p151
        %p587 = pneg %p175
        %p588 = pneg %p172
        %p589 = pneg %p196
        %p590 = pneg %p193
        %p591 = pneg %p217
        %p592 = pneg %p214
        %p593 = pneg %p238
        %p594 = pneg %p235
        %p595 = pneg %p259
        %p596 = pneg %p256
        %p597 = pneg %p280
        %p598 = pneg %p277
        %p599 = pneg %p301
        %p600 = pneg %p298
        %p601 = pneg %p322
        %p602 = pneg %p319
        %p603 = pneg %p343
        %p604 = pneg %p340
        %p605 = pneg %p364
        %p606 = pneg %p361
        %p607 = pneg %p385
        %p608 = pneg %p382
        %p609 = pneg %p406
        %p610 = pneg %p403
        %p611 = pneg %p432
        %p612 = pneg %p429
        %p613 = scmp.lt.s32.totalorder %s44, 1
        %s614 = scalar_select %p613, %s44, 1
        %s615 = smul.addr %s614, 8
        %s616 = scalar_lea.vmem %s18, %s615
        %p617 = pneg %p458
        %p618 = pneg %p455
        %s619 = sand.u32 %s445, 1
        %s620 = scalar_lea.sflag [#allocation5], %s619
        %s621 = sand.u32 %s445, 1
        %s622 = smul.addr %s621, 32
        %s623 = scalar_lea.vmem [#allocation4], %s622
        %p624 = pneg %p484
        %p625 = pneg %p481
        %s626 = sand.u32 %s471, 1
        %s627 = scalar_lea.sflag [#allocation7], %s626
        %s628 = sand.u32 %s471, 1
        %s629 = smul.addr %s628, 32
        %s630 = scalar_lea.vmem [#allocation6], %s629
        %p631 = scmp.lt.s32.totalorder %s44, 1
        %s632 = scalar_select %p631, %s44, 1
        %s633 = smul.addr %s632, 8
        %s634 = scalar_lea.vmem %s1, %s633
        %p635 = scmp.lt.s32.totalorder %s44, 1
        %s636 = scalar_select %p635, %s44, 1
        %s637 = smul.addr %s636, 8
        %s638 = scalar_lea.vmem %s2, %s637
        %p639 = scmp.lt.s32.totalorder %s44, 1
        %s640 = scalar_select %p639, %s44, 1
        %s641 = smul.addr %s640, 8
        %s642 = scalar_lea.vmem %s18, %s641
        %v643 = vld [vmem:[%s634] sm:$0xff]
        %v644 = vld [vmem:[%s638] sm:$0xff]
        %v645 = vld [vmem:[%s3] sm:$0xff]
        %v646 = vld [vmem:[%s3 + $0x8] sm:$0xff]
        %v647 = vld [vmem:[%s3 + $0x10] sm:$0xff]
        %v648 = vld [vmem:[%s3 + $0x18] sm:$0xff]
        %vm649 = vcmask 261120
        %v651 = vsel %vm649, %v643, 0
        %653 = vmatprep.subr.mxu0 0.0
        %654 = vmatpush1.msra.mxu0 %v645
        %655 = vmatprep.subr.mxu0 0.0
        %656 = vmatpush1.msra.mxu0 %v646
        %657 = vmatprep.subr.mxu0 0.0
        %658 = vmatpush1.msra.mxu0 %v647
        %659 = vmatprep.subr.mxu0 0.0
        %660 = vmatpush1.msra.mxu0 %v648
        %661 = vmatprep.subr.mxu0 0.0
        %662 = vmatpush1.msra.mxu0 0.0
        %663 = vmatprep.subr.mxu0 0.0
        %664 = vmatpush1.msra.mxu0 0.0
        %665 = vmatprep.subr.mxu0 0.0
        %666 = vmatpush1.msra.mxu0 0.0
        %667 = vmatprep.subr.mxu0 0.0
        %668 = vmatpush1.msra.mxu0 0.0
        %669 = vmatprep.subr.mxu0 0.0
        %670 = vmatpush1.msra.mxu0 0.0
        %671 = vmatprep.subr.mxu0 0.0
        %672 = vmatpush1.msra.mxu0 0.0
        %673 = vmatprep.subr.mxu0 0.0
        %674 = vmatpush1.msra.mxu0 0.0
        %675 = vmatprep.subr.mxu0 0.0
        %676 = vmatpush1.msra.mxu0 0.0
        %677 = vmatprep.subr.mxu0 0.0
        %678 = vmatpush1.msra.mxu0 0.0
        %679 = vmatprep.subr.mxu0 0.0
        %680 = vmatpush1.msra.mxu0 0.0
        %681 = vmatprep.subr.mxu0 0.0
        %682 = vmatpush1.msra.mxu0 0.0
        %683 = vmatprep.subr.mxu0 0.0
        %684 = vmatpush1.msra.mxu0 0.0
        %685 = vmatprep.subr.mxu0 0.0
        %686 = vmatpush1.msra.mxu0 0.0
        %687 = vmatprep.subr.mxu0 0.0
        %688 = vmatpush1.msra.mxu0 0.0
        %689 = vmatprep.subr.mxu0 0.0
        %690 = vmatpush1.msra.mxu0 0.0
        %691 = vmatprep.subr.mxu0 0.0
        %692 = vmatpush1.msra.mxu0 0.0
        %693 = vmatprep.subr.mxu0 0.0
        %694 = vmatpush1.msra.mxu0 0.0
        %695 = vmatprep.subr.mxu0 0.0
        %696 = vmatpush1.msra.mxu0 0.0
        %697 = vmatprep.subr.mxu0 0.0
        %698 = vmatpush1.msra.mxu0 0.0
        %699 = vmatprep.subr.mxu0 0.0
        %700 = vmatpush1.msra.mxu0 0.0
        %701 = vmatprep.subr.mxu0 0.0
        %702 = vmatpush1.msra.mxu0 0.0
        %703 = vmatprep.subr.mxu0 0.0
        %704 = vmatpush1.msra.mxu0 0.0
        %705 = vmatprep.subr.mxu0 0.0
        %706 = vmatpush1.msra.mxu0 0.0
        %707 = vmatprep.subr.mxu0 0.0
        %708 = vmatpush1.msra.mxu0 0.0
        %709 = vmatprep.subr.mxu0 0.0
        %710 = vmatpush1.msra.mxu0 0.0
        %711 = vmatprep.subr.mxu0 0.0
        %712 = vmatpush1.msra.mxu0 0.0
        %713 = vmatprep.subr.mxu0 0.0
        %714 = vmatpush1.msra.mxu0 0.0
        %715 = vmatprep.subr.mxu0 0.0
        %716 = vmatpush1.msra.mxu0 0.0
        %717 = vmatprep.mubr.f32.mxu0 0.0
        %718 = vmatmul.mubr.f32.gmra.mrb[0].mxu0 %v651
        %v719 = vpop.f32.mrb[0].mxu0
        %v720 = vadd.f32 0.0, %v719
        %v721 = vpop.f32.mrb[0].mxu0
        %722 = vdwg.mxu0
        %v723 = vlaneseq
        %v724 = vshrl.u32 %v723, 7
        %v725 = vadd.s32 %v724, 1
        %727 = vrot.lane.b32.xlu0 %v720, 96
        %v728 = vpop.permute.xlu0 %727
        %vm729 = vcmask 64512
        %v730 = vsel %vm729, %v720, 0
        %v732 = vsel %vm729, %v728, 0
        %734 = vmatprep.subr.mxu0 0.0
        %735 = vmatpush1.xpose.msra.mxu0 %v732
        %736 = vmatprep.subr.mxu0 0.0
        %737 = vmatpush1.xpose.msra.mxu0 0.0
        %738 = vmatprep.subr.mxu0 0.0
        %739 = vmatpush1.xpose.msra.mxu0 0.0
        %740 = vmatprep.subr.mxu0 0.0
        %741 = vmatpush1.xpose.msra.mxu0 0.0
        %742 = vmatprep.subr.mxu0 0.0
        %743 = vmatpush1.xpose.msra.mxu0 0.0
        %744 = vmatprep.subr.mxu0 0.0
        %745 = vmatpush1.xpose.msra.mxu0 0.0
        %746 = vmatprep.subr.mxu0 0.0
        %747 = vmatpush1.xpose.msra.mxu0 0.0
        %748 = vmatprep.subr.mxu0 0.0
        %749 = vmatpush1.xpose.msra.mxu0 0.0
        %750 = vmatprep.subr.mxu0 0.0
        %751 = vmatpush1.xpose.msra.mxu0 0.0
        %752 = vmatprep.subr.mxu0 0.0
        %753 = vmatpush1.xpose.msra.mxu0 0.0
        %754 = vmatprep.subr.mxu0 0.0
        %755 = vmatpush1.xpose.msra.mxu0 0.0
        %756 = vmatprep.subr.mxu0 0.0
        %757 = vmatpush1.xpose.msra.mxu0 0.0
        %758 = vmatprep.subr.mxu0 0.0
        %759 = vmatpush1.xpose.msra.mxu0 0.0
        %760 = vmatprep.subr.mxu0 0.0
        %761 = vmatpush1.xpose.msra.mxu0 0.0
        %762 = vmatprep.subr.mxu0 0.0
        %763 = vmatpush1.xpose.msra.mxu0 0.0
        %764 = vmatprep.subr.mxu0 0.0
        %765 = vmatpush1.xpose.msra.mxu0 0.0
        %766 = vmatprep.subr.mxu0 0.0
        %767 = vmatpush1.xpose.msra.mxu0 0.0
        %768 = vmatprep.subr.mxu0 0.0
        %769 = vmatpush1.xpose.msra.mxu0 0.0
        %770 = vmatprep.subr.mxu0 0.0
        %771 = vmatpush1.xpose.msra.mxu0 0.0
        %772 = vmatprep.subr.mxu0 0.0
        %773 = vmatpush1.xpose.msra.mxu0 0.0
        %774 = vmatprep.subr.mxu0 0.0
        %775 = vmatpush1.xpose.msra.mxu0 0.0
        %776 = vmatprep.subr.mxu0 0.0
        %777 = vmatpush1.xpose.msra.mxu0 0.0
        %778 = vmatprep.subr.mxu0 0.0
        %779 = vmatpush1.xpose.msra.mxu0 0.0
        %780 = vmatprep.subr.mxu0 0.0
        %781 = vmatpush1.xpose.msra.mxu0 0.0
        %782 = vmatprep.subr.mxu0 0.0
        %783 = vmatpush1.xpose.msra.mxu0 0.0
        %784 = vmatprep.subr.mxu0 0.0
        %785 = vmatpush1.xpose.msra.mxu0 0.0
        %786 = vmatprep.subr.mxu0 0.0
        %787 = vmatpush1.xpose.msra.mxu0 0.0
        %788 = vmatprep.subr.mxu0 0.0
        %789 = vmatpush1.xpose.msra.mxu0 0.0
        %790 = vmatprep.subr.mxu0 0.0
        %791 = vmatpush1.xpose.msra.mxu0 0.0
        %792 = vmatprep.subr.mxu0 0.0
        %793 = vmatpush1.xpose.msra.mxu0 0.0
        %794 = vmatprep.subr.mxu0 0.0
        %795 = vmatpush1.xpose.msra.mxu0 0.0
        %796 = vmatprep.subr.mxu0 0.0
        %797 = vmatpush1.xpose.msra.mxu0 0.0
        %798 = vmatprep.mubr.f32.mxu0 0.0
        %799 = vmatmul.mubr.f32.gmra.mrb[0].mxu0 %v730
        %v800 = vpop.f32.mrb[0].mxu0
        %v801 = vadd.f32 0.0, %v800
        %v802 = vpop.f32.mrb[0].mxu0
        %803 = vdwg.mxu0
        %v804 = vmul.f32 %v801, 0.35355338
        %v805 = vlaneseq
        %v806 = vand.u32 %v805, 127
        %vm807 = vcmp.lt.s32.totalorder %v806, %v725
        %v808 = vsel %vm807, %v804, -1000000.0
        %v809 = vsel %vm729, %v808, -inf
        %810 = vmax.xlane.f32.xlu0 %v809
        %v811 = vpop.xlane.xlu0 %810
        %v812 = vsub.f32 %v808, %v811
        %v813 = vmul.f32 %v812, 1.442695
        %v814 = vpow.pop %v813
        %v815 = vsel %vm729, %v814, 0.0
        %816 = vadd.xlane.f32.xlu0 %v815
        %v817 = vpop.xlane.xlu0 %816
        %v818 = vrcp.pop %v817
        %v819 = vmul.f32 %v814, %v818
        %820 = vst.msk [vmem:[%s623] sm:$0xff] %vm729, %v819
        %821 = vrot.lane.b32.xlu0 %v720, 64
        %v822 = vpop.permute.xlu0 %821
        %v825 = vsel %vm729, %v819, 0
        %827 = vmatprep.subr.mxu0 0.0
        %828 = vmatpush1.msra.mxu0 %v822
        %829 = vmatprep.subr.mxu0 0.0
        %830 = vmatpush1.msra.mxu0 0.0
        %831 = vmatprep.subr.mxu0 0.0
        %832 = vmatpush1.msra.mxu0 0.0
        %833 = vmatprep.subr.mxu0 0.0
        %834 = vmatpush1.msra.mxu0 0.0
        %835 = vmatprep.subr.mxu0 0.0
        %836 = vmatpush1.msra.mxu0 0.0
        %837 = vmatprep.subr.mxu0 0.0
        %838 = vmatpush1.msra.mxu0 0.0
        %839 = vmatprep.subr.mxu0 0.0
        %840 = vmatpush1.msra.mxu0 0.0
        %841 = vmatprep.subr.mxu0 0.0
        %842 = vmatpush1.msra.mxu0 0.0
        %843 = vmatprep.subr.mxu0 0.0
        %844 = vmatpush1.msra.mxu0 0.0
        %845 = vmatprep.subr.mxu0 0.0
        %846 = vmatpush1.msra.mxu0 0.0
        %847 = vmatprep.subr.mxu0 0.0
        %848 = vmatpush1.msra.mxu0 0.0
        %849 = vmatprep.subr.mxu0 0.0
        %850 = vmatpush1.msra.mxu0 0.0
        %851 = vmatprep.subr.mxu0 0.0
        %852 = vmatpush1.msra.mxu0 0.0
        %853 = vmatprep.subr.mxu0 0.0
        %854 = vmatpush1.msra.mxu0 0.0
        %855 = vmatprep.subr.mxu0 0.0
        %856 = vmatpush1.msra.mxu0 0.0
        %857 = vmatprep.subr.mxu0 0.0
        %858 = vmatpush1.msra.mxu0 0.0
        %859 = vmatprep.subr.mxu0 0.0
        %860 = vmatpush1.msra.mxu0 0.0
        %861 = vmatprep.subr.mxu0 0.0
        %862 = vmatpush1.msra.mxu0 0.0
        %863 = vmatprep.subr.mxu0 0.0
        %864 = vmatpush1.msra.mxu0 0.0
        %865 = vmatprep.subr.mxu0 0.0
        %866 = vmatpush1.msra.mxu0 0.0
        %867 = vmatprep.subr.mxu0 0.0
        %868 = vmatpush1.msra.mxu0 0.0
        %869 = vmatprep.subr.mxu0 0.0
        %870 = vmatpush1.msra.mxu0 0.0
        %871 = vmatprep.subr.mxu0 0.0
        %872 = vmatpush1.msra.mxu0 0.0
        %873 = vmatprep.subr.mxu0 0.0
        %874 = vmatpush1.msra.mxu0 0.0
        %875 = vmatprep.subr.mxu0 0.0
        %876 = vmatpush1.msra.mxu0 0.0
        %877 = vmatprep.subr.mxu0 0.0
        %878 = vmatpush1.msra.mxu0 0.0
        %879 = vmatprep.subr.mxu0 0.0
        %880 = vmatpush1.msra.mxu0 0.0
        %881 = vmatprep.subr.mxu0 0.0
        %882 = vmatpush1.msra.mxu0 0.0
        %883 = vmatprep.subr.mxu0 0.0
        %884 = vmatpush1.msra.mxu0 0.0
        %885 = vmatprep.subr.mxu0 0.0
        %886 = vmatpush1.msra.mxu0 0.0
        %887 = vmatprep.subr.mxu0 0.0
        %888 = vmatpush1.msra.mxu0 0.0
        %889 = vmatprep.subr.mxu0 0.0
        %890 = vmatpush1.msra.mxu0 0.0
        %891 = vmatprep.mubr.f32.mxu0 0.0
        %892 = vmatmul.mubr.f32.gmra.mrb[0].mxu0 %v825
        %v893 = vpop.f32.mrb[0].mxu0
        %v894 = vadd.f32 0.0, %v893
        %v895 = vpop.f32.mrb[0].mxu0
        %896 = vdwg.mxu0
        %897 = vrot.lane.b32.xlu0 %v720, 120
        %v898 = vpop.permute.xlu0 %897
        %899 = vrot.lane.b32.xlu0 %v720, 88
        %v900 = vpop.permute.xlu0 %899
        %v901 = vsel %vm729, %v898, 0
        %v903 = vsel %vm729, %v900, 0
        %905 = vmatprep.subr.mxu0 0.0
        %906 = vmatpush1.xpose.msra.mxu0 %v903
        %907 = vmatprep.subr.mxu0 0.0
        %908 = vmatpush1.xpose.msra.mxu0 0.0
        %909 = vmatprep.subr.mxu0 0.0
        %910 = vmatpush1.xpose.msra.mxu0 0.0
        %911 = vmatprep.subr.mxu0 0.0
        %912 = vmatpush1.xpose.msra.mxu0 0.0
        %913 = vmatprep.subr.mxu0 0.0
        %914 = vmatpush1.xpose.msra.mxu0 0.0
        %915 = vmatprep.subr.mxu0 0.0
        %916 = vmatpush1.xpose.msra.mxu0 0.0
        %917 = vmatprep.subr.mxu0 0.0
        %918 = vmatpush1.xpose.msra.mxu0 0.0
        %919 = vmatprep.subr.mxu0 0.0
        %920 = vmatpush1.xpose.msra.mxu0 0.0
        %921 = vmatprep.subr.mxu0 0.0
        %922 = vmatpush1.xpose.msra.mxu0 0.0
        %923 = vmatprep.subr.mxu0 0.0
        %924 = vmatpush1.xpose.msra.mxu0 0.0
        %925 = vmatprep.subr.mxu0 0.0
        %926 = vmatpush1.xpose.msra.mxu0 0.0
        %927 = vmatprep.subr.mxu0 0.0
        %928 = vmatpush1.xpose.msra.mxu0 0.0
        %929 = vmatprep.subr.mxu0 0.0
        %930 = vmatpush1.xpose.msra.mxu0 0.0
        %931 = vmatprep.subr.mxu0 0.0
        %932 = vmatpush1.xpose.msra.mxu0 0.0
        %933 = vmatprep.subr.mxu0 0.0
        %934 = vmatpush1.xpose.msra.mxu0 0.0
        %935 = vmatprep.subr.mxu0 0.0
        %936 = vmatpush1.xpose.msra.mxu0 0.0
        %937 = vmatprep.subr.mxu0 0.0
        %938 = vmatpush1.xpose.msra.mxu0 0.0
        %939 = vmatprep.subr.mxu0 0.0
        %940 = vmatpush1.xpose.msra.mxu0 0.0
        %941 = vmatprep.subr.mxu0 0.0
        %942 = vmatpush1.xpose.msra.mxu0 0.0
        %943 = vmatprep.subr.mxu0 0.0
        %944 = vmatpush1.xpose.msra.mxu0 0.0
        %945 = vmatprep.subr.mxu0 0.0
        %946 = vmatpush1.xpose.msra.mxu0 0.0
        %947 = vmatprep.subr.mxu0 0.0
        %948 = vmatpush1.xpose.msra.mxu0 0.0
        %949 = vmatprep.subr.mxu0 0.0
        %950 = vmatpush1.xpose.msra.mxu0 0.0
        %951 = vmatprep.subr.mxu0 0.0
        %952 = vmatpush1.xpose.msra.mxu0 0.0
        %953 = vmatprep.subr.mxu0 0.0
        %954 = vmatpush1.xpose.msra.mxu0 0.0
        %955 = vmatprep.subr.mxu0 0.0
        %956 = vmatpush1.xpose.msra.mxu0 0.0
        %957 = vmatprep.subr.mxu0 0.0
        %958 = vmatpush1.xpose.msra.mxu0 0.0
        %959 = vmatprep.subr.mxu0 0.0
        %960 = vmatpush1.xpose.msra.mxu0 0.0
        %961 = vmatprep.subr.mxu0 0.0
        %962 = vmatpush1.xpose.msra.mxu0 0.0
        %963 = vmatprep.subr.mxu0 0.0
        %964 = vmatpush1.xpose.msra.mxu0 0.0
        %965 = vmatprep.subr.mxu0 0.0
        %966 = vmatpush1.xpose.msra.mxu0 0.0
        %967 = vmatprep.subr.mxu0 0.0
        %968 = vmatpush1.xpose.msra.mxu0 0.0
        %969 = vmatprep.mubr.f32.mxu0 0.0
        %970 = vmatmul.mubr.f32.gmra.mrb[0].mxu0 %v901
        %v971 = vpop.f32.mrb[0].mxu0
        %v972 = vadd.f32 0.0, %v971
        %v973 = vpop.f32.mrb[0].mxu0
        %974 = vdwg.mxu0
        %v975 = vmul.f32 %v972, 0.35355338
        %v976 = vsel %vm807, %v975, -1000000.0
        %v977 = vsel %vm729, %v976, -inf
        %978 = vmax.xlane.f32.xlu0 %v977
        %v979 = vpop.xlane.xlu0 %978
        %v980 = vsub.f32 %v976, %v979
        %v981 = vmul.f32 %v980, 1.442695
        %v982 = vpow.pop %v981
        %v983 = vsel %vm729, %v982, 0.0
        %984 = vadd.xlane.f32.xlu0 %v983
        %v985 = vpop.xlane.xlu0 %984
        %v986 = vrcp.pop %v985
        %v987 = vmul.f32 %v982, %v986
        %s988 = scalar_lea.vmem %s623, 8 [#allocation4]
        %989 = vst.msk [vmem:[%s988] sm:$0xff] %vm729, %v987
        %990 = vrot.lane.b32.xlu0 %v720, 56
        %v991 = vpop.permute.xlu0 %990
        %v994 = vsel %vm729, %v987, 0
        %996 = vmatprep.subr.mxu0 0.0
        %997 = vmatpush1.msra.mxu0 %v991
        %998 = vmatprep.subr.mxu0 0.0
        %999 = vmatpush1.msra.mxu0 0.0
        %1000 = vmatprep.subr.mxu0 0.0
        %1001 = vmatpush1.msra.mxu0 0.0
        %1002 = vmatprep.subr.mxu0 0.0
        %1003 = vmatpush1.msra.mxu0 0.0
        %1004 = vmatprep.subr.mxu0 0.0
        %1005 = vmatpush1.msra.mxu0 0.0
        %1006 = vmatprep.subr.mxu0 0.0
        %1007 = vmatpush1.msra.mxu0 0.0
        %1008 = vmatprep.subr.mxu0 0.0
        %1009 = vmatpush1.msra.mxu0 0.0
        %1010 = vmatprep.subr.mxu0 0.0
        %1011 = vmatpush1.msra.mxu0 0.0
        %1012 = vmatprep.subr.mxu0 0.0
        %1013 = vmatpush1.msra.mxu0 0.0
        %1014 = vmatprep.subr.mxu0 0.0
        %1015 = vmatpush1.msra.mxu0 0.0
        %1016 = vmatprep.subr.mxu0 0.0
        %1017 = vmatpush1.msra.mxu0 0.0
        %1018 = vmatprep.subr.mxu0 0.0
        %1019 = vmatpush1.msra.mxu0 0.0
        %1020 = vmatprep.subr.mxu0 0.0
        %1021 = vmatpush1.msra.mxu0 0.0
        %1022 = vmatprep.subr.mxu0 0.0
        %1023 = vmatpush1.msra.mxu0 0.0
        %1024 = vmatprep.subr.mxu0 0.0
        %1025 = vmatpush1.msra.mxu0 0.0
        %1026 = vmatprep.subr.mxu0 0.0
        %1027 = vmatpush1.msra.mxu0 0.0
        %1028 = vmatprep.subr.mxu0 0.0
        %1029 = vmatpush1.msra.mxu0 0.0
        %1030 = vmatprep.subr.mxu0 0.0
        %1031 = vmatpush1.msra.mxu0 0.0
        %1032 = vmatprep.subr.mxu0 0.0
        %1033 = vmatpush1.msra.mxu0 0.0
        %1034 = vmatprep.subr.mxu0 0.0
        %1035 = vmatpush1.msra.mxu0 0.0
        %1036 = vmatprep.subr.mxu0 0.0
        %1037 = vmatpush1.msra.mxu0 0.0
        %1038 = vmatprep.subr.mxu0 0.0
        %1039 = vmatpush1.msra.mxu0 0.0
        %1040 = vmatprep.subr.mxu0 0.0
        %1041 = vmatpush1.msra.mxu0 0.0
        %1042 = vmatprep.subr.mxu0 0.0
        %1043 = vmatpush1.msra.mxu0 0.0
        %1044 = vmatprep.subr.mxu0 0.0
        %1045 = vmatpush1.msra.mxu0 0.0
        %1046 = vmatprep.subr.mxu0 0.0
        %1047 = vmatpush1.msra.mxu0 0.0
        %1048 = vmatprep.subr.mxu0 0.0
        %1049 = vmatpush1.msra.mxu0 0.0
        %1050 = vmatprep.subr.mxu0 0.0
        %1051 = vmatpush1.msra.mxu0 0.0
        %1052 = vmatprep.subr.mxu0 0.0
        %1053 = vmatpush1.msra.mxu0 0.0
        %1054 = vmatprep.subr.mxu0 0.0
        %1055 = vmatpush1.msra.mxu0 0.0
        %1056 = vmatprep.subr.mxu0 0.0
        %1057 = vmatpush1.msra.mxu0 0.0
        %1058 = vmatprep.subr.mxu0 0.0
        %1059 = vmatpush1.msra.mxu0 0.0
        %1060 = vmatprep.mubr.f32.mxu0 0.0
        %1061 = vmatmul.mubr.f32.gmra.mrb[0].mxu0 %v994
        %v1062 = vpop.f32.mrb[0].mxu0
        %v1063 = vadd.f32 0.0, %v1062
        %v1064 = vpop.f32.mrb[0].mxu0
        %1065 = vdwg.mxu0
        %1066 = vrot.lane.b32.xlu0 %v720, 112
        %v1067 = vpop.permute.xlu0 %1066
        %1068 = vrot.lane.b32.xlu0 %v720, 80
        %v1069 = vpop.permute.xlu0 %1068
        %v1070 = vsel %vm729, %v1067, 0
        %v1072 = vsel %vm729, %v1069, 0
        %1074 = vmatprep.subr.mxu0 0.0
        %1075 = vmatpush1.xpose.msra.mxu0 %v1072
        %1076 = vmatprep.subr.mxu0 0.0
        %1077 = vmatpush1.xpose.msra.mxu0 0.0
        %1078 = vmatprep.subr.mxu0 0.0
        %1079 = vmatpush1.xpose.msra.mxu0 0.0
        %1080 = vmatprep.subr.mxu0 0.0
        %1081 = vmatpush1.xpose.msra.mxu0 0.0
        %1082 = vmatprep.subr.mxu0 0.0
        %1083 = vmatpush1.xpose.msra.mxu0 0.0
        %1084 = vmatprep.subr.mxu0 0.0
        %1085 = vmatpush1.xpose.msra.mxu0 0.0
        %1086 = vmatprep.subr.mxu0 0.0
        %1087 = vmatpush1.xpose.msra.mxu0 0.0
        %1088 = vmatprep.subr.mxu0 0.0
        %1089 = vmatpush1.xpose.msra.mxu0 0.0
        %1090 = vmatprep.subr.mxu0 0.0
        %1091 = vmatpush1.xpose.msra.mxu0 0.0
        %1092 = vmatprep.subr.mxu0 0.0
        %1093 = vmatpush1.xpose.msra.mxu0 0.0
        %1094 = vmatprep.subr.mxu0 0.0
        %1095 = vmatpush1.xpose.msra.mxu0 0.0
        %1096 = vmatprep.subr.mxu0 0.0
        %1097 = vmatpush1.xpose.msra.mxu0 0.0
        %1098 = vmatprep.subr.mxu0 0.0
        %1099 = vmatpush1.xpose.msra.mxu0 0.0
        %1100 = vmatprep.subr.mxu0 0.0
        %1101 = vmatpush1.xpose.msra.mxu0 0.0
        %1102 = vmatprep.subr.mxu0 0.0
        %1103 = vmatpush1.xpose.msra.mxu0 0.0
        %1104 = vmatprep.subr.mxu0 0.0
        %1105 = vmatpush1.xpose.msra.mxu0 0.0
        %1106 = vmatprep.subr.mxu0 0.0
        %1107 = vmatpush1.xpose.msra.mxu0 0.0
        %1108 = vmatprep.subr.mxu0 0.0
        %1109 = vmatpush1.xpose.msra.mxu0 0.0
        %1110 = vmatprep.subr.mxu0 0.0
        %1111 = vmatpush1.xpose.msra.mxu0 0.0
        %1112 = vmatprep.subr.mxu0 0.0
        %1113 = vmatpush1.xpose.msra.mxu0 0.0
        %1114 = vmatprep.subr.mxu0 0.0
        %1115 = vmatpush1.xpose.msra.mxu0 0.0
        %1116 = vmatprep.subr.mxu0 0.0
        %1117 = vmatpush1.xpose.msra.mxu0 0.0
        %1118 = vmatprep.subr.mxu0 0.0
        %1119 = vmatpush1.xpose.msra.mxu0 0.0
        %1120 = vmatprep.subr.mxu0 0.0
        %1121 = vmatpush1.xpose.msra.mxu0 0.0
        %1122 = vmatprep.subr.mxu0 0.0
        %1123 = vmatpush1.xpose.msra.mxu0 0.0
        %1124 = vmatprep.subr.mxu0 0.0
        %1125 = vmatpush1.xpose.msra.mxu0 0.0
        %1126 = vmatprep.subr.mxu0 0.0
        %1127 = vmatpush1.xpose.msra.mxu0 0.0
        %1128 = vmatprep.subr.mxu0 0.0
        %1129 = vmatpush1.xpose.msra.mxu0 0.0
        %1130 = vmatprep.subr.mxu0 0.0
        %1131 = vmatpush1.xpose.msra.mxu0 0.0
        %1132 = vmatprep.subr.mxu0 0.0
        %1133 = vmatpush1.xpose.msra.mxu0 0.0
        %1134 = vmatprep.subr.mxu0 0.0
        %1135 = vmatpush1.xpose.msra.mxu0 0.0
        %1136 = vmatprep.subr.mxu0 0.0
        %1137 = vmatpush1.xpose.msra.mxu0 0.0
        %1138 = vmatprep.mubr.f32.mxu0 0.0
        %1139 = vmatmul.mubr.f32.gmra.mrb[0].mxu0 %v1070
        %v1140 = vpop.f32.mrb[0].mxu0
        %v1141 = vadd.f32 0.0, %v1140
        %v1142 = vpop.f32.mrb[0].mxu0
        %1143 = vdwg.mxu0
        %v1144 = vmul.f32 %v1141, 0.35355338
        %v1145 = vsel %vm807, %v1144, -1000000.0
        %v1146 = vsel %vm729, %v1145, -inf
        %1147 = vmax.xlane.f32.xlu0 %v1146
        %v1148 = vpop.xlane.xlu0 %1147
        %v1149 = vsub.f32 %v1145, %v1148
        %v1150 = vmul.f32 %v1149, 1.442695
        %v1151 = vpow.pop %v1150
        %v1152 = vsel %vm729, %v1151, 0.0
        %1153 = vadd.xlane.f32.xlu0 %v1152
        %v1154 = vpop.xlane.xlu0 %1153
        %v1155 = vrcp.pop %v1154
        %v1156 = vmul.f32 %v1151, %v1155
        %s1157 = scalar_lea.vmem %s623, 16 [#allocation4]
        %1158 = vst.msk [vmem:[%s1157] sm:$0xff] %vm729, %v1156
        %1159 = vrot.lane.b32.xlu0 %v720, 48
        %v1160 = vpop.permute.xlu0 %1159
        %v1163 = vsel %vm729, %v1156, 0
        %1165 = vmatprep.subr.mxu0 0.0
        %1166 = vmatpush1.msra.mxu0 %v1160
        %1167 = vmatprep.subr.mxu0 0.0
        %1168 = vmatpush1.msra.mxu0 0.0
        %1169 = vmatprep.subr.mxu0 0.0
        %1170 = vmatpush1.msra.mxu0 0.0
        %1171 = vmatprep.subr.mxu0 0.0
        %1172 = vmatpush1.msra.mxu0 0.0
        %1173 = vmatprep.subr.mxu0 0.0
        %1174 = vmatpush1.msra.mxu0 0.0
        %1175 = vmatprep.subr.mxu0 0.0
        %1176 = vmatpush1.msra.mxu0 0.0
        %1177 = vmatprep.subr.mxu0 0.0
        %1178 = vmatpush1.msra.mxu0 0.0
        %1179 = vmatprep.subr.mxu0 0.0
        %1180 = vmatpush1.msra.mxu0 0.0
        %1181 = vmatprep.subr.mxu0 0.0
        %1182 = vmatpush1.msra.mxu0 0.0
        %1183 = vmatprep.subr.mxu0 0.0
        %1184 = vmatpush1.msra.mxu0 0.0
        %1185 = vmatprep.subr.mxu0 0.0
        %1186 = vmatpush1.msra.mxu0 0.0
        %1187 = vmatprep.subr.mxu0 0.0
        %1188 = vmatpush1.msra.mxu0 0.0
        %1189 = vmatprep.subr.mxu0 0.0
        %1190 = vmatpush1.msra.mxu0 0.0
        %1191 = vmatprep.subr.mxu0 0.0
        %1192 = vmatpush1.msra.mxu0 0.0
        %1193 = vmatprep.subr.mxu0 0.0
        %1194 = vmatpush1.msra.mxu0 0.0
        %1195 = vmatprep.subr.mxu0 0.0
        %1196 = vmatpush1.msra.mxu0 0.0
        %1197 = vmatprep.subr.mxu0 0.0
        %1198 = vmatpush1.msra.mxu0 0.0
        %1199 = vmatprep.subr.mxu0 0.0
        %1200 = vmatpush1.msra.mxu0 0.0
        %1201 = vmatprep.subr.mxu0 0.0
        %1202 = vmatpush1.msra.mxu0 0.0
        %1203 = vmatprep.subr.mxu0 0.0
        %1204 = vmatpush1.msra.mxu0 0.0
        %1205 = vmatprep.subr.mxu0 0.0
        %1206 = vmatpush1.msra.mxu0 0.0
        %1207 = vmatprep.subr.mxu0 0.0
        %1208 = vmatpush1.msra.mxu0 0.0
        %1209 = vmatprep.subr.mxu0 0.0
        %1210 = vmatpush1.msra.mxu0 0.0
        %1211 = vmatprep.subr.mxu0 0.0
        %1212 = vmatpush1.msra.mxu0 0.0
        %1213 = vmatprep.subr.mxu0 0.0
        %1214 = vmatpush1.msra.mxu0 0.0
        %1215 = vmatprep.subr.mxu0 0.0
        %1216 = vmatpush1.msra.mxu0 0.0
        %1217 = vmatprep.subr.mxu0 0.0
        %1218 = vmatpush1.msra.mxu0 0.0
        %1219 = vmatprep.subr.mxu0 0.0
        %1220 = vmatpush1.msra.mxu0 0.0
        %1221 = vmatprep.subr.mxu0 0.0
        %1222 = vmatpush1.msra.mxu0 0.0
        %1223 = vmatprep.subr.mxu0 0.0
        %1224 = vmatpush1.msra.mxu0 0.0
        %1225 = vmatprep.subr.mxu0 0.0
        %1226 = vmatpush1.msra.mxu0 0.0
        %1227 = vmatprep.subr.mxu0 0.0
        %1228 = vmatpush1.msra.mxu0 0.0
        %1229 = vmatprep.mubr.f32.mxu0 0.0
        %1230 = vmatmul.mubr.f32.gmra.mrb[0].mxu0 %v1163
        %v1231 = vpop.f32.mrb[0].mxu0
        %v1232 = vadd.f32 0.0, %v1231
        %v1233 = vpop.f32.mrb[0].mxu0
        %1234 = vdwg.mxu0
        %1235 = vrot.lane.b32.xlu0 %v720, 104
        %v1236 = vpop.permute.xlu0 %1235
        %1237 = vrot.lane.b32.xlu0 %v720, 72
        %v1238 = vpop.permute.xlu0 %1237
        %v1239 = vsel %vm729, %v1236, 0
        %v1241 = vsel %vm729, %v1238, 0
        %1243 = vmatprep.subr.mxu0 0.0
        %1244 = vmatpush1.xpose.msra.mxu0 %v1241
        %1245 = vmatprep.subr.mxu0 0.0
        %1246 = vmatpush1.xpose.msra.mxu0 0.0
        %1247 = vmatprep.subr.mxu0 0.0
        %1248 = vmatpush1.xpose.msra.mxu0 0.0
        %1249 = vmatprep.subr.mxu0 0.0
        %1250 = vmatpush1.xpose.msra.mxu0 0.0
        %1251 = vmatprep.subr.mxu0 0.0
        %1252 = vmatpush1.xpose.msra.mxu0 0.0
        %1253 = vmatprep.subr.mxu0 0.0
        %1254 = vmatpush1.xpose.msra.mxu0 0.0
        %1255 = vmatprep.subr.mxu0 0.0
        %1256 = vmatpush1.xpose.msra.mxu0 0.0
        %1257 = vmatprep.subr.mxu0 0.0
        %1258 = vmatpush1.xpose.msra.mxu0 0.0
        %1259 = vmatprep.subr.mxu0 0.0
        %1260 = vmatpush1.xpose.msra.mxu0 0.0
        %1261 = vmatprep.subr.mxu0 0.0
        %1262 = vmatpush1.xpose.msra.mxu0 0.0
        %1263 = vmatprep.subr.mxu0 0.0
        %1264 = vmatpush1.xpose.msra.mxu0 0.0
        %1265 = vmatprep.subr.mxu0 0.0
        %1266 = vmatpush1.xpose.msra.mxu0 0.0
        %1267 = vmatprep.subr.mxu0 0.0
        %1268 = vmatpush1.xpose.msra.mxu0 0.0
        %1269 = vmatprep.subr.mxu0 0.0
        %1270 = vmatpush1.xpose.msra.mxu0 0.0
        %1271 = vmatprep.subr.mxu0 0.0
        %1272 = vmatpush1.xpose.msra.mxu0 0.0
        %1273 = vmatprep.subr.mxu0 0.0
        %1274 = vmatpush1.xpose.msra.mxu0 0.0
        %1275 = vmatprep.subr.mxu0 0.0
        %1276 = vmatpush1.xpose.msra.mxu0 0.0
        %1277 = vmatprep.subr.mxu0 0.0
        %1278 = vmatpush1.xpose.msra.mxu0 0.0
        %1279 = vmatprep.subr.mxu0 0.0
        %1280 = vmatpush1.xpose.msra.mxu0 0.0
        %1281 = vmatprep.subr.mxu0 0.0
        %1282 = vmatpush1.xpose.msra.mxu0 0.0
        %1283 = vmatprep.subr.mxu0 0.0
        %1284 = vmatpush1.xpose.msra.mxu0 0.0
        %1285 = vmatprep.subr.mxu0 0.0
        %1286 = vmatpush1.xpose.msra.mxu0 0.0
        %1287 = vmatprep.subr.mxu0 0.0
        %1288 = vmatpush1.xpose.msra.mxu0 0.0
        %1289 = vmatprep.subr.mxu0 0.0
        %1290 = vmatpush1.xpose.msra.mxu0 0.0
        %1291 = vmatprep.subr.mxu0 0.0
        %1292 = vmatpush1.xpose.msra.mxu0 0.0
        %1293 = vmatprep.subr.mxu0 0.0
        %1294 = vmatpush1.xpose.msra.mxu0 0.0
        %1295 = vmatprep.subr.mxu0 0.0
        %1296 = vmatpush1.xpose.msra.mxu0 0.0
        %1297 = vmatprep.subr.mxu0 0.0
        %1298 = vmatpush1.xpose.msra.mxu0 0.0
        %1299 = vmatprep.subr.mxu0 0.0
        %1300 = vmatpush1.xpose.msra.mxu0 0.0
        %1301 = vmatprep.subr.mxu0 0.0
        %1302 = vmatpush1.xpose.msra.mxu0 0.0
        %1303 = vmatprep.subr.mxu0 0.0
        %1304 = vmatpush1.xpose.msra.mxu0 0.0
        %1305 = vmatprep.subr.mxu0 0.0
        %1306 = vmatpush1.xpose.msra.mxu0 0.0
        %1307 = vmatprep.mubr.f32.mxu0 0.0
        %1308 = vmatmul.mubr.f32.gmra.mrb[0].mxu0 %v1239
        %v1309 = vpop.f32.mrb[0].mxu0
        %v1310 = vadd.f32 0.0, %v1309
        %v1311 = vpop.f32.mrb[0].mxu0
        %1312 = vdwg.mxu0
        %v1313 = vmul.f32 %v1310, 0.35355338
        %v1314 = vsel %vm807, %v1313, -1000000.0
        %v1315 = vsel %vm729, %v1314, -inf
        %1316 = vmax.xlane.f32.xlu0 %v1315
        %v1317 = vpop.xlane.xlu0 %1316
        %v1318 = vsub.f32 %v1314, %v1317
        %v1319 = vmul.f32 %v1318, 1.442695
        %v1320 = vpow.pop %v1319
        %v1321 = vsel %vm729, %v1320, 0.0
        %1322 = vadd.xlane.f32.xlu0 %v1321
        %v1323 = vpop.xlane.xlu0 %1322
        %v1324 = vrcp.pop %v1323
        %v1325 = vmul.f32 %v1320, %v1324
        %s1326 = scalar_lea.vmem %s623, 24 [#allocation4]
        %1327 = vst.msk [vmem:[%s1326] sm:$0xff] %vm729, %v1325
        %1328 = vrot.lane.b32.xlu0 %v720, 40
        %v1329 = vpop.permute.xlu0 %1328
        %v1332 = vsel %vm729, %v1325, 0
        %1334 = vmatprep.subr.mxu0 0.0
        %1335 = vmatpush1.msra.mxu0 %v1329
        %1336 = vmatprep.subr.mxu0 0.0
        %1337 = vmatpush1.msra.mxu0 0.0
        %1338 = vmatprep.subr.mxu0 0.0
        %1339 = vmatpush1.msra.mxu0 0.0
        %1340 = vmatprep.subr.mxu0 0.0
        %1341 = vmatpush1.msra.mxu0 0.0
        %1342 = vmatprep.subr.mxu0 0.0
        %1343 = vmatpush1.msra.mxu0 0.0
        %1344 = vmatprep.subr.mxu0 0.0
        %1345 = vmatpush1.msra.mxu0 0.0
        %1346 = vmatprep.subr.mxu0 0.0
        %1347 = vmatpush1.msra.mxu0 0.0
        %1348 = vmatprep.subr.mxu0 0.0
        %1349 = vmatpush1.msra.mxu0 0.0
        %1350 = vmatprep.subr.mxu0 0.0
        %1351 = vmatpush1.msra.mxu0 0.0
        %1352 = vmatprep.subr.mxu0 0.0
        %1353 = vmatpush1.msra.mxu0 0.0
        %1354 = vmatprep.subr.mxu0 0.0
        %1355 = vmatpush1.msra.mxu0 0.0
        %1356 = vmatprep.subr.mxu0 0.0
        %1357 = vmatpush1.msra.mxu0 0.0
        %1358 = vmatprep.subr.mxu0 0.0
        %1359 = vmatpush1.msra.mxu0 0.0
        %1360 = vmatprep.subr.mxu0 0.0
        %1361 = vmatpush1.msra.mxu0 0.0
        %1362 = vmatprep.subr.mxu0 0.0
        %1363 = vmatpush1.msra.mxu0 0.0
        %1364 = vmatprep.subr.mxu0 0.0
        %1365 = vmatpush1.msra.mxu0 0.0
        %1366 = vmatprep.subr.mxu0 0.0
        %1367 = vmatpush1.msra.mxu0 0.0
        %1368 = vmatprep.subr.mxu0 0.0
        %1369 = vmatpush1.msra.mxu0 0.0
        %1370 = vmatprep.subr.mxu0 0.0
        %1371 = vmatpush1.msra.mxu0 0.0
        %1372 = vmatprep.subr.mxu0 0.0
        %1373 = vmatpush1.msra.mxu0 0.0
        %1374 = vmatprep.subr.mxu0 0.0
        %1375 = vmatpush1.msra.mxu0 0.0
        %1376 = vmatprep.subr.mxu0 0.0
        %1377 = vmatpush1.msra.mxu0 0.0
        %1378 = vmatprep.subr.mxu0 0.0
        %1379 = vmatpush1.msra.mxu0 0.0
        %1380 = vmatprep.subr.mxu0 0.0
        %1381 = vmatpush1.msra.mxu0 0.0
        %1382 = vmatprep.subr.mxu0 0.0
        %1383 = vmatpush1.msra.mxu0 0.0
        %1384 = vmatprep.subr.mxu0 0.0
        %1385 = vmatpush1.msra.mxu0 0.0
        %1386 = vmatprep.subr.mxu0 0.0
        %1387 = vmatpush1.msra.mxu0 0.0
        %1388 = vmatprep.subr.mxu0 0.0
        %1389 = vmatpush1.msra.mxu0 0.0
        %1390 = vmatprep.subr.mxu0 0.0
        %1391 = vmatpush1.msra.mxu0 0.0
        %1392 = vmatprep.subr.mxu0 0.0
        %1393 = vmatpush1.msra.mxu0 0.0
        %1394 = vmatprep.subr.mxu0 0.0
        %1395 = vmatpush1.msra.mxu0 0.0
        %1396 = vmatprep.subr.mxu0 0.0
        %1397 = vmatpush1.msra.mxu0 0.0
        %1398 = vmatprep.mubr.f32.mxu0 0.0
        %1399 = vmatmul.mubr.f32.gmra.mrb[0].mxu0 %v1332
        %v1400 = vpop.f32.mrb[0].mxu0
        %v1401 = vadd.f32 0.0, %v1400
        %v1402 = vpop.f32.mrb[0].mxu0
        %1403 = vdwg.mxu0
        %1405 = vrot.lane.b32.xlu0 %v1063, 8
        %v1406 = vpop.permute.xlu0 %1405
        %1409 = vrot.lane.b32.xlu0 %v1232, 16
        %v1410 = vpop.permute.xlu0 %1409
        %1413 = vrot.lane.b32.xlu0 %v1401, 24
        %v1414 = vpop.permute.xlu0 %1413
        %v1416 = vsel %vm729, %v894, %v1406
        %vm1417 = vcmask 130048
        %v1418 = vsel %vm1417, %v1416, %v1410
        %vm1419 = vcmask 195584
        %v1420 = vsel %vm1419, %v1418, %v1414
        %v1421 = vld [vmem:[%s4] sm:$0xff]
        %v1422 = vld [vmem:[%s4 + $0x8] sm:$0xff]
        %v1423 = vld [vmem:[%s4 + $0x10] sm:$0xff]
        %v1424 = vld [vmem:[%s4 + $0x18] sm:$0xff]
        %v1426 = vsel %vm649, %v1420, 0
        %1428 = vmatprep.subr.mxu0 0.0
        %1429 = vmatpush1.msra.mxu0 %v1421
        %1430 = vmatprep.subr.mxu0 0.0
        %1431 = vmatpush1.msra.mxu0 %v1422
        %1432 = vmatprep.subr.mxu0 0.0
        %1433 = vmatpush1.msra.mxu0 %v1423
        %1434 = vmatprep.subr.mxu0 0.0
        %1435 = vmatpush1.msra.mxu0 %v1424
        %1436 = vmatprep.subr.mxu0 0.0
        %1437 = vmatpush1.msra.mxu0 0.0
        %1438 = vmatprep.subr.mxu0 0.0
        %1439 = vmatpush1.msra.mxu0 0.0
        %1440 = vmatprep.subr.mxu0 0.0
        %1441 = vmatpush1.msra.mxu0 0.0
        %1442 = vmatprep.subr.mxu0 0.0
        %1443 = vmatpush1.msra.mxu0 0.0
        %1444 = vmatprep.subr.mxu0 0.0
        %1445 = vmatpush1.msra.mxu0 0.0
        %1446 = vmatprep.subr.mxu0 0.0
        %1447 = vmatpush1.msra.mxu0 0.0
        %1448 = vmatprep.subr.mxu0 0.0
        %1449 = vmatpush1.msra.mxu0 0.0
        %1450 = vmatprep.subr.mxu0 0.0
        %1451 = vmatpush1.msra.mxu0 0.0
        %1452 = vmatprep.subr.mxu0 0.0
        %1453 = vmatpush1.msra.mxu0 0.0
        %1454 = vmatprep.subr.mxu0 0.0
        %1455 = vmatpush1.msra.mxu0 0.0
        %1456 = vmatprep.subr.mxu0 0.0
        %1457 = vmatpush1.msra.mxu0 0.0
        %1458 = vmatprep.subr.mxu0 0.0
        %1459 = vmatpush1.msra.mxu0 0.0
        %1460 = vmatprep.subr.mxu0 0.0
        %1461 = vmatpush1.msra.mxu0 0.0
        %1462 = vmatprep.subr.mxu0 0.0
        %1463 = vmatpush1.msra.mxu0 0.0
        %1464 = vmatprep.subr.mxu0 0.0
        %1465 = vmatpush1.msra.mxu0 0.0
        %1466 = vmatprep.subr.mxu0 0.0
        %1467 = vmatpush1.msra.mxu0 0.0
        %1468 = vmatprep.subr.mxu0 0.0
        %1469 = vmatpush1.msra.mxu0 0.0
        %1470 = vmatprep.subr.mxu0 0.0
        %1471 = vmatpush1.msra.mxu0 0.0
        %1472 = vmatprep.subr.mxu0 0.0
        %1473 = vmatpush1.msra.mxu0 0.0
        %1474 = vmatprep.subr.mxu0 0.0
        %1475 = vmatpush1.msra.mxu0 0.0
        %1476 = vmatprep.subr.mxu0 0.0
        %1477 = vmatpush1.msra.mxu0 0.0
        %1478 = vmatprep.subr.mxu0 0.0
        %1479 = vmatpush1.msra.mxu0 0.0
        %1480 = vmatprep.subr.mxu0 0.0
        %1481 = vmatpush1.msra.mxu0 0.0
        %1482 = vmatprep.subr.mxu0 0.0
        %1483 = vmatpush1.msra.mxu0 0.0
        %1484 = vmatprep.subr.mxu0 0.0
        %1485 = vmatpush1.msra.mxu0 0.0
        %1486 = vmatprep.subr.mxu0 0.0
        %1487 = vmatpush1.msra.mxu0 0.0
        %1488 = vmatprep.subr.mxu0 0.0
        %1489 = vmatpush1.msra.mxu0 0.0
        %1490 = vmatprep.subr.mxu0 0.0
        %1491 = vmatpush1.msra.mxu0 0.0
        %1492 = vmatprep.mubr.f32.mxu0 0.0
        %1493 = vmatmul.mubr.f32.gmra.mrb[0].mxu0 %v1426
        %v1494 = vpop.f32.mrb[0].mxu0
        %v1495 = vadd.f32 0.0, %v1494
        %v1496 = vpop.f32.mrb[0].mxu0
        %1497 = vdwg.mxu0
        %v1498 = vadd.f32 %v643, %v1495
        %v1499 = vld [vmem:[%s5] sm:$0x1]
        %v1500 = vld [vmem:[%s6] sm:$0x1]
        %v1501 = vsel %vm649, %v1498, 0.0
        %1502 = vadd.xlane.f32.xlu0 %v1501
        %v1503 = vpop.xlane.xlu0 %1502
        %v1504 = vrcp.pop 32.0
        %v1505 = vmul.f32 %v1503, %v1504
        %v1506 = vsub.f32 %v1498, %v1505
        %v1507 = vmul.f32 %v1506, %v1506
        %v1508 = vsel %vm649, %v1507, 0.0
        %1509 = vadd.xlane.f32.xlu0 %v1508
        %v1510 = vpop.xlane.xlu0 %1509
        %v1511 = vmul.f32 %v1510, %v1504
        %v1512 = vadd.f32 %v1511, 1e-05
        %v1513 = vrsqrt.pop %v1512
        %v1514 = vmul.f32 %v1506, %v1513
        %v1516 = vlaneseq
        %v1517 = vshrl.u32 %v1516, 7
        %v1518 = vsub.s32 0, %v1517
        %v1519 = vrot.slane %v1499, %v1518
        %v1521 = vmul.f32 %v1514, %v1519
        %v1523 = vlaneseq
        %v1524 = vshrl.u32 %v1523, 7
        %v1525 = vsub.s32 0, %v1524
        %v1526 = vrot.slane %v1500, %v1525
        %v1528 = vadd.f32 %v1521, %v1526
        %v1529 = vld [vmem:[%s7] sm:$0xff]
        %v1530 = vld [vmem:[%s7 + $0x8] sm:$0xff]
        %v1531 = vld [vmem:[%s7 + $0x10] sm:$0xff]
        %v1532 = vld [vmem:[%s7 + $0x18] sm:$0xff]
        %v1534 = vsel %vm649, %v1528, 0
        %1536 = vmatprep.subr.mxu0 0.0
        %1537 = vmatpush1.msra.mxu0 %v1529
        %1538 = vmatprep.subr.mxu0 0.0
        %1539 = vmatpush1.msra.mxu0 %v1530
        %1540 = vmatprep.subr.mxu0 0.0
        %1541 = vmatpush1.msra.mxu0 %v1531
        %1542 = vmatprep.subr.mxu0 0.0
        %1543 = vmatpush1.msra.mxu0 %v1532
        %1544 = vmatprep.subr.mxu0 0.0
        %1545 = vmatpush1.msra.mxu0 0.0
        %1546 = vmatprep.subr.mxu0 0.0
        %1547 = vmatpush1.msra.mxu0 0.0
        %1548 = vmatprep.subr.mxu0 0.0
        %1549 = vmatpush1.msra.mxu0 0.0
        %1550 = vmatprep.subr.mxu0 0.0
        %1551 = vmatpush1.msra.mxu0 0.0
        %1552 = vmatprep.subr.mxu0 0.0
        %1553 = vmatpush1.msra.mxu0 0.0
        %1554 = vmatprep.subr.mxu0 0.0
        %1555 = vmatpush1.msra.mxu0 0.0
        %1556 = vmatprep.subr.mxu0 0.0
        %1557 = vmatpush1.msra.mxu0 0.0
        %1558 = vmatprep.subr.mxu0 0.0
        %1559 = vmatpush1.msra.mxu0 0.0
        %1560 = vmatprep.subr.mxu0 0.0
        %1561 = vmatpush1.msra.mxu0 0.0
        %1562 = vmatprep.subr.mxu0 0.0
        %1563 = vmatpush1.msra.mxu0 0.0
        %1564 = vmatprep.subr.mxu0 0.0
        %1565 = vmatpush1.msra.mxu0 0.0
        %1566 = vmatprep.subr.mxu0 0.0
        %1567 = vmatpush1.msra.mxu0 0.0
        %1568 = vmatprep.subr.mxu0 0.0
        %1569 = vmatpush1.msra.mxu0 0.0
        %1570 = vmatprep.subr.mxu0 0.0
        %1571 = vmatpush1.msra.mxu0 0.0
        %1572 = vmatprep.subr.mxu0 0.0
        %1573 = vmatpush1.msra.mxu0 0.0
        %1574 = vmatprep.subr.mxu0 0.0
        %1575 = vmatpush1.msra.mxu0 0.0
        %1576 = vmatprep.subr.mxu0 0.0
        %1577 = vmatpush1.msra.mxu0 0.0
        %1578 = vmatprep.subr.mxu0 0.0
        %1579 = vmatpush1.msra.mxu0 0.0
        %1580 = vmatprep.subr.mxu0 0.0
        %1581 = vmatpush1.msra.mxu0 0.0
        %1582 = vmatprep.subr.mxu0 0.0
        %1583 = vmatpush1.msra.mxu0 0.0
        %1584 = vmatprep.subr.mxu0 0.0
        %1585 = vmatpush1.msra.mxu0 0.0
        %1586 = vmatprep.subr.mxu0 0.0
        %1587 = vmatpush1.msra.mxu0 0.0
        %1588 = vmatprep.subr.mxu0 0.0
        %1589 = vmatpush1.msra.mxu0 0.0
        %1590 = vmatprep.subr.mxu0 0.0
        %1591 = vmatpush1.msra.mxu0 0.0
        %1592 = vmatprep.subr.mxu0 0.0
        %1593 = vmatpush1.msra.mxu0 0.0
        %1594 = vmatprep.subr.mxu0 0.0
        %1595 = vmatpush1.msra.mxu0 0.0
        %1596 = vmatprep.subr.mxu0 0.0
        %1597 = vmatpush1.msra.mxu0 0.0
        %1598 = vmatprep.subr.mxu0 0.0
        %1599 = vmatpush1.msra.mxu0 0.0
        %1600 = vmatprep.mubr.f32.mxu0 0.0
        %1601 = vmatmul.mubr.f32.gmra.mrb[0].mxu0 %v1534
        %v1602 = vpop.f32.mrb[0].mxu0
        %v1603 = vadd.f32 0.0, %v1602
        %v1604 = vpop.f32.mrb[0].mxu0
        %1605 = vdwg.mxu0
        %v1606 = vld [vmem:[%s8] sm:$0xff]
        %v1607 = vld [vmem:[%s8 + $0x8] sm:$0xff]
        %v1608 = vld [vmem:[%s8 + $0x10] sm:$0xff]
        %v1609 = vld [vmem:[%s8 + $0x18] sm:$0xff]
        %v1611 = vsel %vm649, %v644, 0
        %1613 = vmatprep.subr.mxu0 0.0
        %1614 = vmatpush1.msra.mxu0 %v1606
        %1615 = vmatprep.subr.mxu0 0.0
        %1616 = vmatpush1.msra.mxu0 %v1607
        %1617 = vmatprep.subr.mxu0 0.0
        %1618 = vmatpush1.msra.mxu0 %v1608
        %1619 = vmatprep.subr.mxu0 0.0
        %1620 = vmatpush1.msra.mxu0 %v1609
        %1621 = vmatprep.subr.mxu0 0.0
        %1622 = vmatpush1.msra.mxu0 0.0
        %1623 = vmatprep.subr.mxu0 0.0
        %1624 = vmatpush1.msra.mxu0 0.0
        %1625 = vmatprep.subr.mxu0 0.0
        %1626 = vmatpush1.msra.mxu0 0.0
        %1627 = vmatprep.subr.mxu0 0.0
        %1628 = vmatpush1.msra.mxu0 0.0
        %1629 = vmatprep.subr.mxu0 0.0
        %1630 = vmatpush1.msra.mxu0 0.0
        %1631 = vmatprep.subr.mxu0 0.0
        %1632 = vmatpush1.msra.mxu0 0.0
        %1633 = vmatprep.subr.mxu0 0.0
        %1634 = vmatpush1.msra.mxu0 0.0
        %1635 = vmatprep.subr.mxu0 0.0
        %1636 = vmatpush1.msra.mxu0 0.0
        %1637 = vmatprep.subr.mxu0 0.0
        %1638 = vmatpush1.msra.mxu0 0.0
        %1639 = vmatprep.subr.mxu0 0.0
        %1640 = vmatpush1.msra.mxu0 0.0
        %1641 = vmatprep.subr.mxu0 0.0
        %1642 = vmatpush1.msra.mxu0 0.0
        %1643 = vmatprep.subr.mxu0 0.0
        %1644 = vmatpush1.msra.mxu0 0.0
        %1645 = vmatprep.subr.mxu0 0.0
        %1646 = vmatpush1.msra.mxu0 0.0
        %1647 = vmatprep.subr.mxu0 0.0
        %1648 = vmatpush1.msra.mxu0 0.0
        %1649 = vmatprep.subr.mxu0 0.0
        %1650 = vmatpush1.msra.mxu0 0.0
        %1651 = vmatprep.subr.mxu0 0.0
        %1652 = vmatpush1.msra.mxu0 0.0
        %1653 = vmatprep.subr.mxu0 0.0
        %1654 = vmatpush1.msra.mxu0 0.0
        %1655 = vmatprep.subr.mxu0 0.0
        %1656 = vmatpush1.msra.mxu0 0.0
        %1657 = vmatprep.subr.mxu0 0.0
        %1658 = vmatpush1.msra.mxu0 0.0
        %1659 = vmatprep.subr.mxu0 0.0
        %1660 = vmatpush1.msra.mxu0 0.0
        %1661 = vmatprep.subr.mxu0 0.0
        %1662 = vmatpush1.msra.mxu0 0.0
        %1663 = vmatprep.subr.mxu0 0.0
        %1664 = vmatpush1.msra.mxu0 0.0
        %1665 = vmatprep.subr.mxu0 0.0
        %1666 = vmatpush1.msra.mxu0 0.0
        %1667 = vmatprep.subr.mxu0 0.0
        %1668 = vmatpush1.msra.mxu0 0.0
        %1669 = vmatprep.subr.mxu0 0.0
        %1670 = vmatpush1.msra.mxu0 0.0
        %1671 = vmatprep.subr.mxu0 0.0
        %1672 = vmatpush1.msra.mxu0 0.0
        %1673 = vmatprep.subr.mxu0 0.0
        %1674 = vmatpush1.msra.mxu0 0.0
        %1675 = vmatprep.subr.mxu0 0.0
        %1676 = vmatpush1.msra.mxu0 0.0
        %1677 = vmatprep.mubr.f32.mxu0 0.0
        %1678 = vmatmul.mubr.f32.gmra.mrb[0].mxu0 %v1611
        %v1679 = vpop.f32.mrb[0].mxu0
        %v1680 = vadd.f32 0.0, %v1679
        %v1681 = vpop.f32.mrb[0].mxu0
        %1682 = vdwg.mxu0
        %s1683 = sld [smem:[#allocation3 + %s44]]
        %v1685 = vsel %vm729, %v1603, 0
        %v1688 = vsel %vm729, %v1680, 0
        %1690 = vmatprep.subr.mxu0 0.0
        %1691 = vmatpush1.xpose.msra.mxu0 %v1688
        %1692 = vmatprep.subr.mxu0 0.0
        %1693 = vmatpush1.xpose.msra.mxu0 0.0
        %1694 = vmatprep.subr.mxu0 0.0
        %1695 = vmatpush1.xpose.msra.mxu0 0.0
        %1696 = vmatprep.subr.mxu0 0.0
        %1697 = vmatpush1.xpose.msra.mxu0 0.0
        %1698 = vmatprep.subr.mxu0 0.0
        %1699 = vmatpush1.xpose.msra.mxu0 0.0
        %1700 = vmatprep.subr.mxu0 0.0
        %1701 = vmatpush1.xpose.msra.mxu0 0.0
        %1702 = vmatprep.subr.mxu0 0.0
        %1703 = vmatpush1.xpose.msra.mxu0 0.0
        %1704 = vmatprep.subr.mxu0 0.0
        %1705 = vmatpush1.xpose.msra.mxu0 0.0
        %1706 = vmatprep.subr.mxu0 0.0
        %1707 = vmatpush1.xpose.msra.mxu0 0.0
        %1708 = vmatprep.subr.mxu0 0.0
        %1709 = vmatpush1.xpose.msra.mxu0 0.0
        %1710 = vmatprep.subr.mxu0 0.0
        %1711 = vmatpush1.xpose.msra.mxu0 0.0
        %1712 = vmatprep.subr.mxu0 0.0
        %1713 = vmatpush1.xpose.msra.mxu0 0.0
        %1714 = vmatprep.subr.mxu0 0.0
        %1715 = vmatpush1.xpose.msra.mxu0 0.0
        %1716 = vmatprep.subr.mxu0 0.0
        %1717 = vmatpush1.xpose.msra.mxu0 0.0
        %1718 = vmatprep.subr.mxu0 0.0
        %1719 = vmatpush1.xpose.msra.mxu0 0.0
        %1720 = vmatprep.subr.mxu0 0.0
        %1721 = vmatpush1.xpose.msra.mxu0 0.0
        %1722 = vmatprep.subr.mxu0 0.0
        %1723 = vmatpush1.xpose.msra.mxu0 0.0
        %1724 = vmatprep.subr.mxu0 0.0
        %1725 = vmatpush1.xpose.msra.mxu0 0.0
        %1726 = vmatprep.subr.mxu0 0.0
        %1727 = vmatpush1.xpose.msra.mxu0 0.0
        %1728 = vmatprep.subr.mxu0 0.0
        %1729 = vmatpush1.xpose.msra.mxu0 0.0
        %1730 = vmatprep.subr.mxu0 0.0
        %1731 = vmatpush1.xpose.msra.mxu0 0.0
        %1732 = vmatprep.subr.mxu0 0.0
        %1733 = vmatpush1.xpose.msra.mxu0 0.0
        %1734 = vmatprep.subr.mxu0 0.0
        %1735 = vmatpush1.xpose.msra.mxu0 0.0
        %1736 = vmatprep.subr.mxu0 0.0
        %1737 = vmatpush1.xpose.msra.mxu0 0.0
        %1738 = vmatprep.subr.mxu0 0.0
        %1739 = vmatpush1.xpose.msra.mxu0 0.0
        %1740 = vmatprep.subr.mxu0 0.0
        %1741 = vmatpush1.xpose.msra.mxu0 0.0
        %1742 = vmatprep.subr.mxu0 0.0
        %1743 = vmatpush1.xpose.msra.mxu0 0.0
        %1744 = vmatprep.subr.mxu0 0.0
        %1745 = vmatpush1.xpose.msra.mxu0 0.0
        %1746 = vmatprep.subr.mxu0 0.0
        %1747 = vmatpush1.xpose.msra.mxu0 0.0
        %1748 = vmatprep.subr.mxu0 0.0
        %1749 = vmatpush1.xpose.msra.mxu0 0.0
        %1750 = vmatprep.subr.mxu0 0.0
        %1751 = vmatpush1.xpose.msra.mxu0 0.0
        %1752 = vmatprep.subr.mxu0 0.0
        %1753 = vmatpush1.xpose.msra.mxu0 0.0
        %1754 = vmatprep.mubr.f32.mxu0 0.0
        %1755 = vmatmul.mubr.f32.gmra.mrb[0].mxu0 %v1685
        %v1756 = vpop.f32.mrb[0].mxu0
        %v1757 = vadd.f32 0.0, %v1756
        %v1758 = vpop.f32.mrb[0].mxu0
        %1759 = vdwg.mxu0
        %v1760 = vmul.f32 %v1757, 0.35355338
        %v1761 = vstv %s1683
        %vm1762 = vcmp.lt.s32.totalorder %v806, %v1761
        %v1763 = vsel %vm1762, %v1760, -1000000.0
        %v1764 = vsel %vm729, %v1763, -inf
        %1765 = vmax.xlane.f32.xlu0 %v1764
        %v1766 = vpop.xlane.xlu0 %1765
        %v1767 = vsub.f32 %v1763, %v1766
        %v1768 = vmul.f32 %v1767, 1.442695
        %v1769 = vpow.pop %v1768
        %v1770 = vsel %vm729, %v1769, 0.0
        %1771 = vadd.xlane.f32.xlu0 %v1770
        %v1772 = vpop.xlane.xlu0 %1771
        %v1773 = vrcp.pop %v1772
        %v1774 = vmul.f32 %v1769, %v1773
        %1775 = vst.msk [vmem:[%s630] sm:$0xff] %vm729, %v1774
        %1776 = vrot.lane.b32.xlu0 %v1680, 96
        %v1777 = vpop.permute.xlu0 %1776
        %v1780 = vsel %vm729, %v1774, 0
        %1782 = vmatprep.subr.mxu0 0.0
        %1783 = vmatpush1.msra.mxu0 %v1777
        %1784 = vmatprep.subr.mxu0 0.0
        %1785 = vmatpush1.msra.mxu0 0.0
        %1786 = vmatprep.subr.mxu0 0.0
        %1787 = vmatpush1.msra.mxu0 0.0
        %1788 = vmatprep.subr.mxu0 0.0
        %1789 = vmatpush1.msra.mxu0 0.0
        %1790 = vmatprep.subr.mxu0 0.0
        %1791 = vmatpush1.msra.mxu0 0.0
        %1792 = vmatprep.subr.mxu0 0.0
        %1793 = vmatpush1.msra.mxu0 0.0
        %1794 = vmatprep.subr.mxu0 0.0
        %1795 = vmatpush1.msra.mxu0 0.0
        %1796 = vmatprep.subr.mxu0 0.0
        %1797 = vmatpush1.msra.mxu0 0.0
        %1798 = vmatprep.subr.mxu0 0.0
        %1799 = vmatpush1.msra.mxu0 0.0
        %1800 = vmatprep.subr.mxu0 0.0
        %1801 = vmatpush1.msra.mxu0 0.0
        %1802 = vmatprep.subr.mxu0 0.0
        %1803 = vmatpush1.msra.mxu0 0.0
        %1804 = vmatprep.subr.mxu0 0.0
        %1805 = vmatpush1.msra.mxu0 0.0
        %1806 = vmatprep.subr.mxu0 0.0
        %1807 = vmatpush1.msra.mxu0 0.0
        %1808 = vmatprep.subr.mxu0 0.0
        %1809 = vmatpush1.msra.mxu0 0.0
        %1810 = vmatprep.subr.mxu0 0.0
        %1811 = vmatpush1.msra.mxu0 0.0
        %1812 = vmatprep.subr.mxu0 0.0
        %1813 = vmatpush1.msra.mxu0 0.0
        %1814 = vmatprep.subr.mxu0 0.0
        %1815 = vmatpush1.msra.mxu0 0.0
        %1816 = vmatprep.subr.mxu0 0.0
        %1817 = vmatpush1.msra.mxu0 0.0
        %1818 = vmatprep.subr.mxu0 0.0
        %1819 = vmatpush1.msra.mxu0 0.0
        %1820 = vmatprep.subr.mxu0 0.0
        %1821 = vmatpush1.msra.mxu0 0.0
        %1822 = vmatprep.subr.mxu0 0.0
        %1823 = vmatpush1.msra.mxu0 0.0
        %1824 = vmatprep.subr.mxu0 0.0
        %1825 = vmatpush1.msra.mxu0 0.0
        %1826 = vmatprep.subr.mxu0 0.0
        %1827 = vmatpush1.msra.mxu0 0.0
        %1828 = vmatprep.subr.mxu0 0.0
        %1829 = vmatpush1.msra.mxu0 0.0
        %1830 = vmatprep.subr.mxu0 0.0
        %1831 = vmatpush1.msra.mxu0 0.0
        %1832 = vmatprep.subr.mxu0 0.0
        %1833 = vmatpush1.msra.mxu0 0.0
        %1834 = vmatprep.subr.mxu0 0.0
        %1835 = vmatpush1.msra.mxu0 0.0
        %1836 = vmatprep.subr.mxu0 0.0
        %1837 = vmatpush1.msra.mxu0 0.0
        %1838 = vmatprep.subr.mxu0 0.0
        %1839 = vmatpush1.msra.mxu0 0.0
        %1840 = vmatprep.subr.mxu0 0.0
        %1841 = vmatpush1.msra.mxu0 0.0
        %1842 = vmatprep.subr.mxu0 0.0
        %1843 = vmatpush1.msra.mxu0 0.0
        %1844 = vmatprep.subr.mxu0 0.0
        %1845 = vmatpush1.msra.mxu0 0.0
        %1846 = vmatprep.mubr.f32.mxu0 0.0
        %1847 = vmatmul.mubr.f32.gmra.mrb[0].mxu0 %v1780
        %v1848 = vpop.f32.mrb[0].mxu0
        %v1849 = vadd.f32 0.0, %v1848
        %v1850 = vpop.f32.mrb[0].mxu0
        %1851 = vdwg.mxu0
        %1852 = vrot.lane.b32.xlu0 %v1603, 120
        %v1853 = vpop.permute.xlu0 %1852
        %1854 = vrot.lane.b32.xlu0 %v1680, 120
        %v1855 = vpop.permute.xlu0 %1854
        %v1856 = vsel %vm729, %v1853, 0
        %v1858 = vsel %vm729, %v1855, 0
        %1860 = vmatprep.subr.mxu0 0.0
        %1861 = vmatpush1.xpose.msra.mxu0 %v1858
        %1862 = vmatprep.subr.mxu0 0.0
        %1863 = vmatpush1.xpose.msra.mxu0 0.0
        %1864 = vmatprep.subr.mxu0 0.0
        %1865 = vmatpush1.xpose.msra.mxu0 0.0
        %1866 = vmatprep.subr.mxu0 0.0
        %1867 = vmatpush1.xpose.msra.mxu0 0.0
        %1868 = vmatprep.subr.mxu0 0.0
        %1869 = vmatpush1.xpose.msra.mxu0 0.0
        %1870 = vmatprep.subr.mxu0 0.0
        %1871 = vmatpush1.xpose.msra.mxu0 0.0
        %1872 = vmatprep.subr.mxu0 0.0
        %1873 = vmatpush1.xpose.msra.mxu0 0.0
        %1874 = vmatprep.subr.mxu0 0.0
        %1875 = vmatpush1.xpose.msra.mxu0 0.0
        %1876 = vmatprep.subr.mxu0 0.0
        %1877 = vmatpush1.xpose.msra.mxu0 0.0
        %1878 = vmatprep.subr.mxu0 0.0
        %1879 = vmatpush1.xpose.msra.mxu0 0.0
        %1880 = vmatprep.subr.mxu0 0.0
        %1881 = vmatpush1.xpose.msra.mxu0 0.0
        %1882 = vmatprep.subr.mxu0 0.0
        %1883 = vmatpush1.xpose.msra.mxu0 0.0
        %1884 = vmatprep.subr.mxu0 0.0
        %1885 = vmatpush1.xpose.msra.mxu0 0.0
        %1886 = vmatprep.subr.mxu0 0.0
        %1887 = vmatpush1.xpose.msra.mxu0 0.0
        %1888 = vmatprep.subr.mxu0 0.0
        %1889 = vmatpush1.xpose.msra.mxu0 0.0
        %1890 = vmatprep.subr.mxu0 0.0
        %1891 = vmatpush1.xpose.msra.mxu0 0.0
        %1892 = vmatprep.subr.mxu0 0.0
        %1893 = vmatpush1.xpose.msra.mxu0 0.0
        %1894 = vmatprep.subr.mxu0 0.0
        %1895 = vmatpush1.xpose.msra.mxu0 0.0
        %1896 = vmatprep.subr.mxu0 0.0
        %1897 = vmatpush1.xpose.msra.mxu0 0.0
        %1898 = vmatprep.subr.mxu0 0.0
        %1899 = vmatpush1.xpose.msra.mxu0 0.0
        %1900 = vmatprep.subr.mxu0 0.0
        %1901 = vmatpush1.xpose.msra.mxu0 0.0
        %1902 = vmatprep.subr.mxu0 0.0
        %1903 = vmatpush1.xpose.msra.mxu0 0.0
        %1904 = vmatprep.subr.mxu0 0.0
        %1905 = vmatpush1.xpose.msra.mxu0 0.0
        %1906 = vmatprep.subr.mxu0 0.0
        %1907 = vmatpush1.xpose.msra.mxu0 0.0
        %1908 = vmatprep.subr.mxu0 0.0
        %1909 = vmatpush1.xpose.msra.mxu0 0.0
        %1910 = vmatprep.subr.mxu0 0.0
        %1911 = vmatpush1.xpose.msra.mxu0 0.0
        %1912 = vmatprep.subr.mxu0 0.0
        %1913 = vmatpush1.xpose.msra.mxu0 0.0
        %1914 = vmatprep.subr.mxu0 0.0
        %1915 = vmatpush1.xpose.msra.mxu0 0.0
        %1916 = vmatprep.subr.mxu0 0.0
        %1917 = vmatpush1.xpose.msra.mxu0 0.0
        %1918 = vmatprep.subr.mxu0 0.0
        %1919 = vmatpush1.xpose.msra.mxu0 0.0
        %1920 = vmatprep.subr.mxu0 0.0
        %1921 = vmatpush1.xpose.msra.mxu0 0.0
        %1922 = vmatprep.subr.mxu0 0.0
        %1923 = vmatpush1.xpose.msra.mxu0 0.0
        %1924 = vmatprep.mubr.f32.mxu0 0.0
        %1925 = vmatmul.mubr.f32.gmra.mrb[0].mxu0 %v1856
        %v1926 = vpop.f32.mrb[0].mxu0
        %v1927 = vadd.f32 0.0, %v1926
        %v1928 = vpop.f32.mrb[0].mxu0
        %1929 = vdwg.mxu0
        %v1930 = vmul.f32 %v1927, 0.35355338
        %v1931 = vsel %vm1762, %v1930, -1000000.0
        %v1932 = vsel %vm729, %v1931, -inf
        %1933 = vmax.xlane.f32.xlu0 %v1932
        %v1934 = vpop.xlane.xlu0 %1933
        %v1935 = vsub.f32 %v1931, %v1934
        %v1936 = vmul.f32 %v1935, 1.442695
        %v1937 = vpow.pop %v1936
        %v1938 = vsel %vm729, %v1937, 0.0
        %1939 = vadd.xlane.f32.xlu0 %v1938
        %v1940 = vpop.xlane.xlu0 %1939
        %v1941 = vrcp.pop %v1940
        %v1942 = vmul.f32 %v1937, %v1941
        %s1943 = scalar_lea.vmem %s630, 8 [#allocation6]
        %1944 = vst.msk [vmem:[%s1943] sm:$0xff] %vm729, %v1942
        %1945 = vrot.lane.b32.xlu0 %v1680, 88
        %v1946 = vpop.permute.xlu0 %1945
        %v1949 = vsel %vm729, %v1942, 0
        %1951 = vmatprep.subr.mxu0 0.0
        %1952 = vmatpush1.msra.mxu0 %v1946
        %1953 = vmatprep.subr.mxu0 0.0
        %1954 = vmatpush1.msra.mxu0 0.0
        %1955 = vmatprep.subr.mxu0 0.0
        %1956 = vmatpush1.msra.mxu0 0.0
        %1957 = vmatprep.subr.mxu0 0.0
        %1958 = vmatpush1.msra.mxu0 0.0
        %1959 = vmatprep.subr.mxu0 0.0
        %1960 = vmatpush1.msra.mxu0 0.0
        %1961 = vmatprep.subr.mxu0 0.0
        %1962 = vmatpush1.msra.mxu0 0.0
        %1963 = vmatprep.subr.mxu0 0.0
        %1964 = vmatpush1.msra.mxu0 0.0
        %1965 = vmatprep.subr.mxu0 0.0
        %1966 = vmatpush1.msra.mxu0 0.0
        %1967 = vmatprep.subr.mxu0 0.0
        %1968 = vmatpush1.msra.mxu0 0.0
        %1969 = vmatprep.subr.mxu0 0.0
        %1970 = vmatpush1.msra.mxu0 0.0
        %1971 = vmatprep.subr.mxu0 0.0
        %1972 = vmatpush1.msra.mxu0 0.0
        %1973 = vmatprep.subr.mxu0 0.0
        %1974 = vmatpush1.msra.mxu0 0.0
        %1975 = vmatprep.subr.mxu0 0.0
        %1976 = vmatpush1.msra.mxu0 0.0
        %1977 = vmatprep.subr.mxu0 0.0
        %1978 = vmatpush1.msra.mxu0 0.0
        %1979 = vmatprep.subr.mxu0 0.0
        %1980 = vmatpush1.msra.mxu0 0.0
        %1981 = vmatprep.subr.mxu0 0.0
        %1982 = vmatpush1.msra.mxu0 0.0
        %1983 = vmatprep.subr.mxu0 0.0
        %1984 = vmatpush1.msra.mxu0 0.0
        %1985 = vmatprep.subr.mxu0 0.0
        %1986 = vmatpush1.msra.mxu0 0.0
        %1987 = vmatprep.subr.mxu0 0.0
        %1988 = vmatpush1.msra.mxu0 0.0
        %1989 = vmatprep.subr.mxu0 0.0
        %1990 = vmatpush1.msra.mxu0 0.0
        %1991 = vmatprep.subr.mxu0 0.0
        %1992 = vmatpush1.msra.mxu0 0.0
        %1993 = vmatprep.subr.mxu0 0.0
        %1994 = vmatpush1.msra.mxu0 0.0
        %1995 = vmatprep.subr.mxu0 0.0
        %1996 = vmatpush1.msra.mxu0 0.0
        %1997 = vmatprep.subr.mxu0 0.0
        %1998 = vmatpush1.msra.mxu0 0.0
        %1999 = vmatprep.subr.mxu0 0.0
        %2000 = vmatpush1.msra.mxu0 0.0
        %2001 = vmatprep.subr.mxu0 0.0
        %2002 = vmatpush1.msra.mxu0 0.0
        %2003 = vmatprep.subr.mxu0 0.0
        %2004 = vmatpush1.msra.mxu0 0.0
        %2005 = vmatprep.subr.mxu0 0.0
        %2006 = vmatpush1.msra.mxu0 0.0
        %2007 = vmatprep.subr.mxu0 0.0
        %2008 = vmatpush1.msra.mxu0 0.0
        %2009 = vmatprep.subr.mxu0 0.0
        %2010 = vmatpush1.msra.mxu0 0.0
        %2011 = vmatprep.subr.mxu0 0.0
        %2012 = vmatpush1.msra.mxu0 0.0
        %2013 = vmatprep.subr.mxu0 0.0
        %2014 = vmatpush1.msra.mxu0 0.0
        %2015 = vmatprep.mubr.f32.mxu0 0.0
        %2016 = vmatmul.mubr.f32.gmra.mrb[0].mxu0 %v1949
        %v2017 = vpop.f32.mrb[0].mxu0
        %v2018 = vadd.f32 0.0, %v2017
        %v2019 = vpop.f32.mrb[0].mxu0
        %2020 = vdwg.mxu0
        %2021 = vrot.lane.b32.xlu0 %v1603, 112
        %v2022 = vpop.permute.xlu0 %2021
        %2023 = vrot.lane.b32.xlu0 %v1680, 112
        %v2024 = vpop.permute.xlu0 %2023
        %v2025 = vsel %vm729, %v2022, 0
        %v2027 = vsel %vm729, %v2024, 0
        %2029 = vmatprep.subr.mxu0 0.0
        %2030 = vmatpush1.xpose.msra.mxu0 %v2027
        %2031 = vmatprep.subr.mxu0 0.0
        %2032 = vmatpush1.xpose.msra.mxu0 0.0
        %2033 = vmatprep.subr.mxu0 0.0
        %2034 = vmatpush1.xpose.msra.mxu0 0.0
        %2035 = vmatprep.subr.mxu0 0.0
        %2036 = vmatpush1.xpose.msra.mxu0 0.0
        %2037 = vmatprep.subr.mxu0 0.0
        %2038 = vmatpush1.xpose.msra.mxu0 0.0
        %2039 = vmatprep.subr.mxu0 0.0
        %2040 = vmatpush1.xpose.msra.mxu0 0.0
        %2041 = vmatprep.subr.mxu0 0.0
        %2042 = vmatpush1.xpose.msra.mxu0 0.0
        %2043 = vmatprep.subr.mxu0 0.0
        %2044 = vmatpush1.xpose.msra.mxu0 0.0
        %2045 = vmatprep.subr.mxu0 0.0
        %2046 = vmatpush1.xpose.msra.mxu0 0.0
        %2047 = vmatprep.subr.mxu0 0.0
        %2048 = vmatpush1.xpose.msra.mxu0 0.0
        %2049 = vmatprep.subr.mxu0 0.0
        %2050 = vmatpush1.xpose.msra.mxu0 0.0
        %2051 = vmatprep.subr.mxu0 0.0
        %2052 = vmatpush1.xpose.msra.mxu0 0.0
        %2053 = vmatprep.subr.mxu0 0.0
        %2054 = vmatpush1.xpose.msra.mxu0 0.0
        %2055 = vmatprep.subr.mxu0 0.0
        %2056 = vmatpush1.xpose.msra.mxu0 0.0
        %2057 = vmatprep.subr.mxu0 0.0
        %2058 = vmatpush1.xpose.msra.mxu0 0.0
        %2059 = vmatprep.subr.mxu0 0.0
        %2060 = vmatpush1.xpose.msra.mxu0 0.0
        %2061 = vmatprep.subr.mxu0 0.0
        %2062 = vmatpush1.xpose.msra.mxu0 0.0
        %2063 = vmatprep.subr.mxu0 0.0
        %2064 = vmatpush1.xpose.msra.mxu0 0.0
        %2065 = vmatprep.subr.mxu0 0.0
        %2066 = vmatpush1.xpose.msra.mxu0 0.0
        %2067 = vmatprep.subr.mxu0 0.0
        %2068 = vmatpush1.xpose.msra.mxu0 0.0
        %2069 = vmatprep.subr.mxu0 0.0
        %2070 = vmatpush1.xpose.msra.mxu0 0.0
        %2071 = vmatprep.subr.mxu0 0.0
        %2072 = vmatpush1.xpose.msra.mxu0 0.0
        %2073 = vmatprep.subr.mxu0 0.0
        %2074 = vmatpush1.xpose.msra.mxu0 0.0
        %2075 = vmatprep.subr.mxu0 0.0
        %2076 = vmatpush1.xpose.msra.mxu0 0.0
        %2077 = vmatprep.subr.mxu0 0.0
        %2078 = vmatpush1.xpose.msra.mxu0 0.0
        %2079 = vmatprep.subr.mxu0 0.0
        %2080 = vmatpush1.xpose.msra.mxu0 0.0
        %2081 = vmatprep.subr.mxu0 0.0
        %2082 = vmatpush1.xpose.msra.mxu0 0.0
        %2083 = vmatprep.subr.mxu0 0.0
        %2084 = vmatpush1.xpose.msra.mxu0 0.0
        %2085 = vmatprep.subr.mxu0 0.0
        %2086 = vmatpush1.xpose.msra.mxu0 0.0
        %2087 = vmatprep.subr.mxu0 0.0
        %2088 = vmatpush1.xpose.msra.mxu0 0.0
        %2089 = vmatprep.subr.mxu0 0.0
        %2090 = vmatpush1.xpose.msra.mxu0 0.0
        %2091 = vmatprep.subr.mxu0 0.0
        %2092 = vmatpush1.xpose.msra.mxu0 0.0
        %2093 = vmatprep.mubr.f32.mxu0 0.0
        %2094 = vmatmul.mubr.f32.gmra.mrb[0].mxu0 %v2025
        %v2095 = vpop.f32.mrb[0].mxu0
        %v2096 = vadd.f32 0.0, %v2095
        %v2097 = vpop.f32.mrb[0].mxu0
        %2098 = vdwg.mxu0
        %v2099 = vmul.f32 %v2096, 0.35355338
        %v2100 = vsel %vm1762, %v2099, -1000000.0
        %v2101 = vsel %vm729, %v2100, -inf
        %2102 = vmax.xlane.f32.xlu0 %v2101
        %v2103 = vpop.xlane.xlu0 %2102
        %v2104 = vsub.f32 %v2100, %v2103
        %v2105 = vmul.f32 %v2104, 1.442695
        %v2106 = vpow.pop %v2105
        %v2107 = vsel %vm729, %v2106, 0.0
        %2108 = vadd.xlane.f32.xlu0 %v2107
        %v2109 = vpop.xlane.xlu0 %2108
        %v2110 = vrcp.pop %v2109
        %v2111 = vmul.f32 %v2106, %v2110
        %s2112 = scalar_lea.vmem %s630, 16 [#allocation6]
        %2113 = vst.msk [vmem:[%s2112] sm:$0xff] %vm729, %v2111
        %2114 = vrot.lane.b32.xlu0 %v1680, 80
        %v2115 = vpop.permute.xlu0 %2114
        %v2118 = vsel %vm729, %v2111, 0
        %2120 = vmatprep.subr.mxu0 0.0
        %2121 = vmatpush1.msra.mxu0 %v2115
        %2122 = vmatprep.subr.mxu0 0.0
        %2123 = vmatpush1.msra.mxu0 0.0
        %2124 = vmatprep.subr.mxu0 0.0
        %2125 = vmatpush1.msra.mxu0 0.0
        %2126 = vmatprep.subr.mxu0 0.0
        %2127 = vmatpush1.msra.mxu0 0.0
        %2128 = vmatprep.subr.mxu0 0.0
        %2129 = vmatpush1.msra.mxu0 0.0
        %2130 = vmatprep.subr.mxu0 0.0
        %2131 = vmatpush1.msra.mxu0 0.0
        %2132 = vmatprep.subr.mxu0 0.0
        %2133 = vmatpush1.msra.mxu0 0.0
        %2134 = vmatprep.subr.mxu0 0.0
        %2135 = vmatpush1.msra.mxu0 0.0
        %2136 = vmatprep.subr.mxu0 0.0
        %2137 = vmatpush1.msra.mxu0 0.0
        %2138 = vmatprep.subr.mxu0 0.0
        %2139 = vmatpush1.msra.mxu0 0.0
        %2140 = vmatprep.subr.mxu0 0.0
        %2141 = vmatpush1.msra.mxu0 0.0
        %2142 = vmatprep.subr.mxu0 0.0
        %2143 = vmatpush1.msra.mxu0 0.0
        %2144 = vmatprep.subr.mxu0 0.0
        %2145 = vmatpush1.msra.mxu0 0.0
        %2146 = vmatprep.subr.mxu0 0.0
        %2147 = vmatpush1.msra.mxu0 0.0
        %2148 = vmatprep.subr.mxu0 0.0
        %2149 = vmatpush1.msra.mxu0 0.0
        %2150 = vmatprep.subr.mxu0 0.0
        %2151 = vmatpush1.msra.mxu0 0.0
        %2152 = vmatprep.subr.mxu0 0.0
        %2153 = vmatpush1.msra.mxu0 0.0
        %2154 = vmatprep.subr.mxu0 0.0
        %2155 = vmatpush1.msra.mxu0 0.0
        %2156 = vmatprep.subr.mxu0 0.0
        %2157 = vmatpush1.msra.mxu0 0.0
        %2158 = vmatprep.subr.mxu0 0.0
        %2159 = vmatpush1.msra.mxu0 0.0
        %2160 = vmatprep.subr.mxu0 0.0
        %2161 = vmatpush1.msra.mxu0 0.0
        %2162 = vmatprep.subr.mxu0 0.0
        %2163 = vmatpush1.msra.mxu0 0.0
        %2164 = vmatprep.subr.mxu0 0.0
        %2165 = vmatpush1.msra.mxu0 0.0
        %2166 = vmatprep.subr.mxu0 0.0
        %2167 = vmatpush1.msra.mxu0 0.0
        %2168 = vmatprep.subr.mxu0 0.0
        %2169 = vmatpush1.msra.mxu0 0.0
        %2170 = vmatprep.subr.mxu0 0.0
        %2171 = vmatpush1.msra.mxu0 0.0
        %2172 = vmatprep.subr.mxu0 0.0
        %2173 = vmatpush1.msra.mxu0 0.0
        %2174 = vmatprep.subr.mxu0 0.0
        %2175 = vmatpush1.msra.mxu0 0.0
        %2176 = vmatprep.subr.mxu0 0.0
        %2177 = vmatpush1.msra.mxu0 0.0
        %2178 = vmatprep.subr.mxu0 0.0
        %2179 = vmatpush1.msra.mxu0 0.0
        %2180 = vmatprep.subr.mxu0 0.0
        %2181 = vmatpush1.msra.mxu0 0.0
        %2182 = vmatprep.subr.mxu0 0.0
        %2183 = vmatpush1.msra.mxu0 0.0
        %2184 = vmatprep.mubr.f32.mxu0 0.0
        %2185 = vmatmul.mubr.f32.gmra.mrb[0].mxu0 %v2118
        %v2186 = vpop.f32.mrb[0].mxu0
        %v2187 = vadd.f32 0.0, %v2186
        %v2188 = vpop.f32.mrb[0].mxu0
        %2189 = vdwg.mxu0
        %2190 = vrot.lane.b32.xlu0 %v1603, 104
        %v2191 = vpop.permute.xlu0 %2190
        %2192 = vrot.lane.b32.xlu0 %v1680, 104
        %v2193 = vpop.permute.xlu0 %2192
        %v2194 = vsel %vm729, %v2191, 0
        %v2196 = vsel %vm729, %v2193, 0
        %2198 = vmatprep.subr.mxu0 0.0
        %2199 = vmatpush1.xpose.msra.mxu0 %v2196
        %2200 = vmatprep.subr.mxu0 0.0
        %2201 = vmatpush1.xpose.msra.mxu0 0.0
        %2202 = vmatprep.subr.mxu0 0.0
        %2203 = vmatpush1.xpose.msra.mxu0 0.0
        %2204 = vmatprep.subr.mxu0 0.0
        %2205 = vmatpush1.xpose.msra.mxu0 0.0
        %2206 = vmatprep.subr.mxu0 0.0
        %2207 = vmatpush1.xpose.msra.mxu0 0.0
        %2208 = vmatprep.subr.mxu0 0.0
        %2209 = vmatpush1.xpose.msra.mxu0 0.0
        %2210 = vmatprep.subr.mxu0 0.0
        %2211 = vmatpush1.xpose.msra.mxu0 0.0
        %2212 = vmatprep.subr.mxu0 0.0
        %2213 = vmatpush1.xpose.msra.mxu0 0.0
        %2214 = vmatprep.subr.mxu0 0.0
        %2215 = vmatpush1.xpose.msra.mxu0 0.0
        %2216 = vmatprep.subr.mxu0 0.0
        %2217 = vmatpush1.xpose.msra.mxu0 0.0
        %2218 = vmatprep.subr.mxu0 0.0
        %2219 = vmatpush1.xpose.msra.mxu0 0.0
        %2220 = vmatprep.subr.mxu0 0.0
        %2221 = vmatpush1.xpose.msra.mxu0 0.0
        %2222 = vmatprep.subr.mxu0 0.0
        %2223 = vmatpush1.xpose.msra.mxu0 0.0
        %2224 = vmatprep.subr.mxu0 0.0
        %2225 = vmatpush1.xpose.msra.mxu0 0.0
        %2226 = vmatprep.subr.mxu0 0.0
        %2227 = vmatpush1.xpose.msra.mxu0 0.0
        %2228 = vmatprep.subr.mxu0 0.0
        %2229 = vmatpush1.xpose.msra.mxu0 0.0
        %2230 = vmatprep.subr.mxu0 0.0
        %2231 = vmatpush1.xpose.msra.mxu0 0.0
        %2232 = vmatprep.subr.mxu0 0.0
        %2233 = vmatpush1.xpose.msra.mxu0 0.0
        %2234 = vmatprep.subr.mxu0 0.0
        %2235 = vmatpush1.xpose.msra.mxu0 0.0
        %2236 = vmatprep.subr.mxu0 0.0
        %2237 = vmatpush1.xpose.msra.mxu0 0.0
        %2238 = vmatprep.subr.mxu0 0.0
        %2239 = vmatpush1.xpose.msra.mxu0 0.0
        %2240 = vmatprep.subr.mxu0 0.0
        %2241 = vmatpush1.xpose.msra.mxu0 0.0
        %2242 = vmatprep.subr.mxu0 0.0
        %2243 = vmatpush1.xpose.msra.mxu0 0.0
        %2244 = vmatprep.subr.mxu0 0.0
        %2245 = vmatpush1.xpose.msra.mxu0 0.0
        %2246 = vmatprep.subr.mxu0 0.0
        %2247 = vmatpush1.xpose.msra.mxu0 0.0
        %2248 = vmatprep.subr.mxu0 0.0
        %2249 = vmatpush1.xpose.msra.mxu0 0.0
        %2250 = vmatprep.subr.mxu0 0.0
        %2251 = vmatpush1.xpose.msra.mxu0 0.0
        %2252 = vmatprep.subr.mxu0 0.0
        %2253 = vmatpush1.xpose.msra.mxu0 0.0
        %2254 = vmatprep.subr.mxu0 0.0
        %2255 = vmatpush1.xpose.msra.mxu0 0.0
        %2256 = vmatprep.subr.mxu0 0.0
        %2257 = vmatpush1.xpose.msra.mxu0 0.0
        %2258 = vmatprep.subr.mxu0 0.0
        %2259 = vmatpush1.xpose.msra.mxu0 0.0
        %2260 = vmatprep.subr.mxu0 0.0
        %2261 = vmatpush1.xpose.msra.mxu0 0.0
        %2262 = vmatprep.mubr.f32.mxu0 0.0
        %2263 = vmatmul.mubr.f32.gmra.mrb[0].mxu0 %v2194
        %v2264 = vpop.f32.mrb[0].mxu0
        %v2265 = vadd.f32 0.0, %v2264
        %v2266 = vpop.f32.mrb[0].mxu0
        %2267 = vdwg.mxu0
        %v2268 = vmul.f32 %v2265, 0.35355338
        %v2269 = vsel %vm1762, %v2268, -1000000.0
        %v2270 = vsel %vm729, %v2269, -inf
        %2271 = vmax.xlane.f32.xlu0 %v2270
        %v2272 = vpop.xlane.xlu0 %2271
        %v2273 = vsub.f32 %v2269, %v2272
        %v2274 = vmul.f32 %v2273, 1.442695
        %v2275 = vpow.pop %v2274
        %v2276 = vsel %vm729, %v2275, 0.0
        %2277 = vadd.xlane.f32.xlu0 %v2276
        %v2278 = vpop.xlane.xlu0 %2277
        %v2279 = vrcp.pop %v2278
        %v2280 = vmul.f32 %v2275, %v2279
        %s2281 = scalar_lea.vmem %s630, 24 [#allocation6]
        %2282 = vst.msk [vmem:[%s2281] sm:$0xff] %vm729, %v2280
        %2283 = vrot.lane.b32.xlu0 %v1680, 72
        %v2284 = vpop.permute.xlu0 %2283
        %v2287 = vsel %vm729, %v2280, 0
        %2289 = vmatprep.subr.mxu0 0.0
        %2290 = vmatpush1.msra.mxu0 %v2284
        %2291 = vmatprep.subr.mxu0 0.0
        %2292 = vmatpush1.msra.mxu0 0.0
        %2293 = vmatprep.subr.mxu0 0.0
        %2294 = vmatpush1.msra.mxu0 0.0
        %2295 = vmatprep.subr.mxu0 0.0
        %2296 = vmatpush1.msra.mxu0 0.0
        %2297 = vmatprep.subr.mxu0 0.0
        %2298 = vmatpush1.msra.mxu0 0.0
        %2299 = vmatprep.subr.mxu0 0.0
        %2300 = vmatpush1.msra.mxu0 0.0
        %2301 = vmatprep.subr.mxu0 0.0
        %2302 = vmatpush1.msra.mxu0 0.0
        %2303 = vmatprep.subr.mxu0 0.0
        %2304 = vmatpush1.msra.mxu0 0.0
        %2305 = vmatprep.subr.mxu0 0.0
        %2306 = vmatpush1.msra.mxu0 0.0
        %2307 = vmatprep.subr.mxu0 0.0
        %2308 = vmatpush1.msra.mxu0 0.0
        %2309 = vmatprep.subr.mxu0 0.0
        %2310 = vmatpush1.msra.mxu0 0.0
        %2311 = vmatprep.subr.mxu0 0.0
        %2312 = vmatpush1.msra.mxu0 0.0
        %2313 = vmatprep.subr.mxu0 0.0
        %2314 = vmatpush1.msra.mxu0 0.0
        %2315 = vmatprep.subr.mxu0 0.0
        %2316 = vmatpush1.msra.mxu0 0.0
        %2317 = vmatprep.subr.mxu0 0.0
        %2318 = vmatpush1.msra.mxu0 0.0
        %2319 = vmatprep.subr.mxu0 0.0
        %2320 = vmatpush1.msra.mxu0 0.0
        %2321 = vmatprep.subr.mxu0 0.0
        %2322 = vmatpush1.msra.mxu0 0.0
        %2323 = vmatprep.subr.mxu0 0.0
        %2324 = vmatpush1.msra.mxu0 0.0
        %2325 = vmatprep.subr.mxu0 0.0
        %2326 = vmatpush1.msra.mxu0 0.0
        %2327 = vmatprep.subr.mxu0 0.0
        %2328 = vmatpush1.msra.mxu0 0.0
        %2329 = vmatprep.subr.mxu0 0.0
        %2330 = vmatpush1.msra.mxu0 0.0
        %2331 = vmatprep.subr.mxu0 0.0
        %2332 = vmatpush1.msra.mxu0 0.0
        %2333 = vmatprep.subr.mxu0 0.0
        %2334 = vmatpush1.msra.mxu0 0.0
        %2335 = vmatprep.subr.mxu0 0.0
        %2336 = vmatpush1.msra.mxu0 0.0
        %2337 = vmatprep.subr.mxu0 0.0
        %2338 = vmatpush1.msra.mxu0 0.0
        %2339 = vmatprep.subr.mxu0 0.0
        %2340 = vmatpush1.msra.mxu0 0.0
        %2341 = vmatprep.subr.mxu0 0.0
        %2342 = vmatpush1.msra.mxu0 0.0
        %2343 = vmatprep.subr.mxu0 0.0
        %2344 = vmatpush1.msra.mxu0 0.0
        %2345 = vmatprep.subr.mxu0 0.0
        %2346 = vmatpush1.msra.mxu0 0.0
        %2347 = vmatprep.subr.mxu0 0.0
        %2348 = vmatpush1.msra.mxu0 0.0
        %2349 = vmatprep.subr.mxu0 0.0
        %2350 = vmatpush1.msra.mxu0 0.0
        %2351 = vmatprep.subr.mxu0 0.0
        %2352 = vmatpush1.msra.mxu0 0.0
        %2353 = vmatprep.mubr.f32.mxu0 0.0
        %2354 = vmatmul.mubr.f32.gmra.mrb[0].mxu0 %v2287
        %v2355 = vpop.f32.mrb[0].mxu0
        %v2356 = vadd.f32 0.0, %v2355
        %v2357 = vpop.f32.mrb[0].mxu0
        %2358 = vdwg.mxu0
        %2360 = vrot.lane.b32.xlu0 %v2018, 8
        %v2361 = vpop.permute.xlu0 %2360
        %2364 = vrot.lane.b32.xlu0 %v2187, 16
        %v2365 = vpop.permute.xlu0 %2364
        %2368 = vrot.lane.b32.xlu0 %v2356, 24
        %v2369 = vpop.permute.xlu0 %2368
        %v2371 = vsel %vm729, %v1849, %v2361
        %v2372 = vsel %vm1417, %v2371, %v2365
        %v2373 = vsel %vm1419, %v2372, %v2369
        %v2374 = vld [vmem:[%s9] sm:$0xff]
        %v2375 = vld [vmem:[%s9 + $0x8] sm:$0xff]
        %v2376 = vld [vmem:[%s9 + $0x10] sm:$0xff]
        %v2377 = vld [vmem:[%s9 + $0x18] sm:$0xff]
        %v2379 = vsel %vm649, %v2373, 0
        %2381 = vmatprep.subr.mxu0 0.0
        %2382 = vmatpush1.msra.mxu0 %v2374
        %2383 = vmatprep.subr.mxu0 0.0
        %2384 = vmatpush1.msra.mxu0 %v2375
        %2385 = vmatprep.subr.mxu0 0.0
        %2386 = vmatpush1.msra.mxu0 %v2376
        %2387 = vmatprep.subr.mxu0 0.0
        %2388 = vmatpush1.msra.mxu0 %v2377
        %2389 = vmatprep.subr.mxu0 0.0
        %2390 = vmatpush1.msra.mxu0 0.0
        %2391 = vmatprep.subr.mxu0 0.0
        %2392 = vmatpush1.msra.mxu0 0.0
        %2393 = vmatprep.subr.mxu0 0.0
        %2394 = vmatpush1.msra.mxu0 0.0
        %2395 = vmatprep.subr.mxu0 0.0
        %2396 = vmatpush1.msra.mxu0 0.0
        %2397 = vmatprep.subr.mxu0 0.0
        %2398 = vmatpush1.msra.mxu0 0.0
        %2399 = vmatprep.subr.mxu0 0.0
        %2400 = vmatpush1.msra.mxu0 0.0
        %2401 = vmatprep.subr.mxu0 0.0
        %2402 = vmatpush1.msra.mxu0 0.0
        %2403 = vmatprep.subr.mxu0 0.0
        %2404 = vmatpush1.msra.mxu0 0.0
        %2405 = vmatprep.subr.mxu0 0.0
        %2406 = vmatpush1.msra.mxu0 0.0
        %2407 = vmatprep.subr.mxu0 0.0
        %2408 = vmatpush1.msra.mxu0 0.0
        %2409 = vmatprep.subr.mxu0 0.0
        %2410 = vmatpush1.msra.mxu0 0.0
        %2411 = vmatprep.subr.mxu0 0.0
        %2412 = vmatpush1.msra.mxu0 0.0
        %2413 = vmatprep.subr.mxu0 0.0
        %2414 = vmatpush1.msra.mxu0 0.0
        %2415 = vmatprep.subr.mxu0 0.0
        %2416 = vmatpush1.msra.mxu0 0.0
        %2417 = vmatprep.subr.mxu0 0.0
        %2418 = vmatpush1.msra.mxu0 0.0
        %2419 = vmatprep.subr.mxu0 0.0
        %2420 = vmatpush1.msra.mxu0 0.0
        %2421 = vmatprep.subr.mxu0 0.0
        %2422 = vmatpush1.msra.mxu0 0.0
        %2423 = vmatprep.subr.mxu0 0.0
        %2424 = vmatpush1.msra.mxu0 0.0
        %2425 = vmatprep.subr.mxu0 0.0
        %2426 = vmatpush1.msra.mxu0 0.0
        %2427 = vmatprep.subr.mxu0 0.0
        %2428 = vmatpush1.msra.mxu0 0.0
        %2429 = vmatprep.subr.mxu0 0.0
        %2430 = vmatpush1.msra.mxu0 0.0
        %2431 = vmatprep.subr.mxu0 0.0
        %2432 = vmatpush1.msra.mxu0 0.0
        %2433 = vmatprep.subr.mxu0 0.0
        %2434 = vmatpush1.msra.mxu0 0.0
        %2435 = vmatprep.subr.mxu0 0.0
        %2436 = vmatpush1.msra.mxu0 0.0
        %2437 = vmatprep.subr.mxu0 0.0
        %2438 = vmatpush1.msra.mxu0 0.0
        %2439 = vmatprep.subr.mxu0 0.0
        %2440 = vmatpush1.msra.mxu0 0.0
        %2441 = vmatprep.subr.mxu0 0.0
        %2442 = vmatpush1.msra.mxu0 0.0
        %2443 = vmatprep.subr.mxu0 0.0
        %2444 = vmatpush1.msra.mxu0 0.0
        %2445 = vmatprep.mubr.f32.mxu0 0.0
        %2446 = vmatmul.mubr.f32.gmra.mrb[0].mxu0 %v2379
        %v2447 = vpop.f32.mrb[0].mxu0
        %v2448 = vadd.f32 0.0, %v2447
        %v2449 = vpop.f32.mrb[0].mxu0
        %2450 = vdwg.mxu0
        %v2451 = vadd.f32 %v1528, %v2448
        %v2452 = vld [vmem:[%s10] sm:$0x1]
        %v2453 = vld [vmem:[%s11] sm:$0x1]
        %v2454 = vsel %vm649, %v2451, 0.0
        %2455 = vadd.xlane.f32.xlu0 %v2454
        %v2456 = vpop.xlane.xlu0 %2455
        %v2457 = vmul.f32 %v2456, %v1504
        %v2458 = vsub.f32 %v2451, %v2457
        %v2459 = vmul.f32 %v2458, %v2458
        %v2460 = vsel %vm649, %v2459, 0.0
        %2461 = vadd.xlane.f32.xlu0 %v2460
        %v2462 = vpop.xlane.xlu0 %2461
        %v2463 = vmul.f32 %v2462, %v1504
        %v2464 = vadd.f32 %v2463, 1e-05
        %v2465 = vrsqrt.pop %v2464
        %v2466 = vmul.f32 %v2458, %v2465
        %v2468 = vlaneseq
        %v2469 = vshrl.u32 %v2468, 7
        %v2470 = vsub.s32 0, %v2469
        %v2471 = vrot.slane %v2452, %v2470
        %v2473 = vmul.f32 %v2466, %v2471
        %v2475 = vlaneseq
        %v2476 = vshrl.u32 %v2475, 7
        %v2477 = vsub.s32 0, %v2476
        %v2478 = vrot.slane %v2453, %v2477
        %v2480 = vadd.f32 %v2473, %v2478
        %v2481 = vld [vmem:[%s12] sm:$0xff]
        %v2482 = vld [vmem:[%s12 + $0x8] sm:$0xff]
        %v2483 = vld [vmem:[%s12 + $0x10] sm:$0xff]
        %v2484 = vld [vmem:[%s12 + $0x18] sm:$0xff]
        %v2485 = vld [vmem:[%s13] sm:$0x1]
        %v2487 = vlaneseq
        %v2488 = vshrl.u32 %v2487, 7
        %v2489 = vsub.s32 0, %v2488
        %v2490 = vrot.slane %v2485, %v2489
        %v2493 = vsel %vm649, %v2480, 0
        %2495 = vmatprep.subr.mxu0 0.0
        %2496 = vmatpush1.msra.mxu0 %v2481
        %2497 = vmatprep.subr.mxu0 0.0
        %2498 = vmatpush1.msra.mxu0 %v2482
        %2499 = vmatprep.subr.mxu0 0.0
        %2500 = vmatpush1.msra.mxu0 %v2483
        %2501 = vmatprep.subr.mxu0 0.0
        %2502 = vmatpush1.msra.mxu0 %v2484
        %2503 = vmatprep.subr.mxu0 0.0
        %2504 = vmatpush1.msra.mxu0 0.0
        %2505 = vmatprep.subr.mxu0 0.0
        %2506 = vmatpush1.msra.mxu0 0.0
        %2507 = vmatprep.subr.mxu0 0.0
        %2508 = vmatpush1.msra.mxu0 0.0
        %2509 = vmatprep.subr.mxu0 0.0
        %2510 = vmatpush1.msra.mxu0 0.0
        %2511 = vmatprep.subr.mxu0 0.0
        %2512 = vmatpush1.msra.mxu0 0.0
        %2513 = vmatprep.subr.mxu0 0.0
        %2514 = vmatpush1.msra.mxu0 0.0
        %2515 = vmatprep.subr.mxu0 0.0
        %2516 = vmatpush1.msra.mxu0 0.0
        %2517 = vmatprep.subr.mxu0 0.0
        %2518 = vmatpush1.msra.mxu0 0.0
        %2519 = vmatprep.subr.mxu0 0.0
        %2520 = vmatpush1.msra.mxu0 0.0
        %2521 = vmatprep.subr.mxu0 0.0
        %2522 = vmatpush1.msra.mxu0 0.0
        %2523 = vmatprep.subr.mxu0 0.0
        %2524 = vmatpush1.msra.mxu0 0.0
        %2525 = vmatprep.subr.mxu0 0.0
        %2526 = vmatpush1.msra.mxu0 0.0
        %2527 = vmatprep.subr.mxu0 0.0
        %2528 = vmatpush1.msra.mxu0 0.0
        %2529 = vmatprep.subr.mxu0 0.0
        %2530 = vmatpush1.msra.mxu0 0.0
        %2531 = vmatprep.subr.mxu0 0.0
        %2532 = vmatpush1.msra.mxu0 0.0
        %2533 = vmatprep.subr.mxu0 0.0
        %2534 = vmatpush1.msra.mxu0 0.0
        %2535 = vmatprep.subr.mxu0 0.0
        %2536 = vmatpush1.msra.mxu0 0.0
        %2537 = vmatprep.subr.mxu0 0.0
        %2538 = vmatpush1.msra.mxu0 0.0
        %2539 = vmatprep.subr.mxu0 0.0
        %2540 = vmatpush1.msra.mxu0 0.0
        %2541 = vmatprep.subr.mxu0 0.0
        %2542 = vmatpush1.msra.mxu0 0.0
        %2543 = vmatprep.subr.mxu0 0.0
        %2544 = vmatpush1.msra.mxu0 0.0
        %2545 = vmatprep.subr.mxu0 0.0
        %2546 = vmatpush1.msra.mxu0 0.0
        %2547 = vmatprep.subr.mxu0 0.0
        %2548 = vmatpush1.msra.mxu0 0.0
        %2549 = vmatprep.subr.mxu0 0.0
        %2550 = vmatpush1.msra.mxu0 0.0
        %2551 = vmatprep.subr.mxu0 0.0
        %2552 = vmatpush1.msra.mxu0 0.0
        %2553 = vmatprep.subr.mxu0 0.0
        %2554 = vmatpush1.msra.mxu0 0.0
        %2555 = vmatprep.subr.mxu0 0.0
        %2556 = vmatpush1.msra.mxu0 0.0
        %2557 = vmatprep.subr.mxu0 0.0
        %2558 = vmatpush1.msra.mxu0 0.0
        %2559 = vmatprep.mubr.f32.mxu0 0.0
        %2560 = vmatmul.mubr.f32.gmra.mrb[0].mxu0 %v2493
        %v2561 = vpop.f32.mrb[0].mxu0
        %v2562 = vadd.f32 %v2490, %v2561
        %v2563 = vpop.f32.mrb[0].mxu0
        %2564 = vdwg.mxu0
        %v2565 = vmax.f32 %v2562, 0.0
        %v2566 = vld [vmem:[%s14] sm:$0xff]
        %v2567 = vld [vmem:[%s14 + $0x8] sm:$0xff]
        %v2568 = vld [vmem:[%s14 + $0x10] sm:$0xff]
        %v2569 = vld [vmem:[%s14 + $0x18] sm:$0xff]
        %v2570 = vld [vmem:[%s14 + $0x20] sm:$0xff]
        %v2571 = vld [vmem:[%s14 + $0x28] sm:$0xff]
        %v2572 = vld [vmem:[%s14 + $0x30] sm:$0xff]
        %v2573 = vld [vmem:[%s14 + $0x38] sm:$0xff]
        %v2574 = vld [vmem:[%s15] sm:$0x1]
        %v2576 = vlaneseq
        %v2577 = vshrl.u32 %v2576, 7
        %v2578 = vsub.s32 0, %v2577
        %v2579 = vrot.slane %v2574, %v2578
        %vm2581 = vcmask 523264
        %v2583 = vsel %vm2581, %v2565, 0
        %2585 = vmatprep.subr.mxu0 0.0
        %2586 = vmatpush1.msra.mxu0 %v2566
        %2587 = vmatprep.subr.mxu0 0.0
        %2588 = vmatpush1.msra.mxu0 %v2567
        %2589 = vmatprep.subr.mxu0 0.0
        %2590 = vmatpush1.msra.mxu0 %v2568
        %2591 = vmatprep.subr.mxu0 0.0
        %2592 = vmatpush1.msra.mxu0 %v2569
        %2593 = vmatprep.subr.mxu0 0.0
        %2594 = vmatpush1.msra.mxu0 %v2570
        %2595 = vmatprep.subr.mxu0 0.0
        %2596 = vmatpush1.msra.mxu0 %v2571
        %2597 = vmatprep.subr.mxu0 0.0
        %2598 = vmatpush1.msra.mxu0 %v2572
        %2599 = vmatprep.subr.mxu0 0.0
        %2600 = vmatpush1.msra.mxu0 %v2573
        %2601 = vmatprep.subr.mxu0 0.0
        %2602 = vmatpush1.msra.mxu0 0.0
        %2603 = vmatprep.subr.mxu0 0.0
        %2604 = vmatpush1.msra.mxu0 0.0
        %2605 = vmatprep.subr.mxu0 0.0
        %2606 = vmatpush1.msra.mxu0 0.0
        %2607 = vmatprep.subr.mxu0 0.0
        %2608 = vmatpush1.msra.mxu0 0.0
        %2609 = vmatprep.subr.mxu0 0.0
        %2610 = vmatpush1.msra.mxu0 0.0
        %2611 = vmatprep.subr.mxu0 0.0
        %2612 = vmatpush1.msra.mxu0 0.0
        %2613 = vmatprep.subr.mxu0 0.0
        %2614 = vmatpush1.msra.mxu0 0.0
        %2615 = vmatprep.subr.mxu0 0.0
        %2616 = vmatpush1.msra.mxu0 0.0
        %2617 = vmatprep.subr.mxu0 0.0
        %2618 = vmatpush1.msra.mxu0 0.0
        %2619 = vmatprep.subr.mxu0 0.0
        %2620 = vmatpush1.msra.mxu0 0.0
        %2621 = vmatprep.subr.mxu0 0.0
        %2622 = vmatpush1.msra.mxu0 0.0
        %2623 = vmatprep.subr.mxu0 0.0
        %2624 = vmatpush1.msra.mxu0 0.0
        %2625 = vmatprep.subr.mxu0 0.0
        %2626 = vmatpush1.msra.mxu0 0.0
        %2627 = vmatprep.subr.mxu0 0.0
        %2628 = vmatpush1.msra.mxu0 0.0
        %2629 = vmatprep.subr.mxu0 0.0
        %2630 = vmatpush1.msra.mxu0 0.0
        %2631 = vmatprep.subr.mxu0 0.0
        %2632 = vmatpush1.msra.mxu0 0.0
        %2633 = vmatprep.subr.mxu0 0.0
        %2634 = vmatpush1.msra.mxu0 0.0
        %2635 = vmatprep.subr.mxu0 0.0
        %2636 = vmatpush1.msra.mxu0 0.0
        %2637 = vmatprep.subr.mxu0 0.0
        %2638 = vmatpush1.msra.mxu0 0.0
        %2639 = vmatprep.subr.mxu0 0.0
        %2640 = vmatpush1.msra.mxu0 0.0
        %2641 = vmatprep.subr.mxu0 0.0
        %2642 = vmatpush1.msra.mxu0 0.0
        %2643 = vmatprep.subr.mxu0 0.0
        %2644 = vmatpush1.msra.mxu0 0.0
        %2645 = vmatprep.subr.mxu0 0.0
        %2646 = vmatpush1.msra.mxu0 0.0
        %2647 = vmatprep.subr.mxu0 0.0
        %2648 = vmatpush1.msra.mxu0 0.0
        %2649 = vmatprep.mubr.f32.mxu0 0.0
        %2650 = vmatmul.mubr.f32.gmra.mrb[0].mxu0 %v2583
        %v2651 = vpop.f32.mrb[0].mxu0
        %v2652 = vadd.f32 %v2579, %v2651
        %v2653 = vpop.f32.mrb[0].mxu0
        %2654 = vdwg.mxu0
        %v2655 = vadd.f32 %v2480, %v2652
        %v2656 = vld [vmem:[%s16] sm:$0x1]
        %v2657 = vld [vmem:[%s17] sm:$0x1]
        %v2658 = vsel %vm649, %v2655, 0.0
        %2659 = vadd.xlane.f32.xlu0 %v2658
        %v2660 = vpop.xlane.xlu0 %2659
        %v2661 = vmul.f32 %v2660, %v1504
        %v2662 = vsub.f32 %v2655, %v2661
        %v2663 = vmul.f32 %v2662, %v2662
        %v2664 = vsel %vm649, %v2663, 0.0
        %2665 = vadd.xlane.f32.xlu0 %v2664
        %v2666 = vpop.xlane.xlu0 %2665
        %v2667 = vmul.f32 %v2666, %v1504
        %v2668 = vadd.f32 %v2667, 1e-05
        %v2669 = vrsqrt.pop %v2668
        %v2670 = vmul.f32 %v2662, %v2669
        %v2672 = vlaneseq
        %v2673 = vshrl.u32 %v2672, 7
        %v2674 = vsub.s32 0, %v2673
        %v2675 = vrot.slane %v2656, %v2674
        %v2677 = vmul.f32 %v2670, %v2675
        %v2679 = vlaneseq
        %v2680 = vshrl.u32 %v2679, 7
        %v2681 = vsub.s32 0, %v2680
        %v2682 = vrot.slane %v2657, %v2681
        %v2684 = vadd.f32 %v2677, %v2682
        %2685 = vst.msk [vmem:[%s642] sm:$0xff] %vm649, %v2684
        %p2686 = scmp.lt.s32.totalorder %s44, 1
        %s2687 = scalar_select %p2686, %s44, 1
        %s2688 = smul.addr %s2687, 8
        %s2689 = scalar_lea.vmem %s18, %s2688
        %s2690 = sand.u32 %s445, 1
        %s2691 = scalar_lea.sflag [#allocation5], %s2690
        %s2692 = sand.u32 %s445, 1
        %s2693 = smul.addr %s2692, 32
        %s2694 = scalar_lea.vmem [#allocation4], %s2693
        %s2695 = sand.u32 %s471, 1
        %s2696 = scalar_lea.sflag [#allocation7], %s2695
        %s2697 = sand.u32 %s471, 1
        %s2698 = smul.addr %s2697, 32
        %s2699 = scalar_lea.vmem [#allocation6], %s2698
        // Predicated region
        $region89: #{transformer_decoder_forward.5} parent=87 // pred_check
          %p2700 = pneg %p429
        $region90: #{transformer_decoder_forward.5} parent=87 // pred_check_branch
          %2702 = sbr.rel (%p2700) target = $region92
        $region91: #{transformer_decoder_forward.5} parent=87 // pred_region
          _
        $region92: #{transformer_decoder_forward.5} parent=87 // pred_fallthru
          _
        // Predicated region
        $region93: #{transformer_decoder_forward.5} parent=87 // pred_check
          %p2703 = pneg %p455
        $region94: #{transformer_decoder_forward.5} parent=87 // pred_check_branch
          %2705 = sbr.rel (%p2703) target = $region96
        $region95: #{transformer_decoder_forward.5} parent=87 // pred_region
          %s2707 = ssub.s32 512, 512
          %2708 = vsyncadd %s2691, %s2707
          %s2709 = smul.addr %s44, 4
          %s2710 = smul.addr %s2709, 128
          %s2711 = scalar_lea.hbm %s19, %s2710
          %s2712 = sshll.u32 %s2694, 4
          %s2713 = int_to_ptr.vmem [resolvable:$true] %s2712
          %2718 = dma.vmem_to_hbm [thread:$0]  %s2713, 512, %s2711, %s2691, 128, 128, 8
        $region96: #{transformer_decoder_forward.5} parent=87 // pred_fallthru
          _
        // Predicated region
        $region97: #{transformer_decoder_forward.5} parent=87 // pred_check
          %p2719 = pneg %p481
        $region98: #{transformer_decoder_forward.5} parent=87 // pred_check_branch
          %2721 = sbr.rel (%p2719) target = $region100
        $region99: #{transformer_decoder_forward.5} parent=87 // pred_region
          %s2723 = ssub.s32 512, 512
          %2724 = vsyncadd %s2696, %s2723
          %s2725 = smul.addr %s44, 4
          %s2726 = smul.addr %s2725, 128
          %s2727 = scalar_lea.hbm %s20, %s2726
          %s2728 = sshll.u32 %s2699, 4
          %s2729 = int_to_ptr.vmem [resolvable:$true] %s2728
          %2734 = dma.vmem_to_hbm [thread:$0]  %s2729, 512, %s2727, %s2696, 128, 128, 8
        $region100: #{transformer_decoder_forward.5} parent=87 // pred_fallthru
          _
      $region88: #{transformer_decoder_forward.5} parent=5 // pred_fallthru
        _
      %p2735 = scmp.le.s32.totalorder 2, %s39
      // Predicated region
      $region101: #{transformer_decoder_forward.5} parent=5 // pred_check
        %p2736 = pneg %p2735
      $region102: #{transformer_decoder_forward.5} parent=5 // pred_check_branch
        %2738 = sbr.rel (%p2736) target = $region104
      $region103: #{transformer_decoder_forward.5} parent=5 // pred_region
        %s2739 = ssub.s32 %s39, 2
        // Predicated region
        $region105: #{transformer_decoder_forward.5} parent=103 // pred_check
          %p2740 = pneg %p435
        $region106: #{transformer_decoder_forward.5} parent=103 // pred_check_branch
          %2742 = sbr.rel (%p2740) target = $region108
        $region107: #{transformer_decoder_forward.5} parent=103 // pred_region
          %p2743 = scmp.lt.s32.totalorder %s45, 1
          %s2744 = scalar_select %p2743, %s45, 1
          %s2745 = smul.addr %s2744, 8
          %s2746 = scalar_lea.vmem %s18, %s2745
        $region108: #{transformer_decoder_forward.5} parent=103 // pred_fallthru
          _
        // Predicated region
        $region109: #{transformer_decoder_forward.5} parent=103 // pred_check
          %p2747 = pneg %p461
        $region110: #{transformer_decoder_forward.5} parent=103 // pred_check_branch
          %2749 = sbr.rel (%p2747) target = $region112
        $region111: #{transformer_decoder_forward.5} parent=103 // pred_region
          %s2750 = sand.u32 %s446, 1
          %s2751 = scalar_lea.sflag [#allocation5], %s2750
          %s2752 = sand.u32 %s446, 1
          %s2753 = smul.addr %s2752, 32
          %s2754 = scalar_lea.vmem [#allocation4], %s2753
          %2755 = dma.done %s2751, 512
        $region112: #{transformer_decoder_forward.5} parent=103 // pred_fallthru
          _
        // Predicated region
        $region113: #{transformer_decoder_forward.5} parent=103 // pred_check
          %p2756 = pneg %p487
        $region114: #{transformer_decoder_forward.5} parent=103 // pred_check_branch
          %2758 = sbr.rel (%p2756) target = $region116
        $region115: #{transformer_decoder_forward.5} parent=103 // pred_region
          %s2759 = sand.u32 %s472, 1
          %s2760 = scalar_lea.sflag [#allocation7], %s2759
          %s2761 = sand.u32 %s472, 1
          %s2762 = smul.addr %s2761, 32
          %s2763 = scalar_lea.vmem [#allocation6], %s2762
          %2764 = dma.done %s2760, 512
        $region116: #{transformer_decoder_forward.5} parent=103 // pred_fallthru
          _
      $region104: #{transformer_decoder_forward.5} parent=5 // pred_fallthru
        _
    $region6: #{transformer_decoder_forward.5} parent=1 // loop_footer
      %s43 = sadd.s32 1, %s39
    $region7: #{transformer_decoder_forward.5} parent=1 // loop_footer_branch
      %38 = sbr.rel target = $region3
    $region8: #{transformer_decoder_forward.5} parent=1 // loop_exit
      _
    %2765 = vsyncpa [#allocation5], 1
    %s2766 = scalar_lea.sflag [#allocation5], 1
    %2767 = vsyncpa %s2766, 1
    %2768 = vsyncpa [#allocation7], 1
    %s2769 = scalar_lea.sflag [#allocation7], 1
    %2770 = vsyncpa %s2769, 1

</llo_original>
